<compile_context>
chip_gen: v7x
topology: tpu7x:2x2x1
jax: 0.10.0
libtpu: 0.0.40
codegen_flags: <defaults>
</compile_context>

<pallas_src>
import functools

import jax
import jax.numpy as jnp
import numpy as np
from jax.experimental import pallas as pl
from jax.experimental.pallas import tpu as pltpu

# ----------------------------- model config ---------------------------------
D_MODEL = 32
NHEAD = 4
DIM_FF = 64
L_TGT = 8      # target sequence length
S_MEM = 10     # memory (encoder) sequence length
BATCH = 2
EPS = 1e-5     # PyTorch LayerNorm default


# ------------------------------ fused kernel ---------------------------------
def _decoder_layer_kernel(B, H, L, S,
                          tgt_ref, mem_ref,
                          sa_wqkv_ref, sa_bqkv_ref, sa_wo_ref, sa_bo_ref,
                          ln1_g_ref, ln1_b_ref,
                          ca_wq_ref, ca_bq_ref, ca_wkv_ref, ca_bkv_ref,
                          ca_wo_ref, ca_bo_ref,
                          ln2_g_ref, ln2_b_ref,
                          w1_ref, b1_ref, w2_ref, b2_ref,
                          ln3_g_ref, ln3_b_ref,
                          out_ref,
                          attn_buf):
    E = out_ref.shape[-1]
    Dh = E // H
    f32 = jnp.float32

    def matmul(a, w):                       # (M,K) @ (K,N), f32 accumulate
        return jnp.dot(a, w, preferred_element_type=f32)

    def layer_norm(v, g, b):
        mu = jnp.mean(v, axis=-1, keepdims=True)
        c = v - mu
        var = jnp.mean(c * c, axis=-1, keepdims=True)
        return c * jax.lax.rsqrt(var + EPS) * g + b

    def multi_head_attention(q, k, v, kv_len, wo, bo):
        # q: (B*L, E) with the 1/sqrt(Dh) scale already folded into its
        # projection; k, v: (B*kv_len, E).  Heads live in the E (lane) dim.
        for b in range(B):
            q_b = q[b * L:(b + 1) * L, :]                # (L, E)
            k_b = k[b * kv_len:(b + 1) * kv_len, :]      # (kv_len, E)
            v_b = v[b * kv_len:(b + 1) * kv_len, :]
            for h in range(H):
                cs = slice(h * Dh, (h + 1) * Dh)
                q_bh = q_b[:, cs]                        # (L, Dh)
                k_bh = k_b[:, cs]                        # (kv_len, Dh)
                v_bh = v_b[:, cs]                        # (kv_len, Dh)
                # scores = q @ k.T without materializing a transpose
                s = jax.lax.dot_general(
                    q_bh, k_bh, (((1,), (1,)), ((), ())),
                    preferred_element_type=f32)          # (L, kv_len)
                m = jnp.max(s, axis=-1, keepdims=True)
                p = jnp.exp(s - m)
                denom = jnp.sum(p, axis=-1, keepdims=True)
                p = p / denom                            # exact softmax normalization
                attn_buf[b * L:(b + 1) * L, cs] = matmul(p, v_bh)   # (L, Dh)
        return matmul(attn_buf[...], wo) + bo            # (B*L, E)

    x = tgt_ref[...]          # (B*L, E)   batch-major rows, lane-dense E
    mem = mem_ref[...]        # (B*S, E)

    # ---------------- self-attention block (fused QKV projection) ------------
    qkv = matmul(x, sa_wqkv_ref[...]) + sa_bqkv_ref[...]          # (B*L, 3E)
    attn = multi_head_attention(qkv[:, :E], qkv[:, E:2 * E], qkv[:, 2 * E:],
                                L, sa_wo_ref[...], sa_bo_ref[...])
    x = x + layer_norm(attn, ln1_g_ref[...], ln1_b_ref[...])

    # ---------------- cross-attention block ----------------------------------
    q = matmul(x, ca_wq_ref[...]) + ca_bq_ref[...]                # (B*L, E)
    kv = matmul(mem, ca_wkv_ref[...]) + ca_bkv_ref[...]           # (B*S, 2E)
    attn = multi_head_attention(q, kv[:, :E], kv[:, E:],
                                S, ca_wo_ref[...], ca_bo_ref[...])
    x = x + layer_norm(attn, ln2_g_ref[...], ln2_b_ref[...])

    # ---------------- feed-forward block --------------------------------------
    h1 = jnp.maximum(matmul(x, w1_ref[...]) + b1_ref[...], 0.0)   # (B*L, F)
    ff = matmul(h1, w2_ref[...]) + b2_ref[...]                    # (B*L, E)
    x = x + layer_norm(ff, ln3_g_ref[...], ln3_b_ref[...])

    out_ref[...] = x


# --------------------------- decoder forward ---------------------------------
def decoder_forward(tgt, memory, p):
    # tgt: (L, B, E), memory: (S, B, E)  (seq, batch, embed — PyTorch layout).
    L, B, E = tgt.shape
    S = memory.shape[0]
    H = NHEAD
    Dh = E // H
    scale = float(Dh) ** -0.5

    # Batch-major, lane-dense 2-D activations for the kernel.
    tgt2d = tgt.transpose(1, 0, 2).reshape(B * L, E)      # rows = b*L + l
    mem2d = memory.transpose(1, 0, 2).reshape(B * S, E)   # rows = b*S + s

    # Pre-transpose PyTorch (N, K) weights to (K, N); fold the 1/sqrt(Dh)
    # attention scale into the Q projection weights and bias.
    sa_wqkv = jnp.concatenate(
        [p["sa_in_w"][:E].T * scale, p["sa_in_w"][E:].T], axis=1)     # (E, 3E)
    sa_bqkv = jnp.concatenate(
        [p["sa_in_b"][:E] * scale, p["sa_in_b"][E:]]).reshape(1, 3 * E)
    sa_wo = p["sa_out_w"].T                                           # (E, E)
    sa_bo = p["sa_out_b"].reshape(1, E)

    ca_wq = p["ca_in_w"][:E].T * scale                                # (E, E)
    ca_bq = (p["ca_in_b"][:E] * scale).reshape(1, E)
    ca_wkv = p["ca_in_w"][E:].T                                       # (E, 2E)
    ca_bkv = p["ca_in_b"][E:].reshape(1, 2 * E)
    ca_wo = p["ca_out_w"].T
    ca_bo = p["ca_out_b"].reshape(1, E)

    w1 = p["w1"].T                                                    # (E, F)
    b1 = p["b1"].reshape(1, -1)
    w2 = p["w2"].T                                                    # (F, E)
    b2 = p["b2"].reshape(1, E)

    ln = lambda key: p[key].reshape(1, E)

    out2d = pl.pallas_call(
        functools.partial(_decoder_layer_kernel, B, H, L, S),
        out_shape=jax.ShapeDtypeStruct((B * L, E), jnp.float32),
        scratch_shapes=[pltpu.VMEM((B * L, E), jnp.float32)],   # head-merge buffer
    )(tgt2d, mem2d,
      sa_wqkv, sa_bqkv, sa_wo, sa_bo, ln("ln1_g"), ln("ln1_b"),
      ca_wq, ca_bq, ca_wkv, ca_bkv, ca_wo, ca_bo, ln("ln2_g"), ln("ln2_b"),
      w1, b1, w2, b2, ln("ln3_g"), ln("ln3_b"))

    return out2d.reshape(B, L, E).transpose(1, 0, 2)        # back to (L, B, E)


# --------------------------- pure-JAX reference -------------------------------
def decoder_reference(tgt, memory, p):
    def mha(q_in, k_in, v_in, in_w, in_b, out_w, out_b):
        L, B, E = q_in.shape
        S = k_in.shape[0]
        Dh = E // NHEAD
        q = q_in @ in_w[:E].T + in_b[:E]
        k = k_in @ in_w[E:2 * E].T + in_b[E:2 * E]
        v = v_in @ in_w[2 * E:].T + in_b[2 * E:]
        qh = q.reshape(L, B * NHEAD, Dh).transpose(1, 0, 2) * (float(Dh) ** -0.5)
        kh = k.reshape(S, B * NHEAD, Dh).transpose(1, 0, 2)
        vh = v.reshape(S, B * NHEAD, Dh).transpose(1, 0, 2)
        s = jnp.einsum("hld,hsd->hls", qh, kh)
        pr = jax.nn.softmax(s, axis=-1)
        o = jnp.einsum("hls,hsd->hld", pr, vh)
        o = o.transpose(1, 0, 2).reshape(L * B, E) @ out_w.T + out_b
        return o.reshape(L, B, E)

    def ln(x, g, b):
        mu = x.mean(-1, keepdims=True)
        var = ((x - mu) ** 2).mean(-1, keepdims=True)
        return (x - mu) / jnp.sqrt(var + EPS) * g + b

    def fwd(tgt):
        t2 = mha(tgt, tgt, tgt, p["sa_in_w"], p["sa_in_b"], p["sa_out_w"], p["sa_out_b"])
        tgt = tgt + ln(t2, p["ln1_g"], p["ln1_b"])
        t2 = mha(tgt, memory, memory, p["ca_in_w"], p["ca_in_b"], p["ca_out_w"], p["ca_out_b"])
        tgt = tgt + ln(t2, p["ln2_g"], p["ln2_b"])
        t2 = jnp.maximum(tgt @ p["w1"].T + p["b1"], 0.0) @ p["w2"].T + p["b2"]
        tgt = tgt + ln(t2, p["ln3_g"], p["ln3_b"])
        return tgt

    return fwd(tgt)


# ------------------------------------ main ------------------------------------
def init_params(key):
    ks = jax.random.split(key, 18)
    n = lambda k, shape, s=0.05: (s * jax.random.normal(k, shape)).astype(jnp.float32)
    E, F = D_MODEL, DIM_FF
    return {
        "sa_in_w": n(ks[0], (3 * E, E)), "sa_in_b": n(ks[1], (3 * E,)),
        "sa_out_w": n(ks[2], (E, E)),    "sa_out_b": n(ks[3], (E,)),
        "ca_in_w": n(ks[4], (3 * E, E)), "ca_in_b": n(ks[5], (3 * E,)),
        "ca_out_w": n(ks[6], (E, E)),    "ca_out_b": n(ks[7], (E,)),
        "w1": n(ks[8], (F, E)),          "b1": n(ks[9], (F,)),
        "w2": n(ks[10], (E, F)),         "b2": n(ks[11], (E,)),
        "ln1_g": 1.0 + n(ks[12], (E,), 0.1), "ln1_b": n(ks[13], (E,), 0.1),
        "ln2_g": 1.0 + n(ks[14], (E,), 0.1), "ln2_b": n(ks[15], (E,), 0.1),
        "ln3_g": 1.0 + n(ks[16], (E,), 0.1), "ln3_b": n(ks[17], (E,), 0.1),
    }


if __name__ == "__main__":
    key = jax.random.PRNGKey(0)
    k_tgt, k_mem, k_par = jax.random.split(key, 3)

    tgt = jax.random.normal(k_tgt, (L_TGT, BATCH, D_MODEL), dtype=jnp.float32)
    memory = jax.random.normal(k_mem, (S_MEM, BATCH, D_MODEL), dtype=jnp.float32)
    params = init_params(k_par)

    out = jax.jit(decoder_forward)(tgt, memory, params)
    out = jax.block_until_ready(out)

    ref = decoder_reference(tgt, memory, params)
    assert out.shape == (L_TGT, BATCH, D_MODEL)
    np.testing.assert_allclose(np.asarray(out), np.asarray(ref), rtol=2e-3, atol=2e-3)

    print("KERNEL_OK")
</pallas_src>

<mosaic_0001>
module attributes {stable_mosaic.version = 11 : i64} {
  func.func @_decoder_layer_kernel(%arg0: memref<16x32xf32, #tpu.memory_space<vmem>>, %arg1: memref<20x32xf32, #tpu.memory_space<vmem>>, %arg2: memref<32x96xf32, #tpu.memory_space<vmem>>, %arg3: memref<1x96xf32, #tpu.memory_space<vmem>>, %arg4: memref<32x32xf32, #tpu.memory_space<vmem>>, %arg5: memref<1x32xf32, #tpu.memory_space<vmem>>, %arg6: memref<1x32xf32, #tpu.memory_space<vmem>>, %arg7: memref<1x32xf32, #tpu.memory_space<vmem>>, %arg8: memref<32x32xf32, #tpu.memory_space<vmem>>, %arg9: memref<1x32xf32, #tpu.memory_space<vmem>>, %arg10: memref<32x64xf32, #tpu.memory_space<vmem>>, %arg11: memref<1x64xf32, #tpu.memory_space<vmem>>, %arg12: memref<32x32xf32, #tpu.memory_space<vmem>>, %arg13: memref<1x32xf32, #tpu.memory_space<vmem>>, %arg14: memref<1x32xf32, #tpu.memory_space<vmem>>, %arg15: memref<1x32xf32, #tpu.memory_space<vmem>>, %arg16: memref<32x64xf32, #tpu.memory_space<vmem>>, %arg17: memref<1x64xf32, #tpu.memory_space<vmem>>, %arg18: memref<64x32xf32, #tpu.memory_space<vmem>>, %arg19: memref<1x32xf32, #tpu.memory_space<vmem>>, %arg20: memref<1x32xf32, #tpu.memory_space<vmem>>, %arg21: memref<1x32xf32, #tpu.memory_space<vmem>>, %arg22: memref<16x32xf32, #tpu.memory_space<vmem>>, %arg23: memref<16x32xf32, #tpu.memory_space<vmem>>) attributes {dimension_semantics = [], scalar_prefetch = 0 : i64, scratch_operands = 1 : i64, tpu.core_type = #tpu.core_type<tc>} {
    %c0 = arith.constant 0 : index
    %c0_0 = arith.constant 0 : index
    %0 = vector.load %arg0[%c0, %c0_0] : memref<16x32xf32, #tpu.memory_space<vmem>>, vector<16x32xf32>
    %c0_1 = arith.constant 0 : index
    %c0_2 = arith.constant 0 : index
    %1 = vector.load %arg1[%c0_1, %c0_2] : memref<20x32xf32, #tpu.memory_space<vmem>>, vector<20x32xf32>
    %c0_3 = arith.constant 0 : index
    %c0_4 = arith.constant 0 : index
    %2 = vector.load %arg2[%c0_3, %c0_4] : memref<32x96xf32, #tpu.memory_space<vmem>>, vector<32x96xf32>
    %cst = arith.constant dense<0.000000e+00> : vector<16x96xf32>
    %3 = tpu.matmul %0, %2, %cst {dimension_numbers = #tpu.dot_dimension_numbers<[1], [0], [0], [1], [0, 0, 1, 1], [], []>} : vector<16x32xf32>, vector<32x96xf32>, vector<16x96xf32> -> vector<16x96xf32>
    %c0_5 = arith.constant 0 : index
    %c0_6 = arith.constant 0 : index
    %4 = vector.load %arg3[%c0_5, %c0_6] : memref<1x96xf32, #tpu.memory_space<vmem>>, vector<1x96xf32>
    %5 = vector.broadcast %4 : vector<1x96xf32> to vector<16x96xf32>
    %6 = arith.addf %3, %5 : vector<16x96xf32>
    %7 = vector.extract_strided_slice %6 {offsets = [0, 0], sizes = [16, 32], strides = [1, 1]} : vector<16x96xf32> to vector<16x32xf32>
    %8 = vector.extract_strided_slice %6 {offsets = [0, 32], sizes = [16, 32], strides = [1, 1]} : vector<16x96xf32> to vector<16x32xf32>
    %9 = vector.extract_strided_slice %6 {offsets = [0, 64], sizes = [16, 32], strides = [1, 1]} : vector<16x96xf32> to vector<16x32xf32>
    %c0_7 = arith.constant 0 : index
    %c0_8 = arith.constant 0 : index
    %10 = vector.load %arg4[%c0_7, %c0_8] : memref<32x32xf32, #tpu.memory_space<vmem>>, vector<32x32xf32>
    %c0_9 = arith.constant 0 : index
    %c0_10 = arith.constant 0 : index
    %11 = vector.load %arg5[%c0_9, %c0_10] : memref<1x32xf32, #tpu.memory_space<vmem>>, vector<1x32xf32>
    %12 = vector.extract_strided_slice %7 {offsets = [0, 0], sizes = [8, 32], strides = [1, 1]} : vector<16x32xf32> to vector<8x32xf32>
    %13 = vector.extract_strided_slice %8 {offsets = [0, 0], sizes = [8, 32], strides = [1, 1]} : vector<16x32xf32> to vector<8x32xf32>
    %14 = vector.extract_strided_slice %9 {offsets = [0, 0], sizes = [8, 32], strides = [1, 1]} : vector<16x32xf32> to vector<8x32xf32>
    %15 = vector.extract_strided_slice %12 {offsets = [0, 0], sizes = [8, 8], strides = [1, 1]} : vector<8x32xf32> to vector<8x8xf32>
    %16 = vector.extract_strided_slice %13 {offsets = [0, 0], sizes = [8, 8], strides = [1, 1]} : vector<8x32xf32> to vector<8x8xf32>
    %17 = vector.extract_strided_slice %14 {offsets = [0, 0], sizes = [8, 8], strides = [1, 1]} : vector<8x32xf32> to vector<8x8xf32>
    %cst_11 = arith.constant dense<0.000000e+00> : vector<8x8xf32>
    %18 = tpu.matmul %15, %16, %cst_11 {dimension_numbers = #tpu.dot_dimension_numbers<[1], [1], [0], [0], [0, 0, 1, 0], [], []>} : vector<8x8xf32>, vector<8x8xf32>, vector<8x8xf32> -> vector<8x8xf32>
    %cst_12 = arith.constant dense<0xFF800000> : vector<8xf32>
    %19 = vector.multi_reduction <maximumf>, %18, %cst_12 [1] : vector<8x8xf32> to vector<8xf32>
    %20 = vector.shape_cast %19 : vector<8xf32> to vector<8x1xf32>
    %21 = vector.broadcast %20 : vector<8x1xf32> to vector<8x8xf32>
    %22 = arith.subf %18, %21 : vector<8x8xf32>
    %23 = math.exp %22 : vector<8x8xf32>
    %cst_13 = arith.constant dense<0.000000e+00> : vector<8xf32>
    %24 = vector.multi_reduction <add>, %23, %cst_13 [1] : vector<8x8xf32> to vector<8xf32>
    %25 = vector.shape_cast %24 : vector<8xf32> to vector<8x1xf32>
    %26 = vector.broadcast %25 : vector<8x1xf32> to vector<8x8xf32>
    %27 = arith.divf %23, %26 : vector<8x8xf32>
    %cst_14 = arith.constant dense<0.000000e+00> : vector<8x8xf32>
    %28 = tpu.matmul %27, %17, %cst_14 {dimension_numbers = #tpu.dot_dimension_numbers<[1], [0], [0], [1], [0, 0, 1, 1], [], []>} : vector<8x8xf32>, vector<8x8xf32>, vector<8x8xf32> -> vector<8x8xf32>
    %c0_15 = arith.constant 0 : index
    %c0_16 = arith.constant 0 : index
    %29 = vector.load %arg23[%c0_15, %c0_16] : memref<16x32xf32, #tpu.memory_space<vmem>>, vector<8x8xf32>
    tpu.vector_store %arg23[%c0_15, %c0_16], %28 {strides = array<i32>} : memref<16x32xf32, #tpu.memory_space<vmem>>, vector<8x8xf32>,
    %30 = vector.extract_strided_slice %12 {offsets = [0, 8], sizes = [8, 8], strides = [1, 1]} : vector<8x32xf32> to vector<8x8xf32>
    %31 = vector.extract_strided_slice %13 {offsets = [0, 8], sizes = [8, 8], strides = [1, 1]} : vector<8x32xf32> to vector<8x8xf32>
    %32 = vector.extract_strided_slice %14 {offsets = [0, 8], sizes = [8, 8], strides = [1, 1]} : vector<8x32xf32> to vector<8x8xf32>
    %cst_17 = arith.constant dense<0.000000e+00> : vector<8x8xf32>
    %33 = tpu.matmul %30, %31, %cst_17 {dimension_numbers = #tpu.dot_dimension_numbers<[1], [1], [0], [0], [0, 0, 1, 0], [], []>} : vector<8x8xf32>, vector<8x8xf32>, vector<8x8xf32> -> vector<8x8xf32>
    %cst_18 = arith.constant dense<0xFF800000> : vector<8xf32>
    %34 = vector.multi_reduction <maximumf>, %33, %cst_18 [1] : vector<8x8xf32> to vector<8xf32>
    %35 = vector.shape_cast %34 : vector<8xf32> to vector<8x1xf32>
    %36 = vector.broadcast %35 : vector<8x1xf32> to vector<8x8xf32>
    %37 = arith.subf %33, %36 : vector<8x8xf32>
    %38 = math.exp %37 : vector<8x8xf32>
    %cst_19 = arith.constant dense<0.000000e+00> : vector<8xf32>
    %39 = vector.multi_reduction <add>, %38, %cst_19 [1] : vector<8x8xf32> to vector<8xf32>
    %40 = vector.shape_cast %39 : vector<8xf32> to vector<8x1xf32>
    %41 = vector.broadcast %40 : vector<8x1xf32> to vector<8x8xf32>
    %42 = arith.divf %38, %41 : vector<8x8xf32>
    %cst_20 = arith.constant dense<0.000000e+00> : vector<8x8xf32>
    %43 = tpu.matmul %42, %32, %cst_20 {dimension_numbers = #tpu.dot_dimension_numbers<[1], [0], [0], [1], [0, 0, 1, 1], [], []>} : vector<8x8xf32>, vector<8x8xf32>, vector<8x8xf32> -> vector<8x8xf32>
    %c0_21 = arith.constant 0 : index
    %c8 = arith.constant 8 : index
    %44 = vector.load %arg23[%c0_21, %c8] : memref<16x32xf32, #tpu.memory_space<vmem>>, vector<8x8xf32>
    tpu.vector_store %arg23[%c0_21, %c8], %43 {strides = array<i32>} : memref<16x32xf32, #tpu.memory_space<vmem>>, vector<8x8xf32>,
    %45 = vector.extract_strided_slice %12 {offsets = [0, 16], sizes = [8, 8], strides = [1, 1]} : vector<8x32xf32> to vector<8x8xf32>
    %46 = vector.extract_strided_slice %13 {offsets = [0, 16], sizes = [8, 8], strides = [1, 1]} : vector<8x32xf32> to vector<8x8xf32>
    %47 = vector.extract_strided_slice %14 {offsets = [0, 16], sizes = [8, 8], strides = [1, 1]} : vector<8x32xf32> to vector<8x8xf32>
    %cst_22 = arith.constant dense<0.000000e+00> : vector<8x8xf32>
    %48 = tpu.matmul %45, %46, %cst_22 {dimension_numbers = #tpu.dot_dimension_numbers<[1], [1], [0], [0], [0, 0, 1, 0], [], []>} : vector<8x8xf32>, vector<8x8xf32>, vector<8x8xf32> -> vector<8x8xf32>
    %cst_23 = arith.constant dense<0xFF800000> : vector<8xf32>
    %49 = vector.multi_reduction <maximumf>, %48, %cst_23 [1] : vector<8x8xf32> to vector<8xf32>
    %50 = vector.shape_cast %49 : vector<8xf32> to vector<8x1xf32>
    %51 = vector.broadcast %50 : vector<8x1xf32> to vector<8x8xf32>
    %52 = arith.subf %48, %51 : vector<8x8xf32>
    %53 = math.exp %52 : vector<8x8xf32>
    %cst_24 = arith.constant dense<0.000000e+00> : vector<8xf32>
    %54 = vector.multi_reduction <add>, %53, %cst_24 [1] : vector<8x8xf32> to vector<8xf32>
    %55 = vector.shape_cast %54 : vector<8xf32> to vector<8x1xf32>
    %56 = vector.broadcast %55 : vector<8x1xf32> to vector<8x8xf32>
    %57 = arith.divf %53, %56 : vector<8x8xf32>
    %cst_25 = arith.constant dense<0.000000e+00> : vector<8x8xf32>
    %58 = tpu.matmul %57, %47, %cst_25 {dimension_numbers = #tpu.dot_dimension_numbers<[1], [0], [0], [1], [0, 0, 1, 1], [], []>} : vector<8x8xf32>, vector<8x8xf32>, vector<8x8xf32> -> vector<8x8xf32>
    %c0_26 = arith.constant 0 : index
    %c16 = arith.constant 16 : index
    %59 = vector.load %arg23[%c0_26, %c16] : memref<16x32xf32, #tpu.memory_space<vmem>>, vector<8x8xf32>
    tpu.vector_store %arg23[%c0_26, %c16], %58 {strides = array<i32>} : memref<16x32xf32, #tpu.memory_space<vmem>>, vector<8x8xf32>,
    %60 = vector.extract_strided_slice %12 {offsets = [0, 24], sizes = [8, 8], strides = [1, 1]} : vector<8x32xf32> to vector<8x8xf32>
    %61 = vector.extract_strided_slice %13 {offsets = [0, 24], sizes = [8, 8], strides = [1, 1]} : vector<8x32xf32> to vector<8x8xf32>
    %62 = vector.extract_strided_slice %14 {offsets = [0, 24], sizes = [8, 8], strides = [1, 1]} : vector<8x32xf32> to vector<8x8xf32>
    %cst_27 = arith.constant dense<0.000000e+00> : vector<8x8xf32>
    %63 = tpu.matmul %60, %61, %cst_27 {dimension_numbers = #tpu.dot_dimension_numbers<[1], [1], [0], [0], [0, 0, 1, 0], [], []>} : vector<8x8xf32>, vector<8x8xf32>, vector<8x8xf32> -> vector<8x8xf32>
    %cst_28 = arith.constant dense<0xFF800000> : vector<8xf32>
    %64 = vector.multi_reduction <maximumf>, %63, %cst_28 [1] : vector<8x8xf32> to vector<8xf32>
    %65 = vector.shape_cast %64 : vector<8xf32> to vector<8x1xf32>
    %66 = vector.broadcast %65 : vector<8x1xf32> to vector<8x8xf32>
    %67 = arith.subf %63, %66 : vector<8x8xf32>
    %68 = math.exp %67 : vector<8x8xf32>
    %cst_29 = arith.constant dense<0.000000e+00> : vector<8xf32>
    %69 = vector.multi_reduction <add>, %68, %cst_29 [1] : vector<8x8xf32> to vector<8xf32>
    %70 = vector.shape_cast %69 : vector<8xf32> to vector<8x1xf32>
    %71 = vector.broadcast %70 : vector<8x1xf32> to vector<8x8xf32>
    %72 = arith.divf %68, %71 : vector<8x8xf32>
    %cst_30 = arith.constant dense<0.000000e+00> : vector<8x8xf32>
    %73 = tpu.matmul %72, %62, %cst_30 {dimension_numbers = #tpu.dot_dimension_numbers<[1], [0], [0], [1], [0, 0, 1, 1], [], []>} : vector<8x8xf32>, vector<8x8xf32>, vector<8x8xf32> -> vector<8x8xf32>
    %c0_31 = arith.constant 0 : index
    %c24 = arith.constant 24 : index
    %74 = vector.load %arg23[%c0_31, %c24] : memref<16x32xf32, #tpu.memory_space<vmem>>, vector<8x8xf32>
    tpu.vector_store %arg23[%c0_31, %c24], %73 {strides = array<i32>} : memref<16x32xf32, #tpu.memory_space<vmem>>, vector<8x8xf32>,
    %75 = vector.extract_strided_slice %7 {offsets = [8, 0], sizes = [8, 32], strides = [1, 1]} : vector<16x32xf32> to vector<8x32xf32>
    %76 = vector.extract_strided_slice %8 {offsets = [8, 0], sizes = [8, 32], strides = [1, 1]} : vector<16x32xf32> to vector<8x32xf32>
    %77 = vector.extract_strided_slice %9 {offsets = [8, 0], sizes = [8, 32], strides = [1, 1]} : vector<16x32xf32> to vector<8x32xf32>
    %78 = vector.extract_strided_slice %75 {offsets = [0, 0], sizes = [8, 8], strides = [1, 1]} : vector<8x32xf32> to vector<8x8xf32>
    %79 = vector.extract_strided_slice %76 {offsets = [0, 0], sizes = [8, 8], strides = [1, 1]} : vector<8x32xf32> to vector<8x8xf32>
    %80 = vector.extract_strided_slice %77 {offsets = [0, 0], sizes = [8, 8], strides = [1, 1]} : vector<8x32xf32> to vector<8x8xf32>
    %cst_32 = arith.constant dense<0.000000e+00> : vector<8x8xf32>
    %81 = tpu.matmul %78, %79, %cst_32 {dimension_numbers = #tpu.dot_dimension_numbers<[1], [1], [0], [0], [0, 0, 1, 0], [], []>} : vector<8x8xf32>, vector<8x8xf32>, vector<8x8xf32> -> vector<8x8xf32>
    %cst_33 = arith.constant dense<0xFF800000> : vector<8xf32>
    %82 = vector.multi_reduction <maximumf>, %81, %cst_33 [1] : vector<8x8xf32> to vector<8xf32>
    %83 = vector.shape_cast %82 : vector<8xf32> to vector<8x1xf32>
    %84 = vector.broadcast %83 : vector<8x1xf32> to vector<8x8xf32>
    %85 = arith.subf %81, %84 : vector<8x8xf32>
    %86 = math.exp %85 : vector<8x8xf32>
    %cst_34 = arith.constant dense<0.000000e+00> : vector<8xf32>
    %87 = vector.multi_reduction <add>, %86, %cst_34 [1] : vector<8x8xf32> to vector<8xf32>
    %88 = vector.shape_cast %87 : vector<8xf32> to vector<8x1xf32>
    %89 = vector.broadcast %88 : vector<8x1xf32> to vector<8x8xf32>
    %90 = arith.divf %86, %89 : vector<8x8xf32>
    %cst_35 = arith.constant dense<0.000000e+00> : vector<8x8xf32>
    %91 = tpu.matmul %90, %80, %cst_35 {dimension_numbers = #tpu.dot_dimension_numbers<[1], [0], [0], [1], [0, 0, 1, 1], [], []>} : vector<8x8xf32>, vector<8x8xf32>, vector<8x8xf32> -> vector<8x8xf32>
    %c8_36 = arith.constant 8 : index
    %c0_37 = arith.constant 0 : index
    %92 = vector.load %arg23[%c8_36, %c0_37] : memref<16x32xf32, #tpu.memory_space<vmem>>, vector<8x8xf32>
    tpu.vector_store %arg23[%c8_36, %c0_37], %91 {strides = array<i32>} : memref<16x32xf32, #tpu.memory_space<vmem>>, vector<8x8xf32>,
    %93 = vector.extract_strided_slice %75 {offsets = [0, 8], sizes = [8, 8], strides = [1, 1]} : vector<8x32xf32> to vector<8x8xf32>
    %94 = vector.extract_strided_slice %76 {offsets = [0, 8], sizes = [8, 8], strides = [1, 1]} : vector<8x32xf32> to vector<8x8xf32>
    %95 = vector.extract_strided_slice %77 {offsets = [0, 8], sizes = [8, 8], strides = [1, 1]} : vector<8x32xf32> to vector<8x8xf32>
    %cst_38 = arith.constant dense<0.000000e+00> : vector<8x8xf32>
    %96 = tpu.matmul %93, %94, %cst_38 {dimension_numbers = #tpu.dot_dimension_numbers<[1], [1], [0], [0], [0, 0, 1, 0], [], []>} : vector<8x8xf32>, vector<8x8xf32>, vector<8x8xf32> -> vector<8x8xf32>
    %cst_39 = arith.constant dense<0xFF800000> : vector<8xf32>
    %97 = vector.multi_reduction <maximumf>, %96, %cst_39 [1] : vector<8x8xf32> to vector<8xf32>
    %98 = vector.shape_cast %97 : vector<8xf32> to vector<8x1xf32>
    %99 = vector.broadcast %98 : vector<8x1xf32> to vector<8x8xf32>
    %100 = arith.subf %96, %99 : vector<8x8xf32>
    %101 = math.exp %100 : vector<8x8xf32>
    %cst_40 = arith.constant dense<0.000000e+00> : vector<8xf32>
    %102 = vector.multi_reduction <add>, %101, %cst_40 [1] : vector<8x8xf32> to vector<8xf32>
    %103 = vector.shape_cast %102 : vector<8xf32> to vector<8x1xf32>
    %104 = vector.broadcast %103 : vector<8x1xf32> to vector<8x8xf32>
    %105 = arith.divf %101, %104 : vector<8x8xf32>
    %cst_41 = arith.constant dense<0.000000e+00> : vector<8x8xf32>
    %106 = tpu.matmul %105, %95, %cst_41 {dimension_numbers = #tpu.dot_dimension_numbers<[1], [0], [0], [1], [0, 0, 1, 1], [], []>} : vector<8x8xf32>, vector<8x8xf32>, vector<8x8xf32> -> vector<8x8xf32>
    %c8_42 = arith.constant 8 : index
    %c8_43 = arith.constant 8 : index
    %107 = vector.load %arg23[%c8_42, %c8_43] : memref<16x32xf32, #tpu.memory_space<vmem>>, vector<8x8xf32>
    tpu.vector_store %arg23[%c8_42, %c8_43], %106 {strides = array<i32>} : memref<16x32xf32, #tpu.memory_space<vmem>>, vector<8x8xf32>,
    %108 = vector.extract_strided_slice %75 {offsets = [0, 16], sizes = [8, 8], strides = [1, 1]} : vector<8x32xf32> to vector<8x8xf32>
    %109 = vector.extract_strided_slice %76 {offsets = [0, 16], sizes = [8, 8], strides = [1, 1]} : vector<8x32xf32> to vector<8x8xf32>
    %110 = vector.extract_strided_slice %77 {offsets = [0, 16], sizes = [8, 8], strides = [1, 1]} : vector<8x32xf32> to vector<8x8xf32>
    %cst_44 = arith.constant dense<0.000000e+00> : vector<8x8xf32>
    %111 = tpu.matmul %108, %109, %cst_44 {dimension_numbers = #tpu.dot_dimension_numbers<[1], [1], [0], [0], [0, 0, 1, 0], [], []>} : vector<8x8xf32>, vector<8x8xf32>, vector<8x8xf32> -> vector<8x8xf32>
    %cst_45 = arith.constant dense<0xFF800000> : vector<8xf32>
    %112 = vector.multi_reduction <maximumf>, %111, %cst_45 [1] : vector<8x8xf32> to vector<8xf32>
    %113 = vector.shape_cast %112 : vector<8xf32> to vector<8x1xf32>
    %114 = vector.broadcast %113 : vector<8x1xf32> to vector<8x8xf32>
    %115 = arith.subf %111, %114 : vector<8x8xf32>
    %116 = math.exp %115 : vector<8x8xf32>
    %cst_46 = arith.constant dense<0.000000e+00> : vector<8xf32>
    %117 = vector.multi_reduction <add>, %116, %cst_46 [1] : vector<8x8xf32> to vector<8xf32>
    %118 = vector.shape_cast %117 : vector<8xf32> to vector<8x1xf32>
    %119 = vector.broadcast %118 : vector<8x1xf32> to vector<8x8xf32>
    %120 = arith.divf %116, %119 : vector<8x8xf32>
    %cst_47 = arith.constant dense<0.000000e+00> : vector<8x8xf32>
    %121 = tpu.matmul %120, %110, %cst_47 {dimension_numbers = #tpu.dot_dimension_numbers<[1], [0], [0], [1], [0, 0, 1, 1], [], []>} : vector<8x8xf32>, vector<8x8xf32>, vector<8x8xf32> -> vector<8x8xf32>
    %c8_48 = arith.constant 8 : index
    %c16_49 = arith.constant 16 : index
    %122 = vector.load %arg23[%c8_48, %c16_49] : memref<16x32xf32, #tpu.memory_space<vmem>>, vector<8x8xf32>
    tpu.vector_store %arg23[%c8_48, %c16_49], %121 {strides = array<i32>} : memref<16x32xf32, #tpu.memory_space<vmem>>, vector<8x8xf32>,
    %123 = vector.extract_strided_slice %75 {offsets = [0, 24], sizes = [8, 8], strides = [1, 1]} : vector<8x32xf32> to vector<8x8xf32>
    %124 = vector.extract_strided_slice %76 {offsets = [0, 24], sizes = [8, 8], strides = [1, 1]} : vector<8x32xf32> to vector<8x8xf32>
    %125 = vector.extract_strided_slice %77 {offsets = [0, 24], sizes = [8, 8], strides = [1, 1]} : vector<8x32xf32> to vector<8x8xf32>
    %cst_50 = arith.constant dense<0.000000e+00> : vector<8x8xf32>
    %126 = tpu.matmul %123, %124, %cst_50 {dimension_numbers = #tpu.dot_dimension_numbers<[1], [1], [0], [0], [0, 0, 1, 0], [], []>} : vector<8x8xf32>, vector<8x8xf32>, vector<8x8xf32> -> vector<8x8xf32>
    %cst_51 = arith.constant dense<0xFF800000> : vector<8xf32>
    %127 = vector.multi_reduction <maximumf>, %126, %cst_51 [1] : vector<8x8xf32> to vector<8xf32>
    %128 = vector.shape_cast %127 : vector<8xf32> to vector<8x1xf32>
    %129 = vector.broadcast %128 : vector<8x1xf32> to vector<8x8xf32>
    %130 = arith.subf %126, %129 : vector<8x8xf32>
    %131 = math.exp %130 : vector<8x8xf32>
    %cst_52 = arith.constant dense<0.000000e+00> : vector<8xf32>
    %132 = vector.multi_reduction <add>, %131, %cst_52 [1] : vector<8x8xf32> to vector<8xf32>
    %133 = vector.shape_cast %132 : vector<8xf32> to vector<8x1xf32>
    %134 = vector.broadcast %133 : vector<8x1xf32> to vector<8x8xf32>
    %135 = arith.divf %131, %134 : vector<8x8xf32>
    %cst_53 = arith.constant dense<0.000000e+00> : vector<8x8xf32>
    %136 = tpu.matmul %135, %125, %cst_53 {dimension_numbers = #tpu.dot_dimension_numbers<[1], [0], [0], [1], [0, 0, 1, 1], [], []>} : vector<8x8xf32>, vector<8x8xf32>, vector<8x8xf32> -> vector<8x8xf32>
    %c8_54 = arith.constant 8 : index
    %c24_55 = arith.constant 24 : index
    %137 = vector.load %arg23[%c8_54, %c24_55] : memref<16x32xf32, #tpu.memory_space<vmem>>, vector<8x8xf32>
    tpu.vector_store %arg23[%c8_54, %c24_55], %136 {strides = array<i32>} : memref<16x32xf32, #tpu.memory_space<vmem>>, vector<8x8xf32>,
    %c0_56 = arith.constant 0 : index
    %c0_57 = arith.constant 0 : index
    %138 = vector.load %arg23[%c0_56, %c0_57] : memref<16x32xf32, #tpu.memory_space<vmem>>, vector<16x32xf32>
    %cst_58 = arith.constant dense<0.000000e+00> : vector<16x32xf32>
    %139 = tpu.matmul %138, %10, %cst_58 {dimension_numbers = #tpu.dot_dimension_numbers<[1], [0], [0], [1], [0, 0, 1, 1], [], []>} : vector<16x32xf32>, vector<32x32xf32>, vector<16x32xf32> -> vector<16x32xf32>
    %140 = vector.broadcast %11 : vector<1x32xf32> to vector<16x32xf32>
    %141 = arith.addf %139, %140 : vector<16x32xf32>
    %c0_59 = arith.constant 0 : index
    %c0_60 = arith.constant 0 : index
    %142 = vector.load %arg6[%c0_59, %c0_60] : memref<1x32xf32, #tpu.memory_space<vmem>>, vector<1x32xf32>
    %c0_61 = arith.constant 0 : index
    %c0_62 = arith.constant 0 : index
    %143 = vector.load %arg7[%c0_61, %c0_62] : memref<1x32xf32, #tpu.memory_space<vmem>>, vector<1x32xf32>
    %cst_63 = arith.constant dense<0.000000e+00> : vector<16xf32>
    %144 = vector.multi_reduction <add>, %141, %cst_63 [1] : vector<16x32xf32> to vector<16xf32>
    %145 = vector.shape_cast %144 : vector<16xf32> to vector<16x1xf32>
    %cst_64 = arith.constant 3.200000e+01 : f32
    %146 = vector.broadcast %cst_64 : f32 to vector<16x1xf32>
    %147 = arith.divf %145, %146 : vector<16x1xf32>
    %148 = vector.broadcast %147 : vector<16x1xf32> to vector<16x32xf32>
    %149 = arith.subf %141, %148 : vector<16x32xf32>
    %150 = arith.mulf %149, %149 : vector<16x32xf32>
    %cst_65 = arith.constant dense<0.000000e+00> : vector<16xf32>
    %151 = vector.multi_reduction <add>, %150, %cst_65 [1] : vector<16x32xf32> to vector<16xf32>
    %152 = vector.shape_cast %151 : vector<16xf32> to vector<16x1xf32>
    %cst_66 = arith.constant 3.200000e+01 : f32
    %153 = vector.broadcast %cst_66 : f32 to vector<16x1xf32>
    %154 = arith.divf %152, %153 : vector<16x1xf32>
    %cst_67 = arith.constant 9.99999974E-6 : f32
    %155 = vector.broadcast %cst_67 : f32 to vector<16x1xf32>
    %156 = arith.addf %154, %155 : vector<16x1xf32>
    %157 = math.rsqrt %156 : vector<16x1xf32>
    %158 = vector.broadcast %157 : vector<16x1xf32> to vector<16x32xf32>
    %159 = arith.mulf %149, %158 : vector<16x32xf32>
    %160 = vector.broadcast %142 : vector<1x32xf32> to vector<16x32xf32>
    %161 = arith.mulf %159, %160 : vector<16x32xf32>
    %162 = vector.broadcast %143 : vector<1x32xf32> to vector<16x32xf32>
    %163 = arith.addf %161, %162 : vector<16x32xf32>
    %164 = arith.addf %0, %163 : vector<16x32xf32>
    %c0_68 = arith.constant 0 : index
    %c0_69 = arith.constant 0 : index
    %165 = vector.load %arg8[%c0_68, %c0_69] : memref<32x32xf32, #tpu.memory_space<vmem>>, vector<32x32xf32>
    %cst_70 = arith.constant dense<0.000000e+00> : vector<16x32xf32>
    %166 = tpu.matmul %164, %165, %cst_70 {dimension_numbers = #tpu.dot_dimension_numbers<[1], [0], [0], [1], [0, 0, 1, 1], [], []>} : vector<16x32xf32>, vector<32x32xf32>, vector<16x32xf32> -> vector<16x32xf32>
    %c0_71 = arith.constant 0 : index
    %c0_72 = arith.constant 0 : index
    %167 = vector.load %arg9[%c0_71, %c0_72] : memref<1x32xf32, #tpu.memory_space<vmem>>, vector<1x32xf32>
    %168 = vector.broadcast %167 : vector<1x32xf32> to vector<16x32xf32>
    %169 = arith.addf %166, %168 : vector<16x32xf32>
    %c0_73 = arith.constant 0 : index
    %c0_74 = arith.constant 0 : index
    %170 = vector.load %arg10[%c0_73, %c0_74] : memref<32x64xf32, #tpu.memory_space<vmem>>, vector<32x64xf32>
    %cst_75 = arith.constant dense<0.000000e+00> : vector<20x64xf32>
    %171 = tpu.matmul %1, %170, %cst_75 {dimension_numbers = #tpu.dot_dimension_numbers<[1], [0], [0], [1], [0, 0, 1, 1], [], []>} : vector<20x32xf32>, vector<32x64xf32>, vector<20x64xf32> -> vector<20x64xf32>
    %c0_76 = arith.constant 0 : index
    %c0_77 = arith.constant 0 : index
    %172 = vector.load %arg11[%c0_76, %c0_77] : memref<1x64xf32, #tpu.memory_space<vmem>>, vector<1x64xf32>
    %173 = vector.broadcast %172 : vector<1x64xf32> to vector<20x64xf32>
    %174 = arith.addf %171, %173 : vector<20x64xf32>
    %175 = vector.extract_strided_slice %174 {offsets = [0, 0], sizes = [20, 32], strides = [1, 1]} : vector<20x64xf32> to vector<20x32xf32>
    %176 = vector.extract_strided_slice %174 {offsets = [0, 32], sizes = [20, 32], strides = [1, 1]} : vector<20x64xf32> to vector<20x32xf32>
    %c0_78 = arith.constant 0 : index
    %c0_79 = arith.constant 0 : index
    %177 = vector.load %arg12[%c0_78, %c0_79] : memref<32x32xf32, #tpu.memory_space<vmem>>, vector<32x32xf32>
    %c0_80 = arith.constant 0 : index
    %c0_81 = arith.constant 0 : index
    %178 = vector.load %arg13[%c0_80, %c0_81] : memref<1x32xf32, #tpu.memory_space<vmem>>, vector<1x32xf32>
    %179 = vector.extract_strided_slice %169 {offsets = [0, 0], sizes = [8, 32], strides = [1, 1]} : vector<16x32xf32> to vector<8x32xf32>
    %180 = vector.extract_strided_slice %175 {offsets = [0, 0], sizes = [10, 32], strides = [1, 1]} : vector<20x32xf32> to vector<10x32xf32>
    %181 = vector.extract_strided_slice %176 {offsets = [0, 0], sizes = [10, 32], strides = [1, 1]} : vector<20x32xf32> to vector<10x32xf32>
    %182 = vector.extract_strided_slice %179 {offsets = [0, 0], sizes = [8, 8], strides = [1, 1]} : vector<8x32xf32> to vector<8x8xf32>
    %183 = vector.extract_strided_slice %180 {offsets = [0, 0], sizes = [10, 8], strides = [1, 1]} : vector<10x32xf32> to vector<10x8xf32>
    %184 = vector.extract_strided_slice %181 {offsets = [0, 0], sizes = [10, 8], strides = [1, 1]} : vector<10x32xf32> to vector<10x8xf32>
    %cst_82 = arith.constant dense<0.000000e+00> : vector<8x10xf32>
    %185 = tpu.matmul %182, %183, %cst_82 {dimension_numbers = #tpu.dot_dimension_numbers<[1], [1], [0], [0], [0, 0, 1, 0], [], []>} : vector<8x8xf32>, vector<10x8xf32>, vector<8x10xf32> -> vector<8x10xf32>
    %cst_83 = arith.constant dense<0xFF800000> : vector<8xf32>
    %186 = vector.multi_reduction <maximumf>, %185, %cst_83 [1] : vector<8x10xf32> to vector<8xf32>
    %187 = vector.shape_cast %186 : vector<8xf32> to vector<8x1xf32>
    %188 = vector.broadcast %187 : vector<8x1xf32> to vector<8x10xf32>
    %189 = arith.subf %185, %188 : vector<8x10xf32>
    %190 = math.exp %189 : vector<8x10xf32>
    %cst_84 = arith.constant dense<0.000000e+00> : vector<8xf32>
    %191 = vector.multi_reduction <add>, %190, %cst_84 [1] : vector<8x10xf32> to vector<8xf32>
    %192 = vector.shape_cast %191 : vector<8xf32> to vector<8x1xf32>
    %193 = vector.broadcast %192 : vector<8x1xf32> to vector<8x10xf32>
    %194 = arith.divf %190, %193 : vector<8x10xf32>
    %cst_85 = arith.constant dense<0.000000e+00> : vector<8x8xf32>
    %195 = tpu.matmul %194, %184, %cst_85 {dimension_numbers = #tpu.dot_dimension_numbers<[1], [0], [0], [1], [0, 0, 1, 1], [], []>} : vector<8x10xf32>, vector<10x8xf32>, vector<8x8xf32> -> vector<8x8xf32>
    %c0_86 = arith.constant 0 : index
    %c0_87 = arith.constant 0 : index
    %196 = vector.load %arg23[%c0_86, %c0_87] : memref<16x32xf32, #tpu.memory_space<vmem>>, vector<8x8xf32>
    tpu.vector_store %arg23[%c0_86, %c0_87], %195 {strides = array<i32>} : memref<16x32xf32, #tpu.memory_space<vmem>>, vector<8x8xf32>,
    %197 = vector.extract_strided_slice %179 {offsets = [0, 8], sizes = [8, 8], strides = [1, 1]} : vector<8x32xf32> to vector<8x8xf32>
    %198 = vector.extract_strided_slice %180 {offsets = [0, 8], sizes = [10, 8], strides = [1, 1]} : vector<10x32xf32> to vector<10x8xf32>
    %199 = vector.extract_strided_slice %181 {offsets = [0, 8], sizes = [10, 8], strides = [1, 1]} : vector<10x32xf32> to vector<10x8xf32>
    %cst_88 = arith.constant dense<0.000000e+00> : vector<8x10xf32>
    %200 = tpu.matmul %197, %198, %cst_88 {dimension_numbers = #tpu.dot_dimension_numbers<[1], [1], [0], [0], [0, 0, 1, 0], [], []>} : vector<8x8xf32>, vector<10x8xf32>, vector<8x10xf32> -> vector<8x10xf32>
    %cst_89 = arith.constant dense<0xFF800000> : vector<8xf32>
    %201 = vector.multi_reduction <maximumf>, %200, %cst_89 [1] : vector<8x10xf32> to vector<8xf32>
    %202 = vector.shape_cast %201 : vector<8xf32> to vector<8x1xf32>
    %203 = vector.broadcast %202 : vector<8x1xf32> to vector<8x10xf32>
    %204 = arith.subf %200, %203 : vector<8x10xf32>
    %205 = math.exp %204 : vector<8x10xf32>
    %cst_90 = arith.constant dense<0.000000e+00> : vector<8xf32>
    %206 = vector.multi_reduction <add>, %205, %cst_90 [1] : vector<8x10xf32> to vector<8xf32>
    %207 = vector.shape_cast %206 : vector<8xf32> to vector<8x1xf32>
    %208 = vector.broadcast %207 : vector<8x1xf32> to vector<8x10xf32>
    %209 = arith.divf %205, %208 : vector<8x10xf32>
    %cst_91 = arith.constant dense<0.000000e+00> : vector<8x8xf32>
    %210 = tpu.matmul %209, %199, %cst_91 {dimension_numbers = #tpu.dot_dimension_numbers<[1], [0], [0], [1], [0, 0, 1, 1], [], []>} : vector<8x10xf32>, vector<10x8xf32>, vector<8x8xf32> -> vector<8x8xf32>
    %c0_92 = arith.constant 0 : index
    %c8_93 = arith.constant 8 : index
    %211 = vector.load %arg23[%c0_92, %c8_93] : memref<16x32xf32, #tpu.memory_space<vmem>>, vector<8x8xf32>
    tpu.vector_store %arg23[%c0_92, %c8_93], %210 {strides = array<i32>} : memref<16x32xf32, #tpu.memory_space<vmem>>, vector<8x8xf32>,
    %212 = vector.extract_strided_slice %179 {offsets = [0, 16], sizes = [8, 8], strides = [1, 1]} : vector<8x32xf32> to vector<8x8xf32>
    %213 = vector.extract_strided_slice %180 {offsets = [0, 16], sizes = [10, 8], strides = [1, 1]} : vector<10x32xf32> to vector<10x8xf32>
    %214 = vector.extract_strided_slice %181 {offsets = [0, 16], sizes = [10, 8], strides = [1, 1]} : vector<10x32xf32> to vector<10x8xf32>
    %cst_94 = arith.constant dense<0.000000e+00> : vector<8x10xf32>
    %215 = tpu.matmul %212, %213, %cst_94 {dimension_numbers = #tpu.dot_dimension_numbers<[1], [1], [0], [0], [0, 0, 1, 0], [], []>} : vector<8x8xf32>, vector<10x8xf32>, vector<8x10xf32> -> vector<8x10xf32>
    %cst_95 = arith.constant dense<0xFF800000> : vector<8xf32>
    %216 = vector.multi_reduction <maximumf>, %215, %cst_95 [1] : vector<8x10xf32> to vector<8xf32>
    %217 = vector.shape_cast %216 : vector<8xf32> to vector<8x1xf32>
    %218 = vector.broadcast %217 : vector<8x1xf32> to vector<8x10xf32>
    %219 = arith.subf %215, %218 : vector<8x10xf32>
    %220 = math.exp %219 : vector<8x10xf32>
    %cst_96 = arith.constant dense<0.000000e+00> : vector<8xf32>
    %221 = vector.multi_reduction <add>, %220, %cst_96 [1] : vector<8x10xf32> to vector<8xf32>
    %222 = vector.shape_cast %221 : vector<8xf32> to vector<8x1xf32>
    %223 = vector.broadcast %222 : vector<8x1xf32> to vector<8x10xf32>
    %224 = arith.divf %220, %223 : vector<8x10xf32>
    %cst_97 = arith.constant dense<0.000000e+00> : vector<8x8xf32>
    %225 = tpu.matmul %224, %214, %cst_97 {dimension_numbers = #tpu.dot_dimension_numbers<[1], [0], [0], [1], [0, 0, 1, 1], [], []>} : vector<8x10xf32>, vector<10x8xf32>, vector<8x8xf32> -> vector<8x8xf32>
    %c0_98 = arith.constant 0 : index
    %c16_99 = arith.constant 16 : index
    %226 = vector.load %arg23[%c0_98, %c16_99] : memref<16x32xf32, #tpu.memory_space<vmem>>, vector<8x8xf32>
    tpu.vector_store %arg23[%c0_98, %c16_99], %225 {strides = array<i32>} : memref<16x32xf32, #tpu.memory_space<vmem>>, vector<8x8xf32>,
    %227 = vector.extract_strided_slice %179 {offsets = [0, 24], sizes = [8, 8], strides = [1, 1]} : vector<8x32xf32> to vector<8x8xf32>
    %228 = vector.extract_strided_slice %180 {offsets = [0, 24], sizes = [10, 8], strides = [1, 1]} : vector<10x32xf32> to vector<10x8xf32>
    %229 = vector.extract_strided_slice %181 {offsets = [0, 24], sizes = [10, 8], strides = [1, 1]} : vector<10x32xf32> to vector<10x8xf32>
    %cst_100 = arith.constant dense<0.000000e+00> : vector<8x10xf32>
    %230 = tpu.matmul %227, %228, %cst_100 {dimension_numbers = #tpu.dot_dimension_numbers<[1], [1], [0], [0], [0, 0, 1, 0], [], []>} : vector<8x8xf32>, vector<10x8xf32>, vector<8x10xf32> -> vector<8x10xf32>
    %cst_101 = arith.constant dense<0xFF800000> : vector<8xf32>
    %231 = vector.multi_reduction <maximumf>, %230, %cst_101 [1] : vector<8x10xf32> to vector<8xf32>
    %232 = vector.shape_cast %231 : vector<8xf32> to vector<8x1xf32>
    %233 = vector.broadcast %232 : vector<8x1xf32> to vector<8x10xf32>
    %234 = arith.subf %230, %233 : vector<8x10xf32>
    %235 = math.exp %234 : vector<8x10xf32>
    %cst_102 = arith.constant dense<0.000000e+00> : vector<8xf32>
    %236 = vector.multi_reduction <add>, %235, %cst_102 [1] : vector<8x10xf32> to vector<8xf32>
    %237 = vector.shape_cast %236 : vector<8xf32> to vector<8x1xf32>
    %238 = vector.broadcast %237 : vector<8x1xf32> to vector<8x10xf32>
    %239 = arith.divf %235, %238 : vector<8x10xf32>
    %cst_103 = arith.constant dense<0.000000e+00> : vector<8x8xf32>
    %240 = tpu.matmul %239, %229, %cst_103 {dimension_numbers = #tpu.dot_dimension_numbers<[1], [0], [0], [1], [0, 0, 1, 1], [], []>} : vector<8x10xf32>, vector<10x8xf32>, vector<8x8xf32> -> vector<8x8xf32>
    %c0_104 = arith.constant 0 : index
    %c24_105 = arith.constant 24 : index
    %241 = vector.load %arg23[%c0_104, %c24_105] : memref<16x32xf32, #tpu.memory_space<vmem>>, vector<8x8xf32>
    tpu.vector_store %arg23[%c0_104, %c24_105], %240 {strides = array<i32>} : memref<16x32xf32, #tpu.memory_space<vmem>>, vector<8x8xf32>,
    %242 = vector.extract_strided_slice %169 {offsets = [8, 0], sizes = [8, 32], strides = [1, 1]} : vector<16x32xf32> to vector<8x32xf32>
    %243 = vector.extract_strided_slice %175 {offsets = [10, 0], sizes = [10, 32], strides = [1, 1]} : vector<20x32xf32> to vector<10x32xf32>
    %244 = vector.extract_strided_slice %176 {offsets = [10, 0], sizes = [10, 32], strides = [1, 1]} : vector<20x32xf32> to vector<10x32xf32>
    %245 = vector.extract_strided_slice %242 {offsets = [0, 0], sizes = [8, 8], strides = [1, 1]} : vector<8x32xf32> to vector<8x8xf32>
    %246 = vector.extract_strided_slice %243 {offsets = [0, 0], sizes = [10, 8], strides = [1, 1]} : vector<10x32xf32> to vector<10x8xf32>
    %247 = vector.extract_strided_slice %244 {offsets = [0, 0], sizes = [10, 8], strides = [1, 1]} : vector<10x32xf32> to vector<10x8xf32>
    %cst_106 = arith.constant dense<0.000000e+00> : vector<8x10xf32>
    %248 = tpu.matmul %245, %246, %cst_106 {dimension_numbers = #tpu.dot_dimension_numbers<[1], [1], [0], [0], [0, 0, 1, 0], [], []>} : vector<8x8xf32>, vector<10x8xf32>, vector<8x10xf32> -> vector<8x10xf32>
    %cst_107 = arith.constant dense<0xFF800000> : vector<8xf32>
    %249 = vector.multi_reduction <maximumf>, %248, %cst_107 [1] : vector<8x10xf32> to vector<8xf32>
    %250 = vector.shape_cast %249 : vector<8xf32> to vector<8x1xf32>
    %251 = vector.broadcast %250 : vector<8x1xf32> to vector<8x10xf32>
    %252 = arith.subf %248, %251 : vector<8x10xf32>
    %253 = math.exp %252 : vector<8x10xf32>
    %cst_108 = arith.constant dense<0.000000e+00> : vector<8xf32>
    %254 = vector.multi_reduction <add>, %253, %cst_108 [1] : vector<8x10xf32> to vector<8xf32>
    %255 = vector.shape_cast %254 : vector<8xf32> to vector<8x1xf32>
    %256 = vector.broadcast %255 : vector<8x1xf32> to vector<8x10xf32>
    %257 = arith.divf %253, %256 : vector<8x10xf32>
    %cst_109 = arith.constant dense<0.000000e+00> : vector<8x8xf32>
    %258 = tpu.matmul %257, %247, %cst_109 {dimension_numbers = #tpu.dot_dimension_numbers<[1], [0], [0], [1], [0, 0, 1, 1], [], []>} : vector<8x10xf32>, vector<10x8xf32>, vector<8x8xf32> -> vector<8x8xf32>
    %c8_110 = arith.constant 8 : index
    %c0_111 = arith.constant 0 : index
    %259 = vector.load %arg23[%c8_110, %c0_111] : memref<16x32xf32, #tpu.memory_space<vmem>>, vector<8x8xf32>
    tpu.vector_store %arg23[%c8_110, %c0_111], %258 {strides = array<i32>} : memref<16x32xf32, #tpu.memory_space<vmem>>, vector<8x8xf32>,
    %260 = vector.extract_strided_slice %242 {offsets = [0, 8], sizes = [8, 8], strides = [1, 1]} : vector<8x32xf32> to vector<8x8xf32>
    %261 = vector.extract_strided_slice %243 {offsets = [0, 8], sizes = [10, 8], strides = [1, 1]} : vector<10x32xf32> to vector<10x8xf32>
    %262 = vector.extract_strided_slice %244 {offsets = [0, 8], sizes = [10, 8], strides = [1, 1]} : vector<10x32xf32> to vector<10x8xf32>
    %cst_112 = arith.constant dense<0.000000e+00> : vector<8x10xf32>
    %263 = tpu.matmul %260, %261, %cst_112 {dimension_numbers = #tpu.dot_dimension_numbers<[1], [1], [0], [0], [0, 0, 1, 0], [], []>} : vector<8x8xf32>, vector<10x8xf32>, vector<8x10xf32> -> vector<8x10xf32>
    %cst_113 = arith.constant dense<0xFF800000> : vector<8xf32>
    %264 = vector.multi_reduction <maximumf>, %263, %cst_113 [1] : vector<8x10xf32> to vector<8xf32>
    %265 = vector.shape_cast %264 : vector<8xf32> to vector<8x1xf32>
    %266 = vector.broadcast %265 : vector<8x1xf32> to vector<8x10xf32>
    %267 = arith.subf %263, %266 : vector<8x10xf32>
    %268 = math.exp %267 : vector<8x10xf32>
    %cst_114 = arith.constant dense<0.000000e+00> : vector<8xf32>
    %269 = vector.multi_reduction <add>, %268, %cst_114 [1] : vector<8x10xf32> to vector<8xf32>
    %270 = vector.shape_cast %269 : vector<8xf32> to vector<8x1xf32>
    %271 = vector.broadcast %270 : vector<8x1xf32> to vector<8x10xf32>
    %272 = arith.divf %268, %271 : vector<8x10xf32>
    %cst_115 = arith.constant dense<0.000000e+00> : vector<8x8xf32>
    %273 = tpu.matmul %272, %262, %cst_115 {dimension_numbers = #tpu.dot_dimension_numbers<[1], [0], [0], [1], [0, 0, 1, 1], [], []>} : vector<8x10xf32>, vector<10x8xf32>, vector<8x8xf32> -> vector<8x8xf32>
    %c8_116 = arith.constant 8 : index
    %c8_117 = arith.constant 8 : index
    %274 = vector.load %arg23[%c8_116, %c8_117] : memref<16x32xf32, #tpu.memory_space<vmem>>, vector<8x8xf32>
    tpu.vector_store %arg23[%c8_116, %c8_117], %273 {strides = array<i32>} : memref<16x32xf32, #tpu.memory_space<vmem>>, vector<8x8xf32>,
    %275 = vector.extract_strided_slice %242 {offsets = [0, 16], sizes = [8, 8], strides = [1, 1]} : vector<8x32xf32> to vector<8x8xf32>
    %276 = vector.extract_strided_slice %243 {offsets = [0, 16], sizes = [10, 8], strides = [1, 1]} : vector<10x32xf32> to vector<10x8xf32>
    %277 = vector.extract_strided_slice %244 {offsets = [0, 16], sizes = [10, 8], strides = [1, 1]} : vector<10x32xf32> to vector<10x8xf32>
    %cst_118 = arith.constant dense<0.000000e+00> : vector<8x10xf32>
    %278 = tpu.matmul %275, %276, %cst_118 {dimension_numbers = #tpu.dot_dimension_numbers<[1], [1], [0], [0], [0, 0, 1, 0], [], []>} : vector<8x8xf32>, vector<10x8xf32>, vector<8x10xf32> -> vector<8x10xf32>
    %cst_119 = arith.constant dense<0xFF800000> : vector<8xf32>
    %279 = vector.multi_reduction <maximumf>, %278, %cst_119 [1] : vector<8x10xf32> to vector<8xf32>
    %280 = vector.shape_cast %279 : vector<8xf32> to vector<8x1xf32>
    %281 = vector.broadcast %280 : vector<8x1xf32> to vector<8x10xf32>
    %282 = arith.subf %278, %281 : vector<8x10xf32>
    %283 = math.exp %282 : vector<8x10xf32>
    %cst_120 = arith.constant dense<0.000000e+00> : vector<8xf32>
    %284 = vector.multi_reduction <add>, %283, %cst_120 [1] : vector<8x10xf32> to vector<8xf32>
    %285 = vector.shape_cast %284 : vector<8xf32> to vector<8x1xf32>
    %286 = vector.broadcast %285 : vector<8x1xf32> to vector<8x10xf32>
    %287 = arith.divf %283, %286 : vector<8x10xf32>
    %cst_121 = arith.constant dense<0.000000e+00> : vector<8x8xf32>
    %288 = tpu.matmul %287, %277, %cst_121 {dimension_numbers = #tpu.dot_dimension_numbers<[1], [0], [0], [1], [0, 0, 1, 1], [], []>} : vector<8x10xf32>, vector<10x8xf32>, vector<8x8xf32> -> vector<8x8xf32>
    %c8_122 = arith.constant 8 : index
    %c16_123 = arith.constant 16 : index
    %289 = vector.load %arg23[%c8_122, %c16_123] : memref<16x32xf32, #tpu.memory_space<vmem>>, vector<8x8xf32>
    tpu.vector_store %arg23[%c8_122, %c16_123], %288 {strides = array<i32>} : memref<16x32xf32, #tpu.memory_space<vmem>>, vector<8x8xf32>,
    %290 = vector.extract_strided_slice %242 {offsets = [0, 24], sizes = [8, 8], strides = [1, 1]} : vector<8x32xf32> to vector<8x8xf32>
    %291 = vector.extract_strided_slice %243 {offsets = [0, 24], sizes = [10, 8], strides = [1, 1]} : vector<10x32xf32> to vector<10x8xf32>
    %292 = vector.extract_strided_slice %244 {offsets = [0, 24], sizes = [10, 8], strides = [1, 1]} : vector<10x32xf32> to vector<10x8xf32>
    %cst_124 = arith.constant dense<0.000000e+00> : vector<8x10xf32>
    %293 = tpu.matmul %290, %291, %cst_124 {dimension_numbers = #tpu.dot_dimension_numbers<[1], [1], [0], [0], [0, 0, 1, 0], [], []>} : vector<8x8xf32>, vector<10x8xf32>, vector<8x10xf32> -> vector<8x10xf32>
    %cst_125 = arith.constant dense<0xFF800000> : vector<8xf32>
    %294 = vector.multi_reduction <maximumf>, %293, %cst_125 [1] : vector<8x10xf32> to vector<8xf32>
    %295 = vector.shape_cast %294 : vector<8xf32> to vector<8x1xf32>
    %296 = vector.broadcast %295 : vector<8x1xf32> to vector<8x10xf32>
    %297 = arith.subf %293, %296 : vector<8x10xf32>
    %298 = math.exp %297 : vector<8x10xf32>
    %cst_126 = arith.constant dense<0.000000e+00> : vector<8xf32>
    %299 = vector.multi_reduction <add>, %298, %cst_126 [1] : vector<8x10xf32> to vector<8xf32>
    %300 = vector.shape_cast %299 : vector<8xf32> to vector<8x1xf32>
    %301 = vector.broadcast %300 : vector<8x1xf32> to vector<8x10xf32>
    %302 = arith.divf %298, %301 : vector<8x10xf32>
    %cst_127 = arith.constant dense<0.000000e+00> : vector<8x8xf32>
    %303 = tpu.matmul %302, %292, %cst_127 {dimension_numbers = #tpu.dot_dimension_numbers<[1], [0], [0], [1], [0, 0, 1, 1], [], []>} : vector<8x10xf32>, vector<10x8xf32>, vector<8x8xf32> -> vector<8x8xf32>
    %c8_128 = arith.constant 8 : index
    %c24_129 = arith.constant 24 : index
    %304 = vector.load %arg23[%c8_128, %c24_129] : memref<16x32xf32, #tpu.memory_space<vmem>>, vector<8x8xf32>
    tpu.vector_store %arg23[%c8_128, %c24_129], %303 {strides = array<i32>} : memref<16x32xf32, #tpu.memory_space<vmem>>, vector<8x8xf32>,
    %c0_130 = arith.constant 0 : index
    %c0_131 = arith.constant 0 : index
    %305 = vector.load %arg23[%c0_130, %c0_131] : memref<16x32xf32, #tpu.memory_space<vmem>>, vector<16x32xf32>
    %cst_132 = arith.constant dense<0.000000e+00> : vector<16x32xf32>
    %306 = tpu.matmul %305, %177, %cst_132 {dimension_numbers = #tpu.dot_dimension_numbers<[1], [0], [0], [1], [0, 0, 1, 1], [], []>} : vector<16x32xf32>, vector<32x32xf32>, vector<16x32xf32> -> vector<16x32xf32>
    %307 = vector.broadcast %178 : vector<1x32xf32> to vector<16x32xf32>
    %308 = arith.addf %306, %307 : vector<16x32xf32>
    %c0_133 = arith.constant 0 : index
    %c0_134 = arith.constant 0 : index
    %309 = vector.load %arg14[%c0_133, %c0_134] : memref<1x32xf32, #tpu.memory_space<vmem>>, vector<1x32xf32>
    %c0_135 = arith.constant 0 : index
    %c0_136 = arith.constant 0 : index
    %310 = vector.load %arg15[%c0_135, %c0_136] : memref<1x32xf32, #tpu.memory_space<vmem>>, vector<1x32xf32>
    %cst_137 = arith.constant dense<0.000000e+00> : vector<16xf32>
    %311 = vector.multi_reduction <add>, %308, %cst_137 [1] : vector<16x32xf32> to vector<16xf32>
    %312 = vector.shape_cast %311 : vector<16xf32> to vector<16x1xf32>
    %cst_138 = arith.constant 3.200000e+01 : f32
    %313 = vector.broadcast %cst_138 : f32 to vector<16x1xf32>
    %314 = arith.divf %312, %313 : vector<16x1xf32>
    %315 = vector.broadcast %314 : vector<16x1xf32> to vector<16x32xf32>
    %316 = arith.subf %308, %315 : vector<16x32xf32>
    %317 = arith.mulf %316, %316 : vector<16x32xf32>
    %cst_139 = arith.constant dense<0.000000e+00> : vector<16xf32>
    %318 = vector.multi_reduction <add>, %317, %cst_139 [1] : vector<16x32xf32> to vector<16xf32>
    %319 = vector.shape_cast %318 : vector<16xf32> to vector<16x1xf32>
    %cst_140 = arith.constant 3.200000e+01 : f32
    %320 = vector.broadcast %cst_140 : f32 to vector<16x1xf32>
    %321 = arith.divf %319, %320 : vector<16x1xf32>
    %cst_141 = arith.constant 9.99999974E-6 : f32
    %322 = vector.broadcast %cst_141 : f32 to vector<16x1xf32>
    %323 = arith.addf %321, %322 : vector<16x1xf32>
    %324 = math.rsqrt %323 : vector<16x1xf32>
    %325 = vector.broadcast %324 : vector<16x1xf32> to vector<16x32xf32>
    %326 = arith.mulf %316, %325 : vector<16x32xf32>
    %327 = vector.broadcast %309 : vector<1x32xf32> to vector<16x32xf32>
    %328 = arith.mulf %326, %327 : vector<16x32xf32>
    %329 = vector.broadcast %310 : vector<1x32xf32> to vector<16x32xf32>
    %330 = arith.addf %328, %329 : vector<16x32xf32>
    %331 = arith.addf %164, %330 : vector<16x32xf32>
    %c0_142 = arith.constant 0 : index
    %c0_143 = arith.constant 0 : index
    %332 = vector.load %arg16[%c0_142, %c0_143] : memref<32x64xf32, #tpu.memory_space<vmem>>, vector<32x64xf32>
    %cst_144 = arith.constant dense<0.000000e+00> : vector<16x64xf32>
    %333 = tpu.matmul %331, %332, %cst_144 {dimension_numbers = #tpu.dot_dimension_numbers<[1], [0], [0], [1], [0, 0, 1, 1], [], []>} : vector<16x32xf32>, vector<32x64xf32>, vector<16x64xf32> -> vector<16x64xf32>
    %c0_145 = arith.constant 0 : index
    %c0_146 = arith.constant 0 : index
    %334 = vector.load %arg17[%c0_145, %c0_146] : memref<1x64xf32, #tpu.memory_space<vmem>>, vector<1x64xf32>
    %335 = vector.broadcast %334 : vector<1x64xf32> to vector<16x64xf32>
    %336 = arith.addf %333, %335 : vector<16x64xf32>
    %cst_147 = arith.constant 0.000000e+00 : f32
    %337 = vector.broadcast %cst_147 : f32 to vector<16x64xf32>
    %338 = arith.maximumf %336, %337 : vector<16x64xf32>
    %c0_148 = arith.constant 0 : index
    %c0_149 = arith.constant 0 : index
    %339 = vector.load %arg18[%c0_148, %c0_149] : memref<64x32xf32, #tpu.memory_space<vmem>>, vector<64x32xf32>
    %cst_150 = arith.constant dense<0.000000e+00> : vector<16x32xf32>
    %340 = tpu.matmul %338, %339, %cst_150 {dimension_numbers = #tpu.dot_dimension_numbers<[1], [0], [0], [1], [0, 0, 1, 1], [], []>} : vector<16x64xf32>, vector<64x32xf32>, vector<16x32xf32> -> vector<16x32xf32>
    %c0_151 = arith.constant 0 : index
    %c0_152 = arith.constant 0 : index
    %341 = vector.load %arg19[%c0_151, %c0_152] : memref<1x32xf32, #tpu.memory_space<vmem>>, vector<1x32xf32>
    %342 = vector.broadcast %341 : vector<1x32xf32> to vector<16x32xf32>
    %343 = arith.addf %340, %342 : vector<16x32xf32>
    %c0_153 = arith.constant 0 : index
    %c0_154 = arith.constant 0 : index
    %344 = vector.load %arg20[%c0_153, %c0_154] : memref<1x32xf32, #tpu.memory_space<vmem>>, vector<1x32xf32>
    %c0_155 = arith.constant 0 : index
    %c0_156 = arith.constant 0 : index
    %345 = vector.load %arg21[%c0_155, %c0_156] : memref<1x32xf32, #tpu.memory_space<vmem>>, vector<1x32xf32>
    %cst_157 = arith.constant dense<0.000000e+00> : vector<16xf32>
    %346 = vector.multi_reduction <add>, %343, %cst_157 [1] : vector<16x32xf32> to vector<16xf32>
    %347 = vector.shape_cast %346 : vector<16xf32> to vector<16x1xf32>
    %cst_158 = arith.constant 3.200000e+01 : f32
    %348 = vector.broadcast %cst_158 : f32 to vector<16x1xf32>
    %349 = arith.divf %347, %348 : vector<16x1xf32>
    %350 = vector.broadcast %349 : vector<16x1xf32> to vector<16x32xf32>
    %351 = arith.subf %343, %350 : vector<16x32xf32>
    %352 = arith.mulf %351, %351 : vector<16x32xf32>
    %cst_159 = arith.constant dense<0.000000e+00> : vector<16xf32>
    %353 = vector.multi_reduction <add>, %352, %cst_159 [1] : vector<16x32xf32> to vector<16xf32>
    %354 = vector.shape_cast %353 : vector<16xf32> to vector<16x1xf32>
    %cst_160 = arith.constant 3.200000e+01 : f32
    %355 = vector.broadcast %cst_160 : f32 to vector<16x1xf32>
    %356 = arith.divf %354, %355 : vector<16x1xf32>
    %cst_161 = arith.constant 9.99999974E-6 : f32
    %357 = vector.broadcast %cst_161 : f32 to vector<16x1xf32>
    %358 = arith.addf %356, %357 : vector<16x1xf32>
    %359 = math.rsqrt %358 : vector<16x1xf32>
    %360 = vector.broadcast %359 : vector<16x1xf32> to vector<16x32xf32>
    %361 = arith.mulf %351, %360 : vector<16x32xf32>
    %362 = vector.broadcast %344 : vector<1x32xf32> to vector<16x32xf32>
    %363 = arith.mulf %361, %362 : vector<16x32xf32>
    %364 = vector.broadcast %345 : vector<1x32xf32> to vector<16x32xf32>
    %365 = arith.addf %363, %364 : vector<16x32xf32>
    %366 = arith.addf %331, %365 : vector<16x32xf32>
    %c0_162 = arith.constant 0 : index
    %c0_163 = arith.constant 0 : index
    %367 = vector.load %arg22[%c0_162, %c0_163] : memref<16x32xf32, #tpu.memory_space<vmem>>, vector<16x32xf32>
    tpu.vector_store %arg22[%c0_162, %c0_163], %366 {strides = array<i32>} : memref<16x32xf32, #tpu.memory_space<vmem>>, vector<16x32xf32>,
    return
  }
}

</mosaic_0001>

<llo_original>
// kernel: decoder_forward.1
$region0: #{decoder_forward.1}
  #allocation0 [shape = 'u32[]', space=smem, size = 0x4, offset = 0x4, fixed_abs, tag = 'smem constant byte address 0x4 - core index']
  #allocation1 [shape = 'u32[144,128]{1,0:T(1,128)}', space=vmem, size = 0x12000, scoped, tag = 'internal scratch']
  #allocation2 [shape = 'f32[16,32]{1,0:T(8,128)}', space=vmem, size = 0x2000, scoped, tag = 'scratch operand']
  %s0 = inlined_call_operand.vmem [shape: f32[16,32], index: 0, kind: input, shape index: {}]
  %s1 = inlined_call_operand.vmem [shape: f32[20,32], index: 1, kind: input, shape index: {}]
  %s2 = inlined_call_operand.vmem [shape: f32[32,96], index: 2, kind: input, shape index: {}]
  %s3 = inlined_call_operand.vmem [shape: f32[1,96], index: 3, kind: input, shape index: {}]
  %s4 = inlined_call_operand.vmem [shape: f32[32,32], index: 4, kind: input, shape index: {}]
  %s5 = inlined_call_operand.vmem [shape: f32[1,32], index: 5, kind: input, shape index: {}]
  %s6 = inlined_call_operand.vmem [shape: f32[1,32], index: 6, kind: input, shape index: {}]
  %s7 = inlined_call_operand.vmem [shape: f32[1,32], index: 7, kind: input, shape index: {}]
  %s8 = inlined_call_operand.vmem [shape: f32[32,32], index: 8, kind: input, shape index: {}]
  %s9 = inlined_call_operand.vmem [shape: f32[1,32], index: 9, kind: input, shape index: {}]
  %s10 = inlined_call_operand.vmem [shape: f32[32,64], index: 10, kind: input, shape index: {}]
  %s11 = inlined_call_operand.vmem [shape: f32[1,64], index: 11, kind: input, shape index: {}]
  %s12 = inlined_call_operand.vmem [shape: f32[32,32], index: 12, kind: input, shape index: {}]
  %s13 = inlined_call_operand.vmem [shape: f32[1,32], index: 13, kind: input, shape index: {}]
  %s14 = inlined_call_operand.vmem [shape: f32[1,32], index: 14, kind: input, shape index: {}]
  %s15 = inlined_call_operand.vmem [shape: f32[1,32], index: 15, kind: input, shape index: {}]
  %s16 = inlined_call_operand.vmem [shape: f32[32,64], index: 16, kind: input, shape index: {}]
  %s17 = inlined_call_operand.vmem [shape: f32[1,64], index: 17, kind: input, shape index: {}]
  %s18 = inlined_call_operand.vmem [shape: f32[64,32], index: 18, kind: input, shape index: {}]
  %s19 = inlined_call_operand.vmem [shape: f32[1,32], index: 19, kind: input, shape index: {}]
  %s20 = inlined_call_operand.vmem [shape: f32[1,32], index: 20, kind: input, shape index: {}]
  %s21 = inlined_call_operand.vmem [shape: f32[1,32], index: 21, kind: input, shape index: {}]
  %s22 = inlined_call_operand.vmem [shape: f32[16,32], index: 22, kind: output, shape index: {}]
  %s23 = sld [smem:[#allocation0]]
  $region98: #{decoder_forward.1} parent=0
    _
  %s25 = ssub.s32 1, %s23
  %s26 = scalar_select 0, %s25, %s23
  // Predicated region
  $region2: #{decoder_forward.1} parent=0 // pred_check
    _
  $region3: #{decoder_forward.1} parent=0 // pred_check_branch
    %28 = sbr.rel (0) target = $region5
  $region4: #{decoder_forward.1} parent=0 // pred_region
    _
  $region5: #{decoder_forward.1} parent=0 // pred_fallthru
    _
  // Predicated region
  $region6: #{decoder_forward.1} parent=0 // pred_check
    _
  $region7: #{decoder_forward.1} parent=0 // pred_check_branch
    %30 = sbr.rel (0) target = $region9
  $region8: #{decoder_forward.1} parent=0 // pred_region
    _
  $region9: #{decoder_forward.1} parent=0 // pred_fallthru
    _
  // Predicated region
  $region10: #{decoder_forward.1} parent=0 // pred_check
    _
  $region11: #{decoder_forward.1} parent=0 // pred_check_branch
    %32 = sbr.rel (0) target = $region13
  $region12: #{decoder_forward.1} parent=0 // pred_region
    _
  $region13: #{decoder_forward.1} parent=0 // pred_fallthru
    _
  // Predicated region
  $region14: #{decoder_forward.1} parent=0 // pred_check
    _
  $region15: #{decoder_forward.1} parent=0 // pred_check_branch
    %34 = sbr.rel (0) target = $region17
  $region16: #{decoder_forward.1} parent=0 // pred_region
    _
  $region17: #{decoder_forward.1} parent=0 // pred_fallthru
    _
  // Predicated region
  $region18: #{decoder_forward.1} parent=0 // pred_check
    _
  $region19: #{decoder_forward.1} parent=0 // pred_check_branch
    %36 = sbr.rel (0) target = $region21
  $region20: #{decoder_forward.1} parent=0 // pred_region
    _
  $region21: #{decoder_forward.1} parent=0 // pred_fallthru
    _
  // Predicated region
  $region22: #{decoder_forward.1} parent=0 // pred_check
    _
  $region23: #{decoder_forward.1} parent=0 // pred_check_branch
    %38 = sbr.rel (0) target = $region25
  $region24: #{decoder_forward.1} parent=0 // pred_region
    _
  $region25: #{decoder_forward.1} parent=0 // pred_fallthru
    _
  // Predicated region
  $region26: #{decoder_forward.1} parent=0 // pred_check
    _
  $region27: #{decoder_forward.1} parent=0 // pred_check_branch
    %40 = sbr.rel (0) target = $region29
  $region28: #{decoder_forward.1} parent=0 // pred_region
    _
  $region29: #{decoder_forward.1} parent=0 // pred_fallthru
    _
  // Predicated region
  $region30: #{decoder_forward.1} parent=0 // pred_check
    _
  $region31: #{decoder_forward.1} parent=0 // pred_check_branch
    %42 = sbr.rel (0) target = $region33
  $region32: #{decoder_forward.1} parent=0 // pred_region
    _
  $region33: #{decoder_forward.1} parent=0 // pred_fallthru
    _
  // Predicated region
  $region34: #{decoder_forward.1} parent=0 // pred_check
    _
  $region35: #{decoder_forward.1} parent=0 // pred_check_branch
    %44 = sbr.rel (0) target = $region37
  $region36: #{decoder_forward.1} parent=0 // pred_region
    _
  $region37: #{decoder_forward.1} parent=0 // pred_fallthru
    _
  // Predicated region
  $region38: #{decoder_forward.1} parent=0 // pred_check
    _
  $region39: #{decoder_forward.1} parent=0 // pred_check_branch
    %46 = sbr.rel (0) target = $region41
  $region40: #{decoder_forward.1} parent=0 // pred_region
    _
  $region41: #{decoder_forward.1} parent=0 // pred_fallthru
    _
  // Predicated region
  $region42: #{decoder_forward.1} parent=0 // pred_check
    _
  $region43: #{decoder_forward.1} parent=0 // pred_check_branch
    %48 = sbr.rel (0) target = $region45
  $region44: #{decoder_forward.1} parent=0 // pred_region
    _
  $region45: #{decoder_forward.1} parent=0 // pred_fallthru
    _
  // Predicated region
  $region46: #{decoder_forward.1} parent=0 // pred_check
    _
  $region47: #{decoder_forward.1} parent=0 // pred_check_branch
    %50 = sbr.rel (0) target = $region49
  $region48: #{decoder_forward.1} parent=0 // pred_region
    _
  $region49: #{decoder_forward.1} parent=0 // pred_fallthru
    _
  // Predicated region
  $region50: #{decoder_forward.1} parent=0 // pred_check
    _
  $region51: #{decoder_forward.1} parent=0 // pred_check_branch
    %52 = sbr.rel (0) target = $region53
  $region52: #{decoder_forward.1} parent=0 // pred_region
    _
  $region53: #{decoder_forward.1} parent=0 // pred_fallthru
    _
  // Predicated region
  $region54: #{decoder_forward.1} parent=0 // pred_check
    _
  $region55: #{decoder_forward.1} parent=0 // pred_check_branch
    %54 = sbr.rel (0) target = $region57
  $region56: #{decoder_forward.1} parent=0 // pred_region
    _
  $region57: #{decoder_forward.1} parent=0 // pred_fallthru
    _
  // Predicated region
  $region58: #{decoder_forward.1} parent=0 // pred_check
    _
  $region59: #{decoder_forward.1} parent=0 // pred_check_branch
    %56 = sbr.rel (0) target = $region61
  $region60: #{decoder_forward.1} parent=0 // pred_region
    _
  $region61: #{decoder_forward.1} parent=0 // pred_fallthru
    _
  // Predicated region
  $region62: #{decoder_forward.1} parent=0 // pred_check
    _
  $region63: #{decoder_forward.1} parent=0 // pred_check_branch
    %58 = sbr.rel (0) target = $region65
  $region64: #{decoder_forward.1} parent=0 // pred_region
    _
  $region65: #{decoder_forward.1} parent=0 // pred_fallthru
    _
  // Predicated region
  $region66: #{decoder_forward.1} parent=0 // pred_check
    _
  $region67: #{decoder_forward.1} parent=0 // pred_check_branch
    %60 = sbr.rel (0) target = $region69
  $region68: #{decoder_forward.1} parent=0 // pred_region
    _
  $region69: #{decoder_forward.1} parent=0 // pred_fallthru
    _
  // Predicated region
  $region70: #{decoder_forward.1} parent=0 // pred_check
    _
  $region71: #{decoder_forward.1} parent=0 // pred_check_branch
    %62 = sbr.rel (0) target = $region73
  $region72: #{decoder_forward.1} parent=0 // pred_region
    _
  $region73: #{decoder_forward.1} parent=0 // pred_fallthru
    _
  // Predicated region
  $region74: #{decoder_forward.1} parent=0 // pred_check
    _
  $region75: #{decoder_forward.1} parent=0 // pred_check_branch
    %64 = sbr.rel (0) target = $region77
  $region76: #{decoder_forward.1} parent=0 // pred_region
    _
  $region77: #{decoder_forward.1} parent=0 // pred_fallthru
    _
  // Predicated region
  $region78: #{decoder_forward.1} parent=0 // pred_check
    _
  $region79: #{decoder_forward.1} parent=0 // pred_check_branch
    %66 = sbr.rel (0) target = $region81
  $region80: #{decoder_forward.1} parent=0 // pred_region
    _
  $region81: #{decoder_forward.1} parent=0 // pred_fallthru
    _
  // Predicated region
  $region82: #{decoder_forward.1} parent=0 // pred_check
    _
  $region83: #{decoder_forward.1} parent=0 // pred_check_branch
    %68 = sbr.rel (0) target = $region85
  $region84: #{decoder_forward.1} parent=0 // pred_region
    _
  $region85: #{decoder_forward.1} parent=0 // pred_fallthru
    _
  // Predicated region
  $region86: #{decoder_forward.1} parent=0 // pred_check
    _
  $region87: #{decoder_forward.1} parent=0 // pred_check_branch
    %70 = sbr.rel (0) target = $region89
  $region88: #{decoder_forward.1} parent=0 // pred_region
    _
  $region89: #{decoder_forward.1} parent=0 // pred_fallthru
    _
  %v71 = vld [vmem:[%s0] sm:$0xff]
  %v72 = vld [vmem:[%s0 + $0x8] sm:$0xff]
  %v73 = vld [vmem:[%s1] sm:$0xff]
  %v74 = vld [vmem:[%s1 + $0x8] sm:$0xff]
  %v75 = vld [vmem:[%s1 + $0x10] sm:$0xf]
  %v76 = vld [vmem:[%s2] sm:$0xff]
  %v77 = vld [vmem:[%s2 + $0x8] sm:$0xff]
  %v78 = vld [vmem:[%s2 + $0x10] sm:$0xff]
  %v79 = vld [vmem:[%s2 + $0x18] sm:$0xff]
  %v80 = vld [vmem:[%s3] sm:$0x1]
  %v82 = vlaneseq
  %v83 = vshrl.u32 %v82, 7
  %v84 = vsub.s32 0, %v83
  %v85 = vrot.slane %v80, %v84
  %vm87 = vcmask 261120
  %v89 = vsel %vm87, %v71, 0
  %v92 = vsel %vm87, %v72, 0
  %94 = vmatprep.subr.mxu0 0.0
  %95 = vmatpush1.msra.mxu0 %v76
  %96 = vmatprep.subr.mxu0 0.0
  %97 = vmatpush1.msra.mxu0 %v77
  %98 = vmatprep.subr.mxu0 0.0
  %99 = vmatpush1.msra.mxu0 %v78
  %100 = vmatprep.subr.mxu0 0.0
  %101 = vmatpush1.msra.mxu0 %v79
  %102 = vmatprep.subr.mxu0 0.0
  %103 = vmatpush1.msra.mxu0 0.0
  %104 = vmatprep.subr.mxu0 0.0
  %105 = vmatpush1.msra.mxu0 0.0
  %106 = vmatprep.subr.mxu0 0.0
  %107 = vmatpush1.msra.mxu0 0.0
  %108 = vmatprep.subr.mxu0 0.0
  %109 = vmatpush1.msra.mxu0 0.0
  %110 = vmatprep.subr.mxu0 0.0
  %111 = vmatpush1.msra.mxu0 0.0
  %112 = vmatprep.subr.mxu0 0.0
  %113 = vmatpush1.msra.mxu0 0.0
  %114 = vmatprep.subr.mxu0 0.0
  %115 = vmatpush1.msra.mxu0 0.0
  %116 = vmatprep.subr.mxu0 0.0
  %117 = vmatpush1.msra.mxu0 0.0
  %118 = vmatprep.subr.mxu0 0.0
  %119 = vmatpush1.msra.mxu0 0.0
  %120 = vmatprep.subr.mxu0 0.0
  %121 = vmatpush1.msra.mxu0 0.0
  %122 = vmatprep.subr.mxu0 0.0
  %123 = vmatpush1.msra.mxu0 0.0
  %124 = vmatprep.subr.mxu0 0.0
  %125 = vmatpush1.msra.mxu0 0.0
  %126 = vmatprep.subr.mxu0 0.0
  %127 = vmatpush1.msra.mxu0 0.0
  %128 = vmatprep.subr.mxu0 0.0
  %129 = vmatpush1.msra.mxu0 0.0
  %130 = vmatprep.subr.mxu0 0.0
  %131 = vmatpush1.msra.mxu0 0.0
  %132 = vmatprep.subr.mxu0 0.0
  %133 = vmatpush1.msra.mxu0 0.0
  %134 = vmatprep.subr.mxu0 0.0
  %135 = vmatpush1.msra.mxu0 0.0
  %136 = vmatprep.subr.mxu0 0.0
  %137 = vmatpush1.msra.mxu0 0.0
  %138 = vmatprep.subr.mxu0 0.0
  %139 = vmatpush1.msra.mxu0 0.0
  %140 = vmatprep.subr.mxu0 0.0
  %141 = vmatpush1.msra.mxu0 0.0
  %142 = vmatprep.subr.mxu0 0.0
  %143 = vmatpush1.msra.mxu0 0.0
  %144 = vmatprep.subr.mxu0 0.0
  %145 = vmatpush1.msra.mxu0 0.0
  %146 = vmatprep.subr.mxu0 0.0
  %147 = vmatpush1.msra.mxu0 0.0
  %148 = vmatprep.subr.mxu0 0.0
  %149 = vmatpush1.msra.mxu0 0.0
  %150 = vmatprep.subr.mxu0 0.0
  %151 = vmatpush1.msra.mxu0 0.0
  %152 = vmatprep.subr.mxu0 0.0
  %153 = vmatpush1.msra.mxu0 0.0
  %154 = vmatprep.subr.mxu0 0.0
  %155 = vmatpush1.msra.mxu0 0.0
  %156 = vmatprep.subr.mxu0 0.0
  %157 = vmatpush1.msra.mxu0 0.0
  %158 = vmatprep.mubr.f32.mxu0 0.0
  %159 = vmatmul.mubr.f32.gmra.mrb[0].mxu0 %v89
  %v160 = vpop.f32.mrb[0].mxu0
  %v161 = vadd.f32 %v85, %v160
  %v162 = vpop.f32.mrb[0].mxu0
  %163 = vmatprep.mubr.f32.mxu0 0.0
  %164 = vmatmul.mubr.f32.gmra.mrb[0].mxu0 %v92
  %v165 = vpop.f32.mrb[0].mxu0
  %v166 = vadd.f32 %v85, %v165
  %v167 = vpop.f32.mrb[0].mxu0
  %168 = vdwg.mxu0
  %v169 = vld [vmem:[%s4] sm:$0xff]
  %v170 = vld [vmem:[%s4 + $0x8] sm:$0xff]
  %v171 = vld [vmem:[%s4 + $0x10] sm:$0xff]
  %v172 = vld [vmem:[%s4 + $0x18] sm:$0xff]
  %v173 = vld [vmem:[%s5] sm:$0x1]
  %175 = vrot.lane.b32.xlu0 %v161, 96
  %v176 = vpop.permute.xlu0 %175
  %vm177 = vcmask 64512
  %v178 = vsel %vm177, %v161, 0
  %v180 = vsel %vm177, %v176, 0
  %182 = vmatprep.subr.mxu0 0.0
  %183 = vmatpush1.xpose.msra.mxu0 %v180
  %184 = vmatprep.subr.mxu0 0.0
  %185 = vmatpush1.xpose.msra.mxu0 0.0
  %186 = vmatprep.subr.mxu0 0.0
  %187 = vmatpush1.xpose.msra.mxu0 0.0
  %188 = vmatprep.subr.mxu0 0.0
  %189 = vmatpush1.xpose.msra.mxu0 0.0
  %190 = vmatprep.subr.mxu0 0.0
  %191 = vmatpush1.xpose.msra.mxu0 0.0
  %192 = vmatprep.subr.mxu0 0.0
  %193 = vmatpush1.xpose.msra.mxu0 0.0
  %194 = vmatprep.subr.mxu0 0.0
  %195 = vmatpush1.xpose.msra.mxu0 0.0
  %196 = vmatprep.subr.mxu0 0.0
  %197 = vmatpush1.xpose.msra.mxu0 0.0
  %198 = vmatprep.subr.mxu0 0.0
  %199 = vmatpush1.xpose.msra.mxu0 0.0
  %200 = vmatprep.subr.mxu0 0.0
  %201 = vmatpush1.xpose.msra.mxu0 0.0
  %202 = vmatprep.subr.mxu0 0.0
  %203 = vmatpush1.xpose.msra.mxu0 0.0
  %204 = vmatprep.subr.mxu0 0.0
  %205 = vmatpush1.xpose.msra.mxu0 0.0
  %206 = vmatprep.subr.mxu0 0.0
  %207 = vmatpush1.xpose.msra.mxu0 0.0
  %208 = vmatprep.subr.mxu0 0.0
  %209 = vmatpush1.xpose.msra.mxu0 0.0
  %210 = vmatprep.subr.mxu0 0.0
  %211 = vmatpush1.xpose.msra.mxu0 0.0
  %212 = vmatprep.subr.mxu0 0.0
  %213 = vmatpush1.xpose.msra.mxu0 0.0
  %214 = vmatprep.subr.mxu0 0.0
  %215 = vmatpush1.xpose.msra.mxu0 0.0
  %216 = vmatprep.subr.mxu0 0.0
  %217 = vmatpush1.xpose.msra.mxu0 0.0
  %218 = vmatprep.subr.mxu0 0.0
  %219 = vmatpush1.xpose.msra.mxu0 0.0
  %220 = vmatprep.subr.mxu0 0.0
  %221 = vmatpush1.xpose.msra.mxu0 0.0
  %222 = vmatprep.subr.mxu0 0.0
  %223 = vmatpush1.xpose.msra.mxu0 0.0
  %224 = vmatprep.subr.mxu0 0.0
  %225 = vmatpush1.xpose.msra.mxu0 0.0
  %226 = vmatprep.subr.mxu0 0.0
  %227 = vmatpush1.xpose.msra.mxu0 0.0
  %228 = vmatprep.subr.mxu0 0.0
  %229 = vmatpush1.xpose.msra.mxu0 0.0
  %230 = vmatprep.subr.mxu0 0.0
  %231 = vmatpush1.xpose.msra.mxu0 0.0
  %232 = vmatprep.subr.mxu0 0.0
  %233 = vmatpush1.xpose.msra.mxu0 0.0
  %234 = vmatprep.subr.mxu0 0.0
  %235 = vmatpush1.xpose.msra.mxu0 0.0
  %236 = vmatprep.subr.mxu0 0.0
  %237 = vmatpush1.xpose.msra.mxu0 0.0
  %238 = vmatprep.subr.mxu0 0.0
  %239 = vmatpush1.xpose.msra.mxu0 0.0
  %240 = vmatprep.subr.mxu0 0.0
  %241 = vmatpush1.xpose.msra.mxu0 0.0
  %242 = vmatprep.subr.mxu0 0.0
  %243 = vmatpush1.xpose.msra.mxu0 0.0
  %244 = vmatprep.subr.mxu0 0.0
  %245 = vmatpush1.xpose.msra.mxu0 0.0
  %246 = vmatprep.mubr.f32.mxu0 0.0
  %247 = vmatmul.mubr.f32.gmra.mrb[0].mxu0 %v178
  %v248 = vpop.f32.mrb[0].mxu0
  %v249 = vadd.f32 0.0, %v248
  %v250 = vpop.f32.mrb[0].mxu0
  %251 = vdwg.mxu0
  %v252 = vsel %vm177, %v249, -inf
  %253 = vmax.xlane.f32.xlu0 %v252
  %v254 = vpop.xlane.xlu0 %253
  %v255 = vsub.f32 %v249, %v254
  %v256 = vmul.f32 %v255, 1.442695
  %v257 = vpow.pop %v256
  %v258 = vsel %vm177, %v257, 0.0
  %259 = vadd.xlane.f32.xlu0 %v258
  %v260 = vpop.xlane.xlu0 %259
  %v261 = vrcp.pop %v260
  %v262 = vmul.f32 %v257, %v261
  %263 = vrot.lane.b32.xlu0 %v161, 64
  %v264 = vpop.permute.xlu0 %263
  %v267 = vsel %vm177, %v262, 0
  %269 = vmatprep.subr.mxu0 0.0
  %270 = vmatpush1.msra.mxu0 %v264
  %271 = vmatprep.subr.mxu0 0.0
  %272 = vmatpush1.msra.mxu0 0.0
  %273 = vmatprep.subr.mxu0 0.0
  %274 = vmatpush1.msra.mxu0 0.0
  %275 = vmatprep.subr.mxu0 0.0
  %276 = vmatpush1.msra.mxu0 0.0
  %277 = vmatprep.subr.mxu0 0.0
  %278 = vmatpush1.msra.mxu0 0.0
  %279 = vmatprep.subr.mxu0 0.0
  %280 = vmatpush1.msra.mxu0 0.0
  %281 = vmatprep.subr.mxu0 0.0
  %282 = vmatpush1.msra.mxu0 0.0
  %283 = vmatprep.subr.mxu0 0.0
  %284 = vmatpush1.msra.mxu0 0.0
  %285 = vmatprep.subr.mxu0 0.0
  %286 = vmatpush1.msra.mxu0 0.0
  %287 = vmatprep.subr.mxu0 0.0
  %288 = vmatpush1.msra.mxu0 0.0
  %289 = vmatprep.subr.mxu0 0.0
  %290 = vmatpush1.msra.mxu0 0.0
  %291 = vmatprep.subr.mxu0 0.0
  %292 = vmatpush1.msra.mxu0 0.0
  %293 = vmatprep.subr.mxu0 0.0
  %294 = vmatpush1.msra.mxu0 0.0
  %295 = vmatprep.subr.mxu0 0.0
  %296 = vmatpush1.msra.mxu0 0.0
  %297 = vmatprep.subr.mxu0 0.0
  %298 = vmatpush1.msra.mxu0 0.0
  %299 = vmatprep.subr.mxu0 0.0
  %300 = vmatpush1.msra.mxu0 0.0
  %301 = vmatprep.subr.mxu0 0.0
  %302 = vmatpush1.msra.mxu0 0.0
  %303 = vmatprep.subr.mxu0 0.0
  %304 = vmatpush1.msra.mxu0 0.0
  %305 = vmatprep.subr.mxu0 0.0
  %306 = vmatpush1.msra.mxu0 0.0
  %307 = vmatprep.subr.mxu0 0.0
  %308 = vmatpush1.msra.mxu0 0.0
  %309 = vmatprep.subr.mxu0 0.0
  %310 = vmatpush1.msra.mxu0 0.0
  %311 = vmatprep.subr.mxu0 0.0
  %312 = vmatpush1.msra.mxu0 0.0
  %313 = vmatprep.subr.mxu0 0.0
  %314 = vmatpush1.msra.mxu0 0.0
  %315 = vmatprep.subr.mxu0 0.0
  %316 = vmatpush1.msra.mxu0 0.0
  %317 = vmatprep.subr.mxu0 0.0
  %318 = vmatpush1.msra.mxu0 0.0
  %319 = vmatprep.subr.mxu0 0.0
  %320 = vmatpush1.msra.mxu0 0.0
  %321 = vmatprep.subr.mxu0 0.0
  %322 = vmatpush1.msra.mxu0 0.0
  %323 = vmatprep.subr.mxu0 0.0
  %324 = vmatpush1.msra.mxu0 0.0
  %325 = vmatprep.subr.mxu0 0.0
  %326 = vmatpush1.msra.mxu0 0.0
  %327 = vmatprep.subr.mxu0 0.0
  %328 = vmatpush1.msra.mxu0 0.0
  %329 = vmatprep.subr.mxu0 0.0
  %330 = vmatpush1.msra.mxu0 0.0
  %331 = vmatprep.subr.mxu0 0.0
  %332 = vmatpush1.msra.mxu0 0.0
  %333 = vmatprep.mubr.f32.mxu0 0.0
  %334 = vmatmul.mubr.f32.gmra.mrb[0].mxu0 %v267
  %v335 = vpop.f32.mrb[0].mxu0
  %v336 = vadd.f32 0.0, %v335
  %v337 = vpop.f32.mrb[0].mxu0
  %338 = vdwg.mxu0
  %339 = vst.msk [vmem:[#allocation2] sm:$0xff] %vm177, %v336
  %340 = vrot.lane.b32.xlu0 %v161, 120
  %v341 = vpop.permute.xlu0 %340
  %342 = vrot.lane.b32.xlu0 %v161, 88
  %v343 = vpop.permute.xlu0 %342
  %v344 = vsel %vm177, %v341, 0
  %v346 = vsel %vm177, %v343, 0
  %348 = vmatprep.subr.mxu0 0.0
  %349 = vmatpush1.xpose.msra.mxu0 %v346
  %350 = vmatprep.subr.mxu0 0.0
  %351 = vmatpush1.xpose.msra.mxu0 0.0
  %352 = vmatprep.subr.mxu0 0.0
  %353 = vmatpush1.xpose.msra.mxu0 0.0
  %354 = vmatprep.subr.mxu0 0.0
  %355 = vmatpush1.xpose.msra.mxu0 0.0
  %356 = vmatprep.subr.mxu0 0.0
  %357 = vmatpush1.xpose.msra.mxu0 0.0
  %358 = vmatprep.subr.mxu0 0.0
  %359 = vmatpush1.xpose.msra.mxu0 0.0
  %360 = vmatprep.subr.mxu0 0.0
  %361 = vmatpush1.xpose.msra.mxu0 0.0
  %362 = vmatprep.subr.mxu0 0.0
  %363 = vmatpush1.xpose.msra.mxu0 0.0
  %364 = vmatprep.subr.mxu0 0.0
  %365 = vmatpush1.xpose.msra.mxu0 0.0
  %366 = vmatprep.subr.mxu0 0.0
  %367 = vmatpush1.xpose.msra.mxu0 0.0
  %368 = vmatprep.subr.mxu0 0.0
  %369 = vmatpush1.xpose.msra.mxu0 0.0
  %370 = vmatprep.subr.mxu0 0.0
  %371 = vmatpush1.xpose.msra.mxu0 0.0
  %372 = vmatprep.subr.mxu0 0.0
  %373 = vmatpush1.xpose.msra.mxu0 0.0
  %374 = vmatprep.subr.mxu0 0.0
  %375 = vmatpush1.xpose.msra.mxu0 0.0
  %376 = vmatprep.subr.mxu0 0.0
  %377 = vmatpush1.xpose.msra.mxu0 0.0
  %378 = vmatprep.subr.mxu0 0.0
  %379 = vmatpush1.xpose.msra.mxu0 0.0
  %380 = vmatprep.subr.mxu0 0.0
  %381 = vmatpush1.xpose.msra.mxu0 0.0
  %382 = vmatprep.subr.mxu0 0.0
  %383 = vmatpush1.xpose.msra.mxu0 0.0
  %384 = vmatprep.subr.mxu0 0.0
  %385 = vmatpush1.xpose.msra.mxu0 0.0
  %386 = vmatprep.subr.mxu0 0.0
  %387 = vmatpush1.xpose.msra.mxu0 0.0
  %388 = vmatprep.subr.mxu0 0.0
  %389 = vmatpush1.xpose.msra.mxu0 0.0
  %390 = vmatprep.subr.mxu0 0.0
  %391 = vmatpush1.xpose.msra.mxu0 0.0
  %392 = vmatprep.subr.mxu0 0.0
  %393 = vmatpush1.xpose.msra.mxu0 0.0
  %394 = vmatprep.subr.mxu0 0.0
  %395 = vmatpush1.xpose.msra.mxu0 0.0
  %396 = vmatprep.subr.mxu0 0.0
  %397 = vmatpush1.xpose.msra.mxu0 0.0
  %398 = vmatprep.subr.mxu0 0.0
  %399 = vmatpush1.xpose.msra.mxu0 0.0
  %400 = vmatprep.subr.mxu0 0.0
  %401 = vmatpush1.xpose.msra.mxu0 0.0
  %402 = vmatprep.subr.mxu0 0.0
  %403 = vmatpush1.xpose.msra.mxu0 0.0
  %404 = vmatprep.subr.mxu0 0.0
  %405 = vmatpush1.xpose.msra.mxu0 0.0
  %406 = vmatprep.subr.mxu0 0.0
  %407 = vmatpush1.xpose.msra.mxu0 0.0
  %408 = vmatprep.subr.mxu0 0.0
  %409 = vmatpush1.xpose.msra.mxu0 0.0
  %410 = vmatprep.subr.mxu0 0.0
  %411 = vmatpush1.xpose.msra.mxu0 0.0
  %412 = vmatprep.mubr.f32.mxu0 0.0
  %413 = vmatmul.mubr.f32.gmra.mrb[0].mxu0 %v344
  %v414 = vpop.f32.mrb[0].mxu0
  %v415 = vadd.f32 0.0, %v414
  %v416 = vpop.f32.mrb[0].mxu0
  %417 = vdwg.mxu0
  %v418 = vsel %vm177, %v415, -inf
  %419 = vmax.xlane.f32.xlu0 %v418
  %v420 = vpop.xlane.xlu0 %419
  %v421 = vsub.f32 %v415, %v420
  %v422 = vmul.f32 %v421, 1.442695
  %v423 = vpow.pop %v422
  %v424 = vsel %vm177, %v423, 0.0
  %425 = vadd.xlane.f32.xlu0 %v424
  %v426 = vpop.xlane.xlu0 %425
  %v427 = vrcp.pop %v426
  %v428 = vmul.f32 %v423, %v427
  %429 = vrot.lane.b32.xlu0 %v161, 56
  %v430 = vpop.permute.xlu0 %429
  %v433 = vsel %vm177, %v428, 0
  %435 = vmatprep.subr.mxu0 0.0
  %436 = vmatpush1.msra.mxu0 %v430
  %437 = vmatprep.subr.mxu0 0.0
  %438 = vmatpush1.msra.mxu0 0.0
  %439 = vmatprep.subr.mxu0 0.0
  %440 = vmatpush1.msra.mxu0 0.0
  %441 = vmatprep.subr.mxu0 0.0
  %442 = vmatpush1.msra.mxu0 0.0
  %443 = vmatprep.subr.mxu0 0.0
  %444 = vmatpush1.msra.mxu0 0.0
  %445 = vmatprep.subr.mxu0 0.0
  %446 = vmatpush1.msra.mxu0 0.0
  %447 = vmatprep.subr.mxu0 0.0
  %448 = vmatpush1.msra.mxu0 0.0
  %449 = vmatprep.subr.mxu0 0.0
  %450 = vmatpush1.msra.mxu0 0.0
  %451 = vmatprep.subr.mxu0 0.0
  %452 = vmatpush1.msra.mxu0 0.0
  %453 = vmatprep.subr.mxu0 0.0
  %454 = vmatpush1.msra.mxu0 0.0
  %455 = vmatprep.subr.mxu0 0.0
  %456 = vmatpush1.msra.mxu0 0.0
  %457 = vmatprep.subr.mxu0 0.0
  %458 = vmatpush1.msra.mxu0 0.0
  %459 = vmatprep.subr.mxu0 0.0
  %460 = vmatpush1.msra.mxu0 0.0
  %461 = vmatprep.subr.mxu0 0.0
  %462 = vmatpush1.msra.mxu0 0.0
  %463 = vmatprep.subr.mxu0 0.0
  %464 = vmatpush1.msra.mxu0 0.0
  %465 = vmatprep.subr.mxu0 0.0
  %466 = vmatpush1.msra.mxu0 0.0
  %467 = vmatprep.subr.mxu0 0.0
  %468 = vmatpush1.msra.mxu0 0.0
  %469 = vmatprep.subr.mxu0 0.0
  %470 = vmatpush1.msra.mxu0 0.0
  %471 = vmatprep.subr.mxu0 0.0
  %472 = vmatpush1.msra.mxu0 0.0
  %473 = vmatprep.subr.mxu0 0.0
  %474 = vmatpush1.msra.mxu0 0.0
  %475 = vmatprep.subr.mxu0 0.0
  %476 = vmatpush1.msra.mxu0 0.0
  %477 = vmatprep.subr.mxu0 0.0
  %478 = vmatpush1.msra.mxu0 0.0
  %479 = vmatprep.subr.mxu0 0.0
  %480 = vmatpush1.msra.mxu0 0.0
  %481 = vmatprep.subr.mxu0 0.0
  %482 = vmatpush1.msra.mxu0 0.0
  %483 = vmatprep.subr.mxu0 0.0
  %484 = vmatpush1.msra.mxu0 0.0
  %485 = vmatprep.subr.mxu0 0.0
  %486 = vmatpush1.msra.mxu0 0.0
  %487 = vmatprep.subr.mxu0 0.0
  %488 = vmatpush1.msra.mxu0 0.0
  %489 = vmatprep.subr.mxu0 0.0
  %490 = vmatpush1.msra.mxu0 0.0
  %491 = vmatprep.subr.mxu0 0.0
  %492 = vmatpush1.msra.mxu0 0.0
  %493 = vmatprep.subr.mxu0 0.0
  %494 = vmatpush1.msra.mxu0 0.0
  %495 = vmatprep.subr.mxu0 0.0
  %496 = vmatpush1.msra.mxu0 0.0
  %497 = vmatprep.subr.mxu0 0.0
  %498 = vmatpush1.msra.mxu0 0.0
  %499 = vmatprep.mubr.f32.mxu0 0.0
  %500 = vmatmul.mubr.f32.gmra.mrb[0].mxu0 %v433
  %v501 = vpop.f32.mrb[0].mxu0
  %v502 = vadd.f32 0.0, %v501
  %v503 = vpop.f32.mrb[0].mxu0
  %504 = vdwg.mxu0
  %506 = vrot.lane.b32.xlu0 %v502, 8
  %v507 = vpop.permute.xlu0 %506
  %vm509 = vcmask 130112
  %510 = vst.msk [vmem:[#allocation2] sm:$0xff] %vm509, %v507
  %511 = vrot.lane.b32.xlu0 %v161, 112
  %v512 = vpop.permute.xlu0 %511
  %513 = vrot.lane.b32.xlu0 %v161, 80
  %v514 = vpop.permute.xlu0 %513
  %v515 = vsel %vm177, %v512, 0
  %v517 = vsel %vm177, %v514, 0
  %519 = vmatprep.subr.mxu0 0.0
  %520 = vmatpush1.xpose.msra.mxu0 %v517
  %521 = vmatprep.subr.mxu0 0.0
  %522 = vmatpush1.xpose.msra.mxu0 0.0
  %523 = vmatprep.subr.mxu0 0.0
  %524 = vmatpush1.xpose.msra.mxu0 0.0
  %525 = vmatprep.subr.mxu0 0.0
  %526 = vmatpush1.xpose.msra.mxu0 0.0
  %527 = vmatprep.subr.mxu0 0.0
  %528 = vmatpush1.xpose.msra.mxu0 0.0
  %529 = vmatprep.subr.mxu0 0.0
  %530 = vmatpush1.xpose.msra.mxu0 0.0
  %531 = vmatprep.subr.mxu0 0.0
  %532 = vmatpush1.xpose.msra.mxu0 0.0
  %533 = vmatprep.subr.mxu0 0.0
  %534 = vmatpush1.xpose.msra.mxu0 0.0
  %535 = vmatprep.subr.mxu0 0.0
  %536 = vmatpush1.xpose.msra.mxu0 0.0
  %537 = vmatprep.subr.mxu0 0.0
  %538 = vmatpush1.xpose.msra.mxu0 0.0
  %539 = vmatprep.subr.mxu0 0.0
  %540 = vmatpush1.xpose.msra.mxu0 0.0
  %541 = vmatprep.subr.mxu0 0.0
  %542 = vmatpush1.xpose.msra.mxu0 0.0
  %543 = vmatprep.subr.mxu0 0.0
  %544 = vmatpush1.xpose.msra.mxu0 0.0
  %545 = vmatprep.subr.mxu0 0.0
  %546 = vmatpush1.xpose.msra.mxu0 0.0
  %547 = vmatprep.subr.mxu0 0.0
  %548 = vmatpush1.xpose.msra.mxu0 0.0
  %549 = vmatprep.subr.mxu0 0.0
  %550 = vmatpush1.xpose.msra.mxu0 0.0
  %551 = vmatprep.subr.mxu0 0.0
  %552 = vmatpush1.xpose.msra.mxu0 0.0
  %553 = vmatprep.subr.mxu0 0.0
  %554 = vmatpush1.xpose.msra.mxu0 0.0
  %555 = vmatprep.subr.mxu0 0.0
  %556 = vmatpush1.xpose.msra.mxu0 0.0
  %557 = vmatprep.subr.mxu0 0.0
  %558 = vmatpush1.xpose.msra.mxu0 0.0
  %559 = vmatprep.subr.mxu0 0.0
  %560 = vmatpush1.xpose.msra.mxu0 0.0
  %561 = vmatprep.subr.mxu0 0.0
  %562 = vmatpush1.xpose.msra.mxu0 0.0
  %563 = vmatprep.subr.mxu0 0.0
  %564 = vmatpush1.xpose.msra.mxu0 0.0
  %565 = vmatprep.subr.mxu0 0.0
  %566 = vmatpush1.xpose.msra.mxu0 0.0
  %567 = vmatprep.subr.mxu0 0.0
  %568 = vmatpush1.xpose.msra.mxu0 0.0
  %569 = vmatprep.subr.mxu0 0.0
  %570 = vmatpush1.xpose.msra.mxu0 0.0
  %571 = vmatprep.subr.mxu0 0.0
  %572 = vmatpush1.xpose.msra.mxu0 0.0
  %573 = vmatprep.subr.mxu0 0.0
  %574 = vmatpush1.xpose.msra.mxu0 0.0
  %575 = vmatprep.subr.mxu0 0.0
  %576 = vmatpush1.xpose.msra.mxu0 0.0
  %577 = vmatprep.subr.mxu0 0.0
  %578 = vmatpush1.xpose.msra.mxu0 0.0
  %579 = vmatprep.subr.mxu0 0.0
  %580 = vmatpush1.xpose.msra.mxu0 0.0
  %581 = vmatprep.subr.mxu0 0.0
  %582 = vmatpush1.xpose.msra.mxu0 0.0
  %583 = vmatprep.mubr.f32.mxu0 0.0
  %584 = vmatmul.mubr.f32.gmra.mrb[0].mxu0 %v515
  %v585 = vpop.f32.mrb[0].mxu0
  %v586 = vadd.f32 0.0, %v585
  %v587 = vpop.f32.mrb[0].mxu0
  %588 = vdwg.mxu0
  %v589 = vsel %vm177, %v586, -inf
  %590 = vmax.xlane.f32.xlu0 %v589
  %v591 = vpop.xlane.xlu0 %590
  %v592 = vsub.f32 %v586, %v591
  %v593 = vmul.f32 %v592, 1.442695
  %v594 = vpow.pop %v593
  %v595 = vsel %vm177, %v594, 0.0
  %596 = vadd.xlane.f32.xlu0 %v595
  %v597 = vpop.xlane.xlu0 %596
  %v598 = vrcp.pop %v597
  %v599 = vmul.f32 %v594, %v598
  %600 = vrot.lane.b32.xlu0 %v161, 48
  %v601 = vpop.permute.xlu0 %600
  %v604 = vsel %vm177, %v599, 0
  %606 = vmatprep.subr.mxu0 0.0
  %607 = vmatpush1.msra.mxu0 %v601
  %608 = vmatprep.subr.mxu0 0.0
  %609 = vmatpush1.msra.mxu0 0.0
  %610 = vmatprep.subr.mxu0 0.0
  %611 = vmatpush1.msra.mxu0 0.0
  %612 = vmatprep.subr.mxu0 0.0
  %613 = vmatpush1.msra.mxu0 0.0
  %614 = vmatprep.subr.mxu0 0.0
  %615 = vmatpush1.msra.mxu0 0.0
  %616 = vmatprep.subr.mxu0 0.0
  %617 = vmatpush1.msra.mxu0 0.0
  %618 = vmatprep.subr.mxu0 0.0
  %619 = vmatpush1.msra.mxu0 0.0
  %620 = vmatprep.subr.mxu0 0.0
  %621 = vmatpush1.msra.mxu0 0.0
  %622 = vmatprep.subr.mxu0 0.0
  %623 = vmatpush1.msra.mxu0 0.0
  %624 = vmatprep.subr.mxu0 0.0
  %625 = vmatpush1.msra.mxu0 0.0
  %626 = vmatprep.subr.mxu0 0.0
  %627 = vmatpush1.msra.mxu0 0.0
  %628 = vmatprep.subr.mxu0 0.0
  %629 = vmatpush1.msra.mxu0 0.0
  %630 = vmatprep.subr.mxu0 0.0
  %631 = vmatpush1.msra.mxu0 0.0
  %632 = vmatprep.subr.mxu0 0.0
  %633 = vmatpush1.msra.mxu0 0.0
  %634 = vmatprep.subr.mxu0 0.0
  %635 = vmatpush1.msra.mxu0 0.0
  %636 = vmatprep.subr.mxu0 0.0
  %637 = vmatpush1.msra.mxu0 0.0
  %638 = vmatprep.subr.mxu0 0.0
  %639 = vmatpush1.msra.mxu0 0.0
  %640 = vmatprep.subr.mxu0 0.0
  %641 = vmatpush1.msra.mxu0 0.0
  %642 = vmatprep.subr.mxu0 0.0
  %643 = vmatpush1.msra.mxu0 0.0
  %644 = vmatprep.subr.mxu0 0.0
  %645 = vmatpush1.msra.mxu0 0.0
  %646 = vmatprep.subr.mxu0 0.0
  %647 = vmatpush1.msra.mxu0 0.0
  %648 = vmatprep.subr.mxu0 0.0
  %649 = vmatpush1.msra.mxu0 0.0
  %650 = vmatprep.subr.mxu0 0.0
  %651 = vmatpush1.msra.mxu0 0.0
  %652 = vmatprep.subr.mxu0 0.0
  %653 = vmatpush1.msra.mxu0 0.0
  %654 = vmatprep.subr.mxu0 0.0
  %655 = vmatpush1.msra.mxu0 0.0
  %656 = vmatprep.subr.mxu0 0.0
  %657 = vmatpush1.msra.mxu0 0.0
  %658 = vmatprep.subr.mxu0 0.0
  %659 = vmatpush1.msra.mxu0 0.0
  %660 = vmatprep.subr.mxu0 0.0
  %661 = vmatpush1.msra.mxu0 0.0
  %662 = vmatprep.subr.mxu0 0.0
  %663 = vmatpush1.msra.mxu0 0.0
  %664 = vmatprep.subr.mxu0 0.0
  %665 = vmatpush1.msra.mxu0 0.0
  %666 = vmatprep.subr.mxu0 0.0
  %667 = vmatpush1.msra.mxu0 0.0
  %668 = vmatprep.subr.mxu0 0.0
  %669 = vmatpush1.msra.mxu0 0.0
  %670 = vmatprep.mubr.f32.mxu0 0.0
  %671 = vmatmul.mubr.f32.gmra.mrb[0].mxu0 %v604
  %v672 = vpop.f32.mrb[0].mxu0
  %v673 = vadd.f32 0.0, %v672
  %v674 = vpop.f32.mrb[0].mxu0
  %675 = vdwg.mxu0
  %677 = vrot.lane.b32.xlu0 %v673, 16
  %v678 = vpop.permute.xlu0 %677
  %vm680 = vcmask 195712
  %681 = vst.msk [vmem:[#allocation2] sm:$0xff] %vm680, %v678
  %682 = vrot.lane.b32.xlu0 %v161, 104
  %v683 = vpop.permute.xlu0 %682
  %684 = vrot.lane.b32.xlu0 %v161, 72
  %v685 = vpop.permute.xlu0 %684
  %v686 = vsel %vm177, %v683, 0
  %v688 = vsel %vm177, %v685, 0
  %690 = vmatprep.subr.mxu0 0.0
  %691 = vmatpush1.xpose.msra.mxu0 %v688
  %692 = vmatprep.subr.mxu0 0.0
  %693 = vmatpush1.xpose.msra.mxu0 0.0
  %694 = vmatprep.subr.mxu0 0.0
  %695 = vmatpush1.xpose.msra.mxu0 0.0
  %696 = vmatprep.subr.mxu0 0.0
  %697 = vmatpush1.xpose.msra.mxu0 0.0
  %698 = vmatprep.subr.mxu0 0.0
  %699 = vmatpush1.xpose.msra.mxu0 0.0
  %700 = vmatprep.subr.mxu0 0.0
  %701 = vmatpush1.xpose.msra.mxu0 0.0
  %702 = vmatprep.subr.mxu0 0.0
  %703 = vmatpush1.xpose.msra.mxu0 0.0
  %704 = vmatprep.subr.mxu0 0.0
  %705 = vmatpush1.xpose.msra.mxu0 0.0
  %706 = vmatprep.subr.mxu0 0.0
  %707 = vmatpush1.xpose.msra.mxu0 0.0
  %708 = vmatprep.subr.mxu0 0.0
  %709 = vmatpush1.xpose.msra.mxu0 0.0
  %710 = vmatprep.subr.mxu0 0.0
  %711 = vmatpush1.xpose.msra.mxu0 0.0
  %712 = vmatprep.subr.mxu0 0.0
  %713 = vmatpush1.xpose.msra.mxu0 0.0
  %714 = vmatprep.subr.mxu0 0.0
  %715 = vmatpush1.xpose.msra.mxu0 0.0
  %716 = vmatprep.subr.mxu0 0.0
  %717 = vmatpush1.xpose.msra.mxu0 0.0
  %718 = vmatprep.subr.mxu0 0.0
  %719 = vmatpush1.xpose.msra.mxu0 0.0
  %720 = vmatprep.subr.mxu0 0.0
  %721 = vmatpush1.xpose.msra.mxu0 0.0
  %722 = vmatprep.subr.mxu0 0.0
  %723 = vmatpush1.xpose.msra.mxu0 0.0
  %724 = vmatprep.subr.mxu0 0.0
  %725 = vmatpush1.xpose.msra.mxu0 0.0
  %726 = vmatprep.subr.mxu0 0.0
  %727 = vmatpush1.xpose.msra.mxu0 0.0
  %728 = vmatprep.subr.mxu0 0.0
  %729 = vmatpush1.xpose.msra.mxu0 0.0
  %730 = vmatprep.subr.mxu0 0.0
  %731 = vmatpush1.xpose.msra.mxu0 0.0
  %732 = vmatprep.subr.mxu0 0.0
  %733 = vmatpush1.xpose.msra.mxu0 0.0
  %734 = vmatprep.subr.mxu0 0.0
  %735 = vmatpush1.xpose.msra.mxu0 0.0
  %736 = vmatprep.subr.mxu0 0.0
  %737 = vmatpush1.xpose.msra.mxu0 0.0
  %738 = vmatprep.subr.mxu0 0.0
  %739 = vmatpush1.xpose.msra.mxu0 0.0
  %740 = vmatprep.subr.mxu0 0.0
  %741 = vmatpush1.xpose.msra.mxu0 0.0
  %742 = vmatprep.subr.mxu0 0.0
  %743 = vmatpush1.xpose.msra.mxu0 0.0
  %744 = vmatprep.subr.mxu0 0.0
  %745 = vmatpush1.xpose.msra.mxu0 0.0
  %746 = vmatprep.subr.mxu0 0.0
  %747 = vmatpush1.xpose.msra.mxu0 0.0
  %748 = vmatprep.subr.mxu0 0.0
  %749 = vmatpush1.xpose.msra.mxu0 0.0
  %750 = vmatprep.subr.mxu0 0.0
  %751 = vmatpush1.xpose.msra.mxu0 0.0
  %752 = vmatprep.subr.mxu0 0.0
  %753 = vmatpush1.xpose.msra.mxu0 0.0
  %754 = vmatprep.mubr.f32.mxu0 0.0
  %755 = vmatmul.mubr.f32.gmra.mrb[0].mxu0 %v686
  %v756 = vpop.f32.mrb[0].mxu0
  %v757 = vadd.f32 0.0, %v756
  %v758 = vpop.f32.mrb[0].mxu0
  %759 = vdwg.mxu0
  %v760 = vsel %vm177, %v757, -inf
  %761 = vmax.xlane.f32.xlu0 %v760
  %v762 = vpop.xlane.xlu0 %761
  %v763 = vsub.f32 %v757, %v762
  %v764 = vmul.f32 %v763, 1.442695
  %v765 = vpow.pop %v764
  %v766 = vsel %vm177, %v765, 0.0
  %767 = vadd.xlane.f32.xlu0 %v766
  %v768 = vpop.xlane.xlu0 %767
  %v769 = vrcp.pop %v768
  %v770 = vmul.f32 %v765, %v769
  %771 = vrot.lane.b32.xlu0 %v161, 40
  %v772 = vpop.permute.xlu0 %771
  %v775 = vsel %vm177, %v770, 0
  %777 = vmatprep.subr.mxu0 0.0
  %778 = vmatpush1.msra.mxu0 %v772
  %779 = vmatprep.subr.mxu0 0.0
  %780 = vmatpush1.msra.mxu0 0.0
  %781 = vmatprep.subr.mxu0 0.0
  %782 = vmatpush1.msra.mxu0 0.0
  %783 = vmatprep.subr.mxu0 0.0
  %784 = vmatpush1.msra.mxu0 0.0
  %785 = vmatprep.subr.mxu0 0.0
  %786 = vmatpush1.msra.mxu0 0.0
  %787 = vmatprep.subr.mxu0 0.0
  %788 = vmatpush1.msra.mxu0 0.0
  %789 = vmatprep.subr.mxu0 0.0
  %790 = vmatpush1.msra.mxu0 0.0
  %791 = vmatprep.subr.mxu0 0.0
  %792 = vmatpush1.msra.mxu0 0.0
  %793 = vmatprep.subr.mxu0 0.0
  %794 = vmatpush1.msra.mxu0 0.0
  %795 = vmatprep.subr.mxu0 0.0
  %796 = vmatpush1.msra.mxu0 0.0
  %797 = vmatprep.subr.mxu0 0.0
  %798 = vmatpush1.msra.mxu0 0.0
  %799 = vmatprep.subr.mxu0 0.0
  %800 = vmatpush1.msra.mxu0 0.0
  %801 = vmatprep.subr.mxu0 0.0
  %802 = vmatpush1.msra.mxu0 0.0
  %803 = vmatprep.subr.mxu0 0.0
  %804 = vmatpush1.msra.mxu0 0.0
  %805 = vmatprep.subr.mxu0 0.0
  %806 = vmatpush1.msra.mxu0 0.0
  %807 = vmatprep.subr.mxu0 0.0
  %808 = vmatpush1.msra.mxu0 0.0
  %809 = vmatprep.subr.mxu0 0.0
  %810 = vmatpush1.msra.mxu0 0.0
  %811 = vmatprep.subr.mxu0 0.0
  %812 = vmatpush1.msra.mxu0 0.0
  %813 = vmatprep.subr.mxu0 0.0
  %814 = vmatpush1.msra.mxu0 0.0
  %815 = vmatprep.subr.mxu0 0.0
  %816 = vmatpush1.msra.mxu0 0.0
  %817 = vmatprep.subr.mxu0 0.0
  %818 = vmatpush1.msra.mxu0 0.0
  %819 = vmatprep.subr.mxu0 0.0
  %820 = vmatpush1.msra.mxu0 0.0
  %821 = vmatprep.subr.mxu0 0.0
  %822 = vmatpush1.msra.mxu0 0.0
  %823 = vmatprep.subr.mxu0 0.0
  %824 = vmatpush1.msra.mxu0 0.0
  %825 = vmatprep.subr.mxu0 0.0
  %826 = vmatpush1.msra.mxu0 0.0
  %827 = vmatprep.subr.mxu0 0.0
  %828 = vmatpush1.msra.mxu0 0.0
  %829 = vmatprep.subr.mxu0 0.0
  %830 = vmatpush1.msra.mxu0 0.0
  %831 = vmatprep.subr.mxu0 0.0
  %832 = vmatpush1.msra.mxu0 0.0
  %833 = vmatprep.subr.mxu0 0.0
  %834 = vmatpush1.msra.mxu0 0.0
  %835 = vmatprep.subr.mxu0 0.0
  %836 = vmatpush1.msra.mxu0 0.0
  %837 = vmatprep.subr.mxu0 0.0
  %838 = vmatpush1.msra.mxu0 0.0
  %839 = vmatprep.subr.mxu0 0.0
  %840 = vmatpush1.msra.mxu0 0.0
  %841 = vmatprep.mubr.f32.mxu0 0.0
  %842 = vmatmul.mubr.f32.gmra.mrb[0].mxu0 %v775
  %v843 = vpop.f32.mrb[0].mxu0
  %v844 = vadd.f32 0.0, %v843
  %v845 = vpop.f32.mrb[0].mxu0
  %846 = vdwg.mxu0
  %848 = vrot.lane.b32.xlu0 %v844, 24
  %v849 = vpop.permute.xlu0 %848
  %vm851 = vcmask 261312
  %852 = vst.msk [vmem:[#allocation2] sm:$0xff] %vm851, %v849
  %854 = vrot.lane.b32.xlu0 %v166, 96
  %v855 = vpop.permute.xlu0 %854
  %v856 = vsel %vm177, %v166, 0
  %v858 = vsel %vm177, %v855, 0
  %860 = vmatprep.subr.mxu0 0.0
  %861 = vmatpush1.xpose.msra.mxu0 %v858
  %862 = vmatprep.subr.mxu0 0.0
  %863 = vmatpush1.xpose.msra.mxu0 0.0
  %864 = vmatprep.subr.mxu0 0.0
  %865 = vmatpush1.xpose.msra.mxu0 0.0
  %866 = vmatprep.subr.mxu0 0.0
  %867 = vmatpush1.xpose.msra.mxu0 0.0
  %868 = vmatprep.subr.mxu0 0.0
  %869 = vmatpush1.xpose.msra.mxu0 0.0
  %870 = vmatprep.subr.mxu0 0.0
  %871 = vmatpush1.xpose.msra.mxu0 0.0
  %872 = vmatprep.subr.mxu0 0.0
  %873 = vmatpush1.xpose.msra.mxu0 0.0
  %874 = vmatprep.subr.mxu0 0.0
  %875 = vmatpush1.xpose.msra.mxu0 0.0
  %876 = vmatprep.subr.mxu0 0.0
  %877 = vmatpush1.xpose.msra.mxu0 0.0
  %878 = vmatprep.subr.mxu0 0.0
  %879 = vmatpush1.xpose.msra.mxu0 0.0
  %880 = vmatprep.subr.mxu0 0.0
  %881 = vmatpush1.xpose.msra.mxu0 0.0
  %882 = vmatprep.subr.mxu0 0.0
  %883 = vmatpush1.xpose.msra.mxu0 0.0
  %884 = vmatprep.subr.mxu0 0.0
  %885 = vmatpush1.xpose.msra.mxu0 0.0
  %886 = vmatprep.subr.mxu0 0.0
  %887 = vmatpush1.xpose.msra.mxu0 0.0
  %888 = vmatprep.subr.mxu0 0.0
  %889 = vmatpush1.xpose.msra.mxu0 0.0
  %890 = vmatprep.subr.mxu0 0.0
  %891 = vmatpush1.xpose.msra.mxu0 0.0
  %892 = vmatprep.subr.mxu0 0.0
  %893 = vmatpush1.xpose.msra.mxu0 0.0
  %894 = vmatprep.subr.mxu0 0.0
  %895 = vmatpush1.xpose.msra.mxu0 0.0
  %896 = vmatprep.subr.mxu0 0.0
  %897 = vmatpush1.xpose.msra.mxu0 0.0
  %898 = vmatprep.subr.mxu0 0.0
  %899 = vmatpush1.xpose.msra.mxu0 0.0
  %900 = vmatprep.subr.mxu0 0.0
  %901 = vmatpush1.xpose.msra.mxu0 0.0
  %902 = vmatprep.subr.mxu0 0.0
  %903 = vmatpush1.xpose.msra.mxu0 0.0
  %904 = vmatprep.subr.mxu0 0.0
  %905 = vmatpush1.xpose.msra.mxu0 0.0
  %906 = vmatprep.subr.mxu0 0.0
  %907 = vmatpush1.xpose.msra.mxu0 0.0
  %908 = vmatprep.subr.mxu0 0.0
  %909 = vmatpush1.xpose.msra.mxu0 0.0
  %910 = vmatprep.subr.mxu0 0.0
  %911 = vmatpush1.xpose.msra.mxu0 0.0
  %912 = vmatprep.subr.mxu0 0.0
  %913 = vmatpush1.xpose.msra.mxu0 0.0
  %914 = vmatprep.subr.mxu0 0.0
  %915 = vmatpush1.xpose.msra.mxu0 0.0
  %916 = vmatprep.subr.mxu0 0.0
  %917 = vmatpush1.xpose.msra.mxu0 0.0
  %918 = vmatprep.subr.mxu0 0.0
  %919 = vmatpush1.xpose.msra.mxu0 0.0
  %920 = vmatprep.subr.mxu0 0.0
  %921 = vmatpush1.xpose.msra.mxu0 0.0
  %922 = vmatprep.subr.mxu0 0.0
  %923 = vmatpush1.xpose.msra.mxu0 0.0
  %924 = vmatprep.mubr.f32.mxu0 0.0
  %925 = vmatmul.mubr.f32.gmra.mrb[0].mxu0 %v856
  %v926 = vpop.f32.mrb[0].mxu0
  %v927 = vadd.f32 0.0, %v926
  %v928 = vpop.f32.mrb[0].mxu0
  %929 = vdwg.mxu0
  %v930 = vsel %vm177, %v927, -inf
  %931 = vmax.xlane.f32.xlu0 %v930
  %v932 = vpop.xlane.xlu0 %931
  %v933 = vsub.f32 %v927, %v932
  %v934 = vmul.f32 %v933, 1.442695
  %v935 = vpow.pop %v934
  %v936 = vsel %vm177, %v935, 0.0
  %937 = vadd.xlane.f32.xlu0 %v936
  %v938 = vpop.xlane.xlu0 %937
  %v939 = vrcp.pop %v938
  %v940 = vmul.f32 %v935, %v939
  %941 = vrot.lane.b32.xlu0 %v166, 64
  %v942 = vpop.permute.xlu0 %941
  %v945 = vsel %vm177, %v940, 0
  %947 = vmatprep.subr.mxu0 0.0
  %948 = vmatpush1.msra.mxu0 %v942
  %949 = vmatprep.subr.mxu0 0.0
  %950 = vmatpush1.msra.mxu0 0.0
  %951 = vmatprep.subr.mxu0 0.0
  %952 = vmatpush1.msra.mxu0 0.0
  %953 = vmatprep.subr.mxu0 0.0
  %954 = vmatpush1.msra.mxu0 0.0
  %955 = vmatprep.subr.mxu0 0.0
  %956 = vmatpush1.msra.mxu0 0.0
  %957 = vmatprep.subr.mxu0 0.0
  %958 = vmatpush1.msra.mxu0 0.0
  %959 = vmatprep.subr.mxu0 0.0
  %960 = vmatpush1.msra.mxu0 0.0
  %961 = vmatprep.subr.mxu0 0.0
  %962 = vmatpush1.msra.mxu0 0.0
  %963 = vmatprep.subr.mxu0 0.0
  %964 = vmatpush1.msra.mxu0 0.0
  %965 = vmatprep.subr.mxu0 0.0
  %966 = vmatpush1.msra.mxu0 0.0
  %967 = vmatprep.subr.mxu0 0.0
  %968 = vmatpush1.msra.mxu0 0.0
  %969 = vmatprep.subr.mxu0 0.0
  %970 = vmatpush1.msra.mxu0 0.0
  %971 = vmatprep.subr.mxu0 0.0
  %972 = vmatpush1.msra.mxu0 0.0
  %973 = vmatprep.subr.mxu0 0.0
  %974 = vmatpush1.msra.mxu0 0.0
  %975 = vmatprep.subr.mxu0 0.0
  %976 = vmatpush1.msra.mxu0 0.0
  %977 = vmatprep.subr.mxu0 0.0
  %978 = vmatpush1.msra.mxu0 0.0
  %979 = vmatprep.subr.mxu0 0.0
  %980 = vmatpush1.msra.mxu0 0.0
  %981 = vmatprep.subr.mxu0 0.0
  %982 = vmatpush1.msra.mxu0 0.0
  %983 = vmatprep.subr.mxu0 0.0
  %984 = vmatpush1.msra.mxu0 0.0
  %985 = vmatprep.subr.mxu0 0.0
  %986 = vmatpush1.msra.mxu0 0.0
  %987 = vmatprep.subr.mxu0 0.0
  %988 = vmatpush1.msra.mxu0 0.0
  %989 = vmatprep.subr.mxu0 0.0
  %990 = vmatpush1.msra.mxu0 0.0
  %991 = vmatprep.subr.mxu0 0.0
  %992 = vmatpush1.msra.mxu0 0.0
  %993 = vmatprep.subr.mxu0 0.0
  %994 = vmatpush1.msra.mxu0 0.0
  %995 = vmatprep.subr.mxu0 0.0
  %996 = vmatpush1.msra.mxu0 0.0
  %997 = vmatprep.subr.mxu0 0.0
  %998 = vmatpush1.msra.mxu0 0.0
  %999 = vmatprep.subr.mxu0 0.0
  %1000 = vmatpush1.msra.mxu0 0.0
  %1001 = vmatprep.subr.mxu0 0.0
  %1002 = vmatpush1.msra.mxu0 0.0
  %1003 = vmatprep.subr.mxu0 0.0
  %1004 = vmatpush1.msra.mxu0 0.0
  %1005 = vmatprep.subr.mxu0 0.0
  %1006 = vmatpush1.msra.mxu0 0.0
  %1007 = vmatprep.subr.mxu0 0.0
  %1008 = vmatpush1.msra.mxu0 0.0
  %1009 = vmatprep.subr.mxu0 0.0
  %1010 = vmatpush1.msra.mxu0 0.0
  %1011 = vmatprep.mubr.f32.mxu0 0.0
  %1012 = vmatmul.mubr.f32.gmra.mrb[0].mxu0 %v945
  %v1013 = vpop.f32.mrb[0].mxu0
  %v1014 = vadd.f32 0.0, %v1013
  %v1015 = vpop.f32.mrb[0].mxu0
  %1016 = vdwg.mxu0
  %1017 = vst.msk [vmem:[#allocation2 + $0x8] sm:$0xff] %vm177, %v1014
  %1018 = vrot.lane.b32.xlu0 %v166, 120
  %v1019 = vpop.permute.xlu0 %1018
  %1020 = vrot.lane.b32.xlu0 %v166, 88
  %v1021 = vpop.permute.xlu0 %1020
  %v1022 = vsel %vm177, %v1019, 0
  %v1024 = vsel %vm177, %v1021, 0
  %1026 = vmatprep.subr.mxu0 0.0
  %1027 = vmatpush1.xpose.msra.mxu0 %v1024
  %1028 = vmatprep.subr.mxu0 0.0
  %1029 = vmatpush1.xpose.msra.mxu0 0.0
  %1030 = vmatprep.subr.mxu0 0.0
  %1031 = vmatpush1.xpose.msra.mxu0 0.0
  %1032 = vmatprep.subr.mxu0 0.0
  %1033 = vmatpush1.xpose.msra.mxu0 0.0
  %1034 = vmatprep.subr.mxu0 0.0
  %1035 = vmatpush1.xpose.msra.mxu0 0.0
  %1036 = vmatprep.subr.mxu0 0.0
  %1037 = vmatpush1.xpose.msra.mxu0 0.0
  %1038 = vmatprep.subr.mxu0 0.0
  %1039 = vmatpush1.xpose.msra.mxu0 0.0
  %1040 = vmatprep.subr.mxu0 0.0
  %1041 = vmatpush1.xpose.msra.mxu0 0.0
  %1042 = vmatprep.subr.mxu0 0.0
  %1043 = vmatpush1.xpose.msra.mxu0 0.0
  %1044 = vmatprep.subr.mxu0 0.0
  %1045 = vmatpush1.xpose.msra.mxu0 0.0
  %1046 = vmatprep.subr.mxu0 0.0
  %1047 = vmatpush1.xpose.msra.mxu0 0.0
  %1048 = vmatprep.subr.mxu0 0.0
  %1049 = vmatpush1.xpose.msra.mxu0 0.0
  %1050 = vmatprep.subr.mxu0 0.0
  %1051 = vmatpush1.xpose.msra.mxu0 0.0
  %1052 = vmatprep.subr.mxu0 0.0
  %1053 = vmatpush1.xpose.msra.mxu0 0.0
  %1054 = vmatprep.subr.mxu0 0.0
  %1055 = vmatpush1.xpose.msra.mxu0 0.0
  %1056 = vmatprep.subr.mxu0 0.0
  %1057 = vmatpush1.xpose.msra.mxu0 0.0
  %1058 = vmatprep.subr.mxu0 0.0
  %1059 = vmatpush1.xpose.msra.mxu0 0.0
  %1060 = vmatprep.subr.mxu0 0.0
  %1061 = vmatpush1.xpose.msra.mxu0 0.0
  %1062 = vmatprep.subr.mxu0 0.0
  %1063 = vmatpush1.xpose.msra.mxu0 0.0
  %1064 = vmatprep.subr.mxu0 0.0
  %1065 = vmatpush1.xpose.msra.mxu0 0.0
  %1066 = vmatprep.subr.mxu0 0.0
  %1067 = vmatpush1.xpose.msra.mxu0 0.0
  %1068 = vmatprep.subr.mxu0 0.0
  %1069 = vmatpush1.xpose.msra.mxu0 0.0
  %1070 = vmatprep.subr.mxu0 0.0
  %1071 = vmatpush1.xpose.msra.mxu0 0.0
  %1072 = vmatprep.subr.mxu0 0.0
  %1073 = vmatpush1.xpose.msra.mxu0 0.0
  %1074 = vmatprep.subr.mxu0 0.0
  %1075 = vmatpush1.xpose.msra.mxu0 0.0
  %1076 = vmatprep.subr.mxu0 0.0
  %1077 = vmatpush1.xpose.msra.mxu0 0.0
  %1078 = vmatprep.subr.mxu0 0.0
  %1079 = vmatpush1.xpose.msra.mxu0 0.0
  %1080 = vmatprep.subr.mxu0 0.0
  %1081 = vmatpush1.xpose.msra.mxu0 0.0
  %1082 = vmatprep.subr.mxu0 0.0
  %1083 = vmatpush1.xpose.msra.mxu0 0.0
  %1084 = vmatprep.subr.mxu0 0.0
  %1085 = vmatpush1.xpose.msra.mxu0 0.0
  %1086 = vmatprep.subr.mxu0 0.0
  %1087 = vmatpush1.xpose.msra.mxu0 0.0
  %1088 = vmatprep.subr.mxu0 0.0
  %1089 = vmatpush1.xpose.msra.mxu0 0.0
  %1090 = vmatprep.mubr.f32.mxu0 0.0
  %1091 = vmatmul.mubr.f32.gmra.mrb[0].mxu0 %v1022
  %v1092 = vpop.f32.mrb[0].mxu0
  %v1093 = vadd.f32 0.0, %v1092
  %v1094 = vpop.f32.mrb[0].mxu0
  %1095 = vdwg.mxu0
  %v1096 = vsel %vm177, %v1093, -inf
  %1097 = vmax.xlane.f32.xlu0 %v1096
  %v1098 = vpop.xlane.xlu0 %1097
  %v1099 = vsub.f32 %v1093, %v1098
  %v1100 = vmul.f32 %v1099, 1.442695
  %v1101 = vpow.pop %v1100
  %v1102 = vsel %vm177, %v1101, 0.0
  %1103 = vadd.xlane.f32.xlu0 %v1102
  %v1104 = vpop.xlane.xlu0 %1103
  %v1105 = vrcp.pop %v1104
  %v1106 = vmul.f32 %v1101, %v1105
  %1107 = vrot.lane.b32.xlu0 %v166, 56
  %v1108 = vpop.permute.xlu0 %1107
  %v1111 = vsel %vm177, %v1106, 0
  %1113 = vmatprep.subr.mxu0 0.0
  %1114 = vmatpush1.msra.mxu0 %v1108
  %1115 = vmatprep.subr.mxu0 0.0
  %1116 = vmatpush1.msra.mxu0 0.0
  %1117 = vmatprep.subr.mxu0 0.0
  %1118 = vmatpush1.msra.mxu0 0.0
  %1119 = vmatprep.subr.mxu0 0.0
  %1120 = vmatpush1.msra.mxu0 0.0
  %1121 = vmatprep.subr.mxu0 0.0
  %1122 = vmatpush1.msra.mxu0 0.0
  %1123 = vmatprep.subr.mxu0 0.0
  %1124 = vmatpush1.msra.mxu0 0.0
  %1125 = vmatprep.subr.mxu0 0.0
  %1126 = vmatpush1.msra.mxu0 0.0
  %1127 = vmatprep.subr.mxu0 0.0
  %1128 = vmatpush1.msra.mxu0 0.0
  %1129 = vmatprep.subr.mxu0 0.0
  %1130 = vmatpush1.msra.mxu0 0.0
  %1131 = vmatprep.subr.mxu0 0.0
  %1132 = vmatpush1.msra.mxu0 0.0
  %1133 = vmatprep.subr.mxu0 0.0
  %1134 = vmatpush1.msra.mxu0 0.0
  %1135 = vmatprep.subr.mxu0 0.0
  %1136 = vmatpush1.msra.mxu0 0.0
  %1137 = vmatprep.subr.mxu0 0.0
  %1138 = vmatpush1.msra.mxu0 0.0
  %1139 = vmatprep.subr.mxu0 0.0
  %1140 = vmatpush1.msra.mxu0 0.0
  %1141 = vmatprep.subr.mxu0 0.0
  %1142 = vmatpush1.msra.mxu0 0.0
  %1143 = vmatprep.subr.mxu0 0.0
  %1144 = vmatpush1.msra.mxu0 0.0
  %1145 = vmatprep.subr.mxu0 0.0
  %1146 = vmatpush1.msra.mxu0 0.0
  %1147 = vmatprep.subr.mxu0 0.0
  %1148 = vmatpush1.msra.mxu0 0.0
  %1149 = vmatprep.subr.mxu0 0.0
  %1150 = vmatpush1.msra.mxu0 0.0
  %1151 = vmatprep.subr.mxu0 0.0
  %1152 = vmatpush1.msra.mxu0 0.0
  %1153 = vmatprep.subr.mxu0 0.0
  %1154 = vmatpush1.msra.mxu0 0.0
  %1155 = vmatprep.subr.mxu0 0.0
  %1156 = vmatpush1.msra.mxu0 0.0
  %1157 = vmatprep.subr.mxu0 0.0
  %1158 = vmatpush1.msra.mxu0 0.0
  %1159 = vmatprep.subr.mxu0 0.0
  %1160 = vmatpush1.msra.mxu0 0.0
  %1161 = vmatprep.subr.mxu0 0.0
  %1162 = vmatpush1.msra.mxu0 0.0
  %1163 = vmatprep.subr.mxu0 0.0
  %1164 = vmatpush1.msra.mxu0 0.0
  %1165 = vmatprep.subr.mxu0 0.0
  %1166 = vmatpush1.msra.mxu0 0.0
  %1167 = vmatprep.subr.mxu0 0.0
  %1168 = vmatpush1.msra.mxu0 0.0
  %1169 = vmatprep.subr.mxu0 0.0
  %1170 = vmatpush1.msra.mxu0 0.0
  %1171 = vmatprep.subr.mxu0 0.0
  %1172 = vmatpush1.msra.mxu0 0.0
  %1173 = vmatprep.subr.mxu0 0.0
  %1174 = vmatpush1.msra.mxu0 0.0
  %1175 = vmatprep.subr.mxu0 0.0
  %1176 = vmatpush1.msra.mxu0 0.0
  %1177 = vmatprep.mubr.f32.mxu0 0.0
  %1178 = vmatmul.mubr.f32.gmra.mrb[0].mxu0 %v1111
  %v1179 = vpop.f32.mrb[0].mxu0
  %v1180 = vadd.f32 0.0, %v1179
  %v1181 = vpop.f32.mrb[0].mxu0
  %1182 = vdwg.mxu0
  %1184 = vrot.lane.b32.xlu0 %v1180, 8
  %v1185 = vpop.permute.xlu0 %1184
  %1187 = vst.msk [vmem:[#allocation2 + $0x8] sm:$0xff] %vm509, %v1185
  %1188 = vrot.lane.b32.xlu0 %v166, 112
  %v1189 = vpop.permute.xlu0 %1188
  %1190 = vrot.lane.b32.xlu0 %v166, 80
  %v1191 = vpop.permute.xlu0 %1190
  %v1192 = vsel %vm177, %v1189, 0
  %v1194 = vsel %vm177, %v1191, 0
  %1196 = vmatprep.subr.mxu0 0.0
  %1197 = vmatpush1.xpose.msra.mxu0 %v1194
  %1198 = vmatprep.subr.mxu0 0.0
  %1199 = vmatpush1.xpose.msra.mxu0 0.0
  %1200 = vmatprep.subr.mxu0 0.0
  %1201 = vmatpush1.xpose.msra.mxu0 0.0
  %1202 = vmatprep.subr.mxu0 0.0
  %1203 = vmatpush1.xpose.msra.mxu0 0.0
  %1204 = vmatprep.subr.mxu0 0.0
  %1205 = vmatpush1.xpose.msra.mxu0 0.0
  %1206 = vmatprep.subr.mxu0 0.0
  %1207 = vmatpush1.xpose.msra.mxu0 0.0
  %1208 = vmatprep.subr.mxu0 0.0
  %1209 = vmatpush1.xpose.msra.mxu0 0.0
  %1210 = vmatprep.subr.mxu0 0.0
  %1211 = vmatpush1.xpose.msra.mxu0 0.0
  %1212 = vmatprep.subr.mxu0 0.0
  %1213 = vmatpush1.xpose.msra.mxu0 0.0
  %1214 = vmatprep.subr.mxu0 0.0
  %1215 = vmatpush1.xpose.msra.mxu0 0.0
  %1216 = vmatprep.subr.mxu0 0.0
  %1217 = vmatpush1.xpose.msra.mxu0 0.0
  %1218 = vmatprep.subr.mxu0 0.0
  %1219 = vmatpush1.xpose.msra.mxu0 0.0
  %1220 = vmatprep.subr.mxu0 0.0
  %1221 = vmatpush1.xpose.msra.mxu0 0.0
  %1222 = vmatprep.subr.mxu0 0.0
  %1223 = vmatpush1.xpose.msra.mxu0 0.0
  %1224 = vmatprep.subr.mxu0 0.0
  %1225 = vmatpush1.xpose.msra.mxu0 0.0
  %1226 = vmatprep.subr.mxu0 0.0
  %1227 = vmatpush1.xpose.msra.mxu0 0.0
  %1228 = vmatprep.subr.mxu0 0.0
  %1229 = vmatpush1.xpose.msra.mxu0 0.0
  %1230 = vmatprep.subr.mxu0 0.0
  %1231 = vmatpush1.xpose.msra.mxu0 0.0
  %1232 = vmatprep.subr.mxu0 0.0
  %1233 = vmatpush1.xpose.msra.mxu0 0.0
  %1234 = vmatprep.subr.mxu0 0.0
  %1235 = vmatpush1.xpose.msra.mxu0 0.0
  %1236 = vmatprep.subr.mxu0 0.0
  %1237 = vmatpush1.xpose.msra.mxu0 0.0
  %1238 = vmatprep.subr.mxu0 0.0
  %1239 = vmatpush1.xpose.msra.mxu0 0.0
  %1240 = vmatprep.subr.mxu0 0.0
  %1241 = vmatpush1.xpose.msra.mxu0 0.0
  %1242 = vmatprep.subr.mxu0 0.0
  %1243 = vmatpush1.xpose.msra.mxu0 0.0
  %1244 = vmatprep.subr.mxu0 0.0
  %1245 = vmatpush1.xpose.msra.mxu0 0.0
  %1246 = vmatprep.subr.mxu0 0.0
  %1247 = vmatpush1.xpose.msra.mxu0 0.0
  %1248 = vmatprep.subr.mxu0 0.0
  %1249 = vmatpush1.xpose.msra.mxu0 0.0
  %1250 = vmatprep.subr.mxu0 0.0
  %1251 = vmatpush1.xpose.msra.mxu0 0.0
  %1252 = vmatprep.subr.mxu0 0.0
  %1253 = vmatpush1.xpose.msra.mxu0 0.0
  %1254 = vmatprep.subr.mxu0 0.0
  %1255 = vmatpush1.xpose.msra.mxu0 0.0
  %1256 = vmatprep.subr.mxu0 0.0
  %1257 = vmatpush1.xpose.msra.mxu0 0.0
  %1258 = vmatprep.subr.mxu0 0.0
  %1259 = vmatpush1.xpose.msra.mxu0 0.0
  %1260 = vmatprep.mubr.f32.mxu0 0.0
  %1261 = vmatmul.mubr.f32.gmra.mrb[0].mxu0 %v1192
  %v1262 = vpop.f32.mrb[0].mxu0
  %v1263 = vadd.f32 0.0, %v1262
  %v1264 = vpop.f32.mrb[0].mxu0
  %1265 = vdwg.mxu0
  %v1266 = vsel %vm177, %v1263, -inf
  %1267 = vmax.xlane.f32.xlu0 %v1266
  %v1268 = vpop.xlane.xlu0 %1267
  %v1269 = vsub.f32 %v1263, %v1268
  %v1270 = vmul.f32 %v1269, 1.442695
  %v1271 = vpow.pop %v1270
  %v1272 = vsel %vm177, %v1271, 0.0
  %1273 = vadd.xlane.f32.xlu0 %v1272
  %v1274 = vpop.xlane.xlu0 %1273
  %v1275 = vrcp.pop %v1274
  %v1276 = vmul.f32 %v1271, %v1275
  %1277 = vrot.lane.b32.xlu0 %v166, 48
  %v1278 = vpop.permute.xlu0 %1277
  %v1281 = vsel %vm177, %v1276, 0
  %1283 = vmatprep.subr.mxu0 0.0
  %1284 = vmatpush1.msra.mxu0 %v1278
  %1285 = vmatprep.subr.mxu0 0.0
  %1286 = vmatpush1.msra.mxu0 0.0
  %1287 = vmatprep.subr.mxu0 0.0
  %1288 = vmatpush1.msra.mxu0 0.0
  %1289 = vmatprep.subr.mxu0 0.0
  %1290 = vmatpush1.msra.mxu0 0.0
  %1291 = vmatprep.subr.mxu0 0.0
  %1292 = vmatpush1.msra.mxu0 0.0
  %1293 = vmatprep.subr.mxu0 0.0
  %1294 = vmatpush1.msra.mxu0 0.0
  %1295 = vmatprep.subr.mxu0 0.0
  %1296 = vmatpush1.msra.mxu0 0.0
  %1297 = vmatprep.subr.mxu0 0.0
  %1298 = vmatpush1.msra.mxu0 0.0
  %1299 = vmatprep.subr.mxu0 0.0
  %1300 = vmatpush1.msra.mxu0 0.0
  %1301 = vmatprep.subr.mxu0 0.0
  %1302 = vmatpush1.msra.mxu0 0.0
  %1303 = vmatprep.subr.mxu0 0.0
  %1304 = vmatpush1.msra.mxu0 0.0
  %1305 = vmatprep.subr.mxu0 0.0
  %1306 = vmatpush1.msra.mxu0 0.0
  %1307 = vmatprep.subr.mxu0 0.0
  %1308 = vmatpush1.msra.mxu0 0.0
  %1309 = vmatprep.subr.mxu0 0.0
  %1310 = vmatpush1.msra.mxu0 0.0
  %1311 = vmatprep.subr.mxu0 0.0
  %1312 = vmatpush1.msra.mxu0 0.0
  %1313 = vmatprep.subr.mxu0 0.0
  %1314 = vmatpush1.msra.mxu0 0.0
  %1315 = vmatprep.subr.mxu0 0.0
  %1316 = vmatpush1.msra.mxu0 0.0
  %1317 = vmatprep.subr.mxu0 0.0
  %1318 = vmatpush1.msra.mxu0 0.0
  %1319 = vmatprep.subr.mxu0 0.0
  %1320 = vmatpush1.msra.mxu0 0.0
  %1321 = vmatprep.subr.mxu0 0.0
  %1322 = vmatpush1.msra.mxu0 0.0
  %1323 = vmatprep.subr.mxu0 0.0
  %1324 = vmatpush1.msra.mxu0 0.0
  %1325 = vmatprep.subr.mxu0 0.0
  %1326 = vmatpush1.msra.mxu0 0.0
  %1327 = vmatprep.subr.mxu0 0.0
  %1328 = vmatpush1.msra.mxu0 0.0
  %1329 = vmatprep.subr.mxu0 0.0
  %1330 = vmatpush1.msra.mxu0 0.0
  %1331 = vmatprep.subr.mxu0 0.0
  %1332 = vmatpush1.msra.mxu0 0.0
  %1333 = vmatprep.subr.mxu0 0.0
  %1334 = vmatpush1.msra.mxu0 0.0
  %1335 = vmatprep.subr.mxu0 0.0
  %1336 = vmatpush1.msra.mxu0 0.0
  %1337 = vmatprep.subr.mxu0 0.0
  %1338 = vmatpush1.msra.mxu0 0.0
  %1339 = vmatprep.subr.mxu0 0.0
  %1340 = vmatpush1.msra.mxu0 0.0
  %1341 = vmatprep.subr.mxu0 0.0
  %1342 = vmatpush1.msra.mxu0 0.0
  %1343 = vmatprep.subr.mxu0 0.0
  %1344 = vmatpush1.msra.mxu0 0.0
  %1345 = vmatprep.subr.mxu0 0.0
  %1346 = vmatpush1.msra.mxu0 0.0
  %1347 = vmatprep.mubr.f32.mxu0 0.0
  %1348 = vmatmul.mubr.f32.gmra.mrb[0].mxu0 %v1281
  %v1349 = vpop.f32.mrb[0].mxu0
  %v1350 = vadd.f32 0.0, %v1349
  %v1351 = vpop.f32.mrb[0].mxu0
  %1352 = vdwg.mxu0
  %1354 = vrot.lane.b32.xlu0 %v1350, 16
  %v1355 = vpop.permute.xlu0 %1354
  %1357 = vst.msk [vmem:[#allocation2 + $0x8] sm:$0xff] %vm680, %v1355
  %1358 = vrot.lane.b32.xlu0 %v166, 104
  %v1359 = vpop.permute.xlu0 %1358
  %1360 = vrot.lane.b32.xlu0 %v166, 72
  %v1361 = vpop.permute.xlu0 %1360
  %v1362 = vsel %vm177, %v1359, 0
  %v1364 = vsel %vm177, %v1361, 0
  %1366 = vmatprep.subr.mxu0 0.0
  %1367 = vmatpush1.xpose.msra.mxu0 %v1364
  %1368 = vmatprep.subr.mxu0 0.0
  %1369 = vmatpush1.xpose.msra.mxu0 0.0
  %1370 = vmatprep.subr.mxu0 0.0
  %1371 = vmatpush1.xpose.msra.mxu0 0.0
  %1372 = vmatprep.subr.mxu0 0.0
  %1373 = vmatpush1.xpose.msra.mxu0 0.0
  %1374 = vmatprep.subr.mxu0 0.0
  %1375 = vmatpush1.xpose.msra.mxu0 0.0
  %1376 = vmatprep.subr.mxu0 0.0
  %1377 = vmatpush1.xpose.msra.mxu0 0.0
  %1378 = vmatprep.subr.mxu0 0.0
  %1379 = vmatpush1.xpose.msra.mxu0 0.0
  %1380 = vmatprep.subr.mxu0 0.0
  %1381 = vmatpush1.xpose.msra.mxu0 0.0
  %1382 = vmatprep.subr.mxu0 0.0
  %1383 = vmatpush1.xpose.msra.mxu0 0.0
  %1384 = vmatprep.subr.mxu0 0.0
  %1385 = vmatpush1.xpose.msra.mxu0 0.0
  %1386 = vmatprep.subr.mxu0 0.0
  %1387 = vmatpush1.xpose.msra.mxu0 0.0
  %1388 = vmatprep.subr.mxu0 0.0
  %1389 = vmatpush1.xpose.msra.mxu0 0.0
  %1390 = vmatprep.subr.mxu0 0.0
  %1391 = vmatpush1.xpose.msra.mxu0 0.0
  %1392 = vmatprep.subr.mxu0 0.0
  %1393 = vmatpush1.xpose.msra.mxu0 0.0
  %1394 = vmatprep.subr.mxu0 0.0
  %1395 = vmatpush1.xpose.msra.mxu0 0.0
  %1396 = vmatprep.subr.mxu0 0.0
  %1397 = vmatpush1.xpose.msra.mxu0 0.0
  %1398 = vmatprep.subr.mxu0 0.0
  %1399 = vmatpush1.xpose.msra.mxu0 0.0
  %1400 = vmatprep.subr.mxu0 0.0
  %1401 = vmatpush1.xpose.msra.mxu0 0.0
  %1402 = vmatprep.subr.mxu0 0.0
  %1403 = vmatpush1.xpose.msra.mxu0 0.0
  %1404 = vmatprep.subr.mxu0 0.0
  %1405 = vmatpush1.xpose.msra.mxu0 0.0
  %1406 = vmatprep.subr.mxu0 0.0
  %1407 = vmatpush1.xpose.msra.mxu0 0.0
  %1408 = vmatprep.subr.mxu0 0.0
  %1409 = vmatpush1.xpose.msra.mxu0 0.0
  %1410 = vmatprep.subr.mxu0 0.0
  %1411 = vmatpush1.xpose.msra.mxu0 0.0
  %1412 = vmatprep.subr.mxu0 0.0
  %1413 = vmatpush1.xpose.msra.mxu0 0.0
  %1414 = vmatprep.subr.mxu0 0.0
  %1415 = vmatpush1.xpose.msra.mxu0 0.0
  %1416 = vmatprep.subr.mxu0 0.0
  %1417 = vmatpush1.xpose.msra.mxu0 0.0
  %1418 = vmatprep.subr.mxu0 0.0
  %1419 = vmatpush1.xpose.msra.mxu0 0.0
  %1420 = vmatprep.subr.mxu0 0.0
  %1421 = vmatpush1.xpose.msra.mxu0 0.0
  %1422 = vmatprep.subr.mxu0 0.0
  %1423 = vmatpush1.xpose.msra.mxu0 0.0
  %1424 = vmatprep.subr.mxu0 0.0
  %1425 = vmatpush1.xpose.msra.mxu0 0.0
  %1426 = vmatprep.subr.mxu0 0.0
  %1427 = vmatpush1.xpose.msra.mxu0 0.0
  %1428 = vmatprep.subr.mxu0 0.0
  %1429 = vmatpush1.xpose.msra.mxu0 0.0
  %1430 = vmatprep.mubr.f32.mxu0 0.0
  %1431 = vmatmul.mubr.f32.gmra.mrb[0].mxu0 %v1362
  %v1432 = vpop.f32.mrb[0].mxu0
  %v1433 = vadd.f32 0.0, %v1432
  %v1434 = vpop.f32.mrb[0].mxu0
  %1435 = vdwg.mxu0
  %v1436 = vsel %vm177, %v1433, -inf
  %1437 = vmax.xlane.f32.xlu0 %v1436
  %v1438 = vpop.xlane.xlu0 %1437
  %v1439 = vsub.f32 %v1433, %v1438
  %v1440 = vmul.f32 %v1439, 1.442695
  %v1441 = vpow.pop %v1440
  %v1442 = vsel %vm177, %v1441, 0.0
  %1443 = vadd.xlane.f32.xlu0 %v1442
  %v1444 = vpop.xlane.xlu0 %1443
  %v1445 = vrcp.pop %v1444
  %v1446 = vmul.f32 %v1441, %v1445
  %1447 = vrot.lane.b32.xlu0 %v166, 40
  %v1448 = vpop.permute.xlu0 %1447
  %v1451 = vsel %vm177, %v1446, 0
  %1453 = vmatprep.subr.mxu0 0.0
  %1454 = vmatpush1.msra.mxu0 %v1448
  %1455 = vmatprep.subr.mxu0 0.0
  %1456 = vmatpush1.msra.mxu0 0.0
  %1457 = vmatprep.subr.mxu0 0.0
  %1458 = vmatpush1.msra.mxu0 0.0
  %1459 = vmatprep.subr.mxu0 0.0
  %1460 = vmatpush1.msra.mxu0 0.0
  %1461 = vmatprep.subr.mxu0 0.0
  %1462 = vmatpush1.msra.mxu0 0.0
  %1463 = vmatprep.subr.mxu0 0.0
  %1464 = vmatpush1.msra.mxu0 0.0
  %1465 = vmatprep.subr.mxu0 0.0
  %1466 = vmatpush1.msra.mxu0 0.0
  %1467 = vmatprep.subr.mxu0 0.0
  %1468 = vmatpush1.msra.mxu0 0.0
  %1469 = vmatprep.subr.mxu0 0.0
  %1470 = vmatpush1.msra.mxu0 0.0
  %1471 = vmatprep.subr.mxu0 0.0
  %1472 = vmatpush1.msra.mxu0 0.0
  %1473 = vmatprep.subr.mxu0 0.0
  %1474 = vmatpush1.msra.mxu0 0.0
  %1475 = vmatprep.subr.mxu0 0.0
  %1476 = vmatpush1.msra.mxu0 0.0
  %1477 = vmatprep.subr.mxu0 0.0
  %1478 = vmatpush1.msra.mxu0 0.0
  %1479 = vmatprep.subr.mxu0 0.0
  %1480 = vmatpush1.msra.mxu0 0.0
  %1481 = vmatprep.subr.mxu0 0.0
  %1482 = vmatpush1.msra.mxu0 0.0
  %1483 = vmatprep.subr.mxu0 0.0
  %1484 = vmatpush1.msra.mxu0 0.0
  %1485 = vmatprep.subr.mxu0 0.0
  %1486 = vmatpush1.msra.mxu0 0.0
  %1487 = vmatprep.subr.mxu0 0.0
  %1488 = vmatpush1.msra.mxu0 0.0
  %1489 = vmatprep.subr.mxu0 0.0
  %1490 = vmatpush1.msra.mxu0 0.0
  %1491 = vmatprep.subr.mxu0 0.0
  %1492 = vmatpush1.msra.mxu0 0.0
  %1493 = vmatprep.subr.mxu0 0.0
  %1494 = vmatpush1.msra.mxu0 0.0
  %1495 = vmatprep.subr.mxu0 0.0
  %1496 = vmatpush1.msra.mxu0 0.0
  %1497 = vmatprep.subr.mxu0 0.0
  %1498 = vmatpush1.msra.mxu0 0.0
  %1499 = vmatprep.subr.mxu0 0.0
  %1500 = vmatpush1.msra.mxu0 0.0
  %1501 = vmatprep.subr.mxu0 0.0
  %1502 = vmatpush1.msra.mxu0 0.0
  %1503 = vmatprep.subr.mxu0 0.0
  %1504 = vmatpush1.msra.mxu0 0.0
  %1505 = vmatprep.subr.mxu0 0.0
  %1506 = vmatpush1.msra.mxu0 0.0
  %1507 = vmatprep.subr.mxu0 0.0
  %1508 = vmatpush1.msra.mxu0 0.0
  %1509 = vmatprep.subr.mxu0 0.0
  %1510 = vmatpush1.msra.mxu0 0.0
  %1511 = vmatprep.subr.mxu0 0.0
  %1512 = vmatpush1.msra.mxu0 0.0
  %1513 = vmatprep.subr.mxu0 0.0
  %1514 = vmatpush1.msra.mxu0 0.0
  %1515 = vmatprep.subr.mxu0 0.0
  %1516 = vmatpush1.msra.mxu0 0.0
  %1517 = vmatprep.mubr.f32.mxu0 0.0
  %1518 = vmatmul.mubr.f32.gmra.mrb[0].mxu0 %v1451
  %v1519 = vpop.f32.mrb[0].mxu0
  %v1520 = vadd.f32 0.0, %v1519
  %v1521 = vpop.f32.mrb[0].mxu0
  %1522 = vdwg.mxu0
  %1524 = vrot.lane.b32.xlu0 %v1520, 24
  %v1525 = vpop.permute.xlu0 %1524
  %1527 = vst.msk [vmem:[#allocation2 + $0x8] sm:$0xff] %vm851, %v1525
  %v1528 = vld [vmem:[#allocation2] sm:$0xff]
  %v1529 = vld [vmem:[#allocation2 + $0x8] sm:$0xff]
  %v1531 = vlaneseq
  %v1532 = vshrl.u32 %v1531, 7
  %v1533 = vsub.s32 0, %v1532
  %v1534 = vrot.slane %v173, %v1533
  %v1537 = vsel %vm87, %v1528, 0
  %v1540 = vsel %vm87, %v1529, 0
  %1542 = vmatprep.subr.mxu0 0.0
  %1543 = vmatpush1.msra.mxu0 %v169
  %1544 = vmatprep.subr.mxu0 0.0
  %1545 = vmatpush1.msra.mxu0 %v170
  %1546 = vmatprep.subr.mxu0 0.0
  %1547 = vmatpush1.msra.mxu0 %v171
  %1548 = vmatprep.subr.mxu0 0.0
  %1549 = vmatpush1.msra.mxu0 %v172
  %1550 = vmatprep.subr.mxu0 0.0
  %1551 = vmatpush1.msra.mxu0 0.0
  %1552 = vmatprep.subr.mxu0 0.0
  %1553 = vmatpush1.msra.mxu0 0.0
  %1554 = vmatprep.subr.mxu0 0.0
  %1555 = vmatpush1.msra.mxu0 0.0
  %1556 = vmatprep.subr.mxu0 0.0
  %1557 = vmatpush1.msra.mxu0 0.0
  %1558 = vmatprep.subr.mxu0 0.0
  %1559 = vmatpush1.msra.mxu0 0.0
  %1560 = vmatprep.subr.mxu0 0.0
  %1561 = vmatpush1.msra.mxu0 0.0
  %1562 = vmatprep.subr.mxu0 0.0
  %1563 = vmatpush1.msra.mxu0 0.0
  %1564 = vmatprep.subr.mxu0 0.0
  %1565 = vmatpush1.msra.mxu0 0.0
  %1566 = vmatprep.subr.mxu0 0.0
  %1567 = vmatpush1.msra.mxu0 0.0
  %1568 = vmatprep.subr.mxu0 0.0
  %1569 = vmatpush1.msra.mxu0 0.0
  %1570 = vmatprep.subr.mxu0 0.0
  %1571 = vmatpush1.msra.mxu0 0.0
  %1572 = vmatprep.subr.mxu0 0.0
  %1573 = vmatpush1.msra.mxu0 0.0
  %1574 = vmatprep.subr.mxu0 0.0
  %1575 = vmatpush1.msra.mxu0 0.0
  %1576 = vmatprep.subr.mxu0 0.0
  %1577 = vmatpush1.msra.mxu0 0.0
  %1578 = vmatprep.subr.mxu0 0.0
  %1579 = vmatpush1.msra.mxu0 0.0
  %1580 = vmatprep.subr.mxu0 0.0
  %1581 = vmatpush1.msra.mxu0 0.0
  %1582 = vmatprep.subr.mxu0 0.0
  %1583 = vmatpush1.msra.mxu0 0.0
  %1584 = vmatprep.subr.mxu0 0.0
  %1585 = vmatpush1.msra.mxu0 0.0
  %1586 = vmatprep.subr.mxu0 0.0
  %1587 = vmatpush1.msra.mxu0 0.0
  %1588 = vmatprep.subr.mxu0 0.0
  %1589 = vmatpush1.msra.mxu0 0.0
  %1590 = vmatprep.subr.mxu0 0.0
  %1591 = vmatpush1.msra.mxu0 0.0
  %1592 = vmatprep.subr.mxu0 0.0
  %1593 = vmatpush1.msra.mxu0 0.0
  %1594 = vmatprep.subr.mxu0 0.0
  %1595 = vmatpush1.msra.mxu0 0.0
  %1596 = vmatprep.subr.mxu0 0.0
  %1597 = vmatpush1.msra.mxu0 0.0
  %1598 = vmatprep.subr.mxu0 0.0
  %1599 = vmatpush1.msra.mxu0 0.0
  %1600 = vmatprep.subr.mxu0 0.0
  %1601 = vmatpush1.msra.mxu0 0.0
  %1602 = vmatprep.subr.mxu0 0.0
  %1603 = vmatpush1.msra.mxu0 0.0
  %1604 = vmatprep.subr.mxu0 0.0
  %1605 = vmatpush1.msra.mxu0 0.0
  %1606 = vmatprep.mubr.f32.mxu0 0.0
  %1607 = vmatmul.mubr.f32.gmra.mrb[0].mxu0 %v1537
  %v1608 = vpop.f32.mrb[0].mxu0
  %v1609 = vadd.f32 %v1534, %v1608
  %v1610 = vpop.f32.mrb[0].mxu0
  %1611 = vmatprep.mubr.f32.mxu0 0.0
  %1612 = vmatmul.mubr.f32.gmra.mrb[0].mxu0 %v1540
  %v1613 = vpop.f32.mrb[0].mxu0
  %v1614 = vadd.f32 %v1534, %v1613
  %v1615 = vpop.f32.mrb[0].mxu0
  %1616 = vdwg.mxu0
  %v1617 = vld [vmem:[%s6] sm:$0x1]
  %v1618 = vld [vmem:[%s7] sm:$0x1]
  %v1619 = vsel %vm87, %v1609, 0.0
  %1620 = vadd.xlane.f32.xlu0 %v1619
  %v1621 = vpop.xlane.xlu0 %1620
  %v1622 = vsel %vm87, %v1614, 0.0
  %1623 = vadd.xlane.f32.xlu0 %v1622
  %v1624 = vpop.xlane.xlu0 %1623
  %v1625 = vrcp.pop 32.0
  %v1626 = vmul.f32 %v1621, %v1625
  %v1627 = vmul.f32 %v1624, %v1625
  %v1628 = vsub.f32 %v1609, %v1626
  %v1629 = vsub.f32 %v1614, %v1627
  %v1630 = vmul.f32 %v1628, %v1628
  %v1631 = vmul.f32 %v1629, %v1629
  %v1632 = vsel %vm87, %v1630, 0.0
  %1633 = vadd.xlane.f32.xlu0 %v1632
  %v1634 = vpop.xlane.xlu0 %1633
  %v1635 = vsel %vm87, %v1631, 0.0
  %1636 = vadd.xlane.f32.xlu0 %v1635
  %v1637 = vpop.xlane.xlu0 %1636
  %v1638 = vmul.f32 %v1634, %v1625
  %v1639 = vmul.f32 %v1637, %v1625
  %v1640 = vadd.f32 %v1638, 1e-05
  %v1641 = vadd.f32 %v1639, 1e-05
  %v1642 = vrsqrt.pop %v1640
  %v1643 = vrsqrt.pop %v1641
  %v1644 = vmul.f32 %v1628, %v1642
  %v1645 = vmul.f32 %v1629, %v1643
  %v1647 = vlaneseq
  %v1648 = vshrl.u32 %v1647, 7
  %v1649 = vsub.s32 0, %v1648
  %v1650 = vrot.slane %v1617, %v1649
  %v1652 = vmul.f32 %v1644, %v1650
  %v1653 = vmul.f32 %v1645, %v1650
  %v1655 = vlaneseq
  %v1656 = vshrl.u32 %v1655, 7
  %v1657 = vsub.s32 0, %v1656
  %v1658 = vrot.slane %v1618, %v1657
  %v1660 = vadd.f32 %v1652, %v1658
  %v1661 = vadd.f32 %v1653, %v1658
  %v1662 = vadd.f32 %v71, %v1660
  %v1663 = vadd.f32 %v72, %v1661
  %v1664 = vld [vmem:[%s8] sm:$0xff]
  %v1665 = vld [vmem:[%s8 + $0x8] sm:$0xff]
  %v1666 = vld [vmem:[%s8 + $0x10] sm:$0xff]
  %v1667 = vld [vmem:[%s8 + $0x18] sm:$0xff]
  %v1668 = vld [vmem:[%s9] sm:$0x1]
  %v1670 = vlaneseq
  %v1671 = vshrl.u32 %v1670, 7
  %v1672 = vsub.s32 0, %v1671
  %v1673 = vrot.slane %v1668, %v1672
  %v1676 = vsel %vm87, %v1662, 0
  %v1679 = vsel %vm87, %v1663, 0
  %1681 = vmatprep.subr.mxu0 0.0
  %1682 = vmatpush1.msra.mxu0 %v1664
  %1683 = vmatprep.subr.mxu0 0.0
  %1684 = vmatpush1.msra.mxu0 %v1665
  %1685 = vmatprep.subr.mxu0 0.0
  %1686 = vmatpush1.msra.mxu0 %v1666
  %1687 = vmatprep.subr.mxu0 0.0
  %1688 = vmatpush1.msra.mxu0 %v1667
  %1689 = vmatprep.subr.mxu0 0.0
  %1690 = vmatpush1.msra.mxu0 0.0
  %1691 = vmatprep.subr.mxu0 0.0
  %1692 = vmatpush1.msra.mxu0 0.0
  %1693 = vmatprep.subr.mxu0 0.0
  %1694 = vmatpush1.msra.mxu0 0.0
  %1695 = vmatprep.subr.mxu0 0.0
  %1696 = vmatpush1.msra.mxu0 0.0
  %1697 = vmatprep.subr.mxu0 0.0
  %1698 = vmatpush1.msra.mxu0 0.0
  %1699 = vmatprep.subr.mxu0 0.0
  %1700 = vmatpush1.msra.mxu0 0.0
  %1701 = vmatprep.subr.mxu0 0.0
  %1702 = vmatpush1.msra.mxu0 0.0
  %1703 = vmatprep.subr.mxu0 0.0
  %1704 = vmatpush1.msra.mxu0 0.0
  %1705 = vmatprep.subr.mxu0 0.0
  %1706 = vmatpush1.msra.mxu0 0.0
  %1707 = vmatprep.subr.mxu0 0.0
  %1708 = vmatpush1.msra.mxu0 0.0
  %1709 = vmatprep.subr.mxu0 0.0
  %1710 = vmatpush1.msra.mxu0 0.0
  %1711 = vmatprep.subr.mxu0 0.0
  %1712 = vmatpush1.msra.mxu0 0.0
  %1713 = vmatprep.subr.mxu0 0.0
  %1714 = vmatpush1.msra.mxu0 0.0
  %1715 = vmatprep.subr.mxu0 0.0
  %1716 = vmatpush1.msra.mxu0 0.0
  %1717 = vmatprep.subr.mxu0 0.0
  %1718 = vmatpush1.msra.mxu0 0.0
  %1719 = vmatprep.subr.mxu0 0.0
  %1720 = vmatpush1.msra.mxu0 0.0
  %1721 = vmatprep.subr.mxu0 0.0
  %1722 = vmatpush1.msra.mxu0 0.0
  %1723 = vmatprep.subr.mxu0 0.0
  %1724 = vmatpush1.msra.mxu0 0.0
  %1725 = vmatprep.subr.mxu0 0.0
  %1726 = vmatpush1.msra.mxu0 0.0
  %1727 = vmatprep.subr.mxu0 0.0
  %1728 = vmatpush1.msra.mxu0 0.0
  %1729 = vmatprep.subr.mxu0 0.0
  %1730 = vmatpush1.msra.mxu0 0.0
  %1731 = vmatprep.subr.mxu0 0.0
  %1732 = vmatpush1.msra.mxu0 0.0
  %1733 = vmatprep.subr.mxu0 0.0
  %1734 = vmatpush1.msra.mxu0 0.0
  %1735 = vmatprep.subr.mxu0 0.0
  %1736 = vmatpush1.msra.mxu0 0.0
  %1737 = vmatprep.subr.mxu0 0.0
  %1738 = vmatpush1.msra.mxu0 0.0
  %1739 = vmatprep.subr.mxu0 0.0
  %1740 = vmatpush1.msra.mxu0 0.0
  %1741 = vmatprep.subr.mxu0 0.0
  %1742 = vmatpush1.msra.mxu0 0.0
  %1743 = vmatprep.subr.mxu0 0.0
  %1744 = vmatpush1.msra.mxu0 0.0
  %1745 = vmatprep.mubr.f32.mxu0 0.0
  %1746 = vmatmul.mubr.f32.gmra.mrb[0].mxu0 %v1676
  %v1747 = vpop.f32.mrb[0].mxu0
  %v1748 = vadd.f32 %v1673, %v1747
  %v1749 = vpop.f32.mrb[0].mxu0
  %1750 = vmatprep.mubr.f32.mxu0 0.0
  %1751 = vmatmul.mubr.f32.gmra.mrb[0].mxu0 %v1679
  %v1752 = vpop.f32.mrb[0].mxu0
  %v1753 = vadd.f32 %v1673, %v1752
  %v1754 = vpop.f32.mrb[0].mxu0
  %1755 = vdwg.mxu0
  %v1756 = vld [vmem:[%s10] sm:$0xff]
  %v1757 = vld [vmem:[%s10 + $0x8] sm:$0xff]
  %v1758 = vld [vmem:[%s10 + $0x10] sm:$0xff]
  %v1759 = vld [vmem:[%s10 + $0x18] sm:$0xff]
  %v1760 = vld [vmem:[%s11] sm:$0x1]
  %v1762 = vlaneseq
  %v1763 = vshrl.u32 %v1762, 7
  %v1764 = vsub.s32 0, %v1763
  %v1765 = vrot.slane %v1760, %v1764
  %v1768 = vsel %vm87, %v73, 0
  %v1771 = vsel %vm87, %v74, 0
  %v1774 = vsel %vm87, %v75, 0
  %1776 = vmatprep.subr.mxu0 0.0
  %1777 = vmatpush1.msra.mxu0 %v1756
  %1778 = vmatprep.subr.mxu0 0.0
  %1779 = vmatpush1.msra.mxu0 %v1757
  %1780 = vmatprep.subr.mxu0 0.0
  %1781 = vmatpush1.msra.mxu0 %v1758
  %1782 = vmatprep.subr.mxu0 0.0
  %1783 = vmatpush1.msra.mxu0 %v1759
  %1784 = vmatprep.subr.mxu0 0.0
  %1785 = vmatpush1.msra.mxu0 0.0
  %1786 = vmatprep.subr.mxu0 0.0
  %1787 = vmatpush1.msra.mxu0 0.0
  %1788 = vmatprep.subr.mxu0 0.0
  %1789 = vmatpush1.msra.mxu0 0.0
  %1790 = vmatprep.subr.mxu0 0.0
  %1791 = vmatpush1.msra.mxu0 0.0
  %1792 = vmatprep.subr.mxu0 0.0
  %1793 = vmatpush1.msra.mxu0 0.0
  %1794 = vmatprep.subr.mxu0 0.0
  %1795 = vmatpush1.msra.mxu0 0.0
  %1796 = vmatprep.subr.mxu0 0.0
  %1797 = vmatpush1.msra.mxu0 0.0
  %1798 = vmatprep.subr.mxu0 0.0
  %1799 = vmatpush1.msra.mxu0 0.0
  %1800 = vmatprep.subr.mxu0 0.0
  %1801 = vmatpush1.msra.mxu0 0.0
  %1802 = vmatprep.subr.mxu0 0.0
  %1803 = vmatpush1.msra.mxu0 0.0
  %1804 = vmatprep.subr.mxu0 0.0
  %1805 = vmatpush1.msra.mxu0 0.0
  %1806 = vmatprep.subr.mxu0 0.0
  %1807 = vmatpush1.msra.mxu0 0.0
  %1808 = vmatprep.subr.mxu0 0.0
  %1809 = vmatpush1.msra.mxu0 0.0
  %1810 = vmatprep.subr.mxu0 0.0
  %1811 = vmatpush1.msra.mxu0 0.0
  %1812 = vmatprep.subr.mxu0 0.0
  %1813 = vmatpush1.msra.mxu0 0.0
  %1814 = vmatprep.subr.mxu0 0.0
  %1815 = vmatpush1.msra.mxu0 0.0
  %1816 = vmatprep.subr.mxu0 0.0
  %1817 = vmatpush1.msra.mxu0 0.0
  %1818 = vmatprep.subr.mxu0 0.0
  %1819 = vmatpush1.msra.mxu0 0.0
  %1820 = vmatprep.subr.mxu0 0.0
  %1821 = vmatpush1.msra.mxu0 0.0
  %1822 = vmatprep.subr.mxu0 0.0
  %1823 = vmatpush1.msra.mxu0 0.0
  %1824 = vmatprep.subr.mxu0 0.0
  %1825 = vmatpush1.msra.mxu0 0.0
  %1826 = vmatprep.subr.mxu0 0.0
  %1827 = vmatpush1.msra.mxu0 0.0
  %1828 = vmatprep.subr.mxu0 0.0
  %1829 = vmatpush1.msra.mxu0 0.0
  %1830 = vmatprep.subr.mxu0 0.0
  %1831 = vmatpush1.msra.mxu0 0.0
  %1832 = vmatprep.subr.mxu0 0.0
  %1833 = vmatpush1.msra.mxu0 0.0
  %1834 = vmatprep.subr.mxu0 0.0
  %1835 = vmatpush1.msra.mxu0 0.0
  %1836 = vmatprep.subr.mxu0 0.0
  %1837 = vmatpush1.msra.mxu0 0.0
  %1838 = vmatprep.subr.mxu0 0.0
  %1839 = vmatpush1.msra.mxu0 0.0
  %1840 = vmatprep.mubr.f32.mxu0 0.0
  %1841 = vmatmul.mubr.f32.gmra.mrb[0].mxu0 %v1768
  %v1842 = vpop.f32.mrb[0].mxu0
  %v1843 = vadd.f32 %v1765, %v1842
  %v1844 = vpop.f32.mrb[0].mxu0
  %1845 = vmatprep.mubr.f32.mxu0 0.0
  %1846 = vmatmul.mubr.f32.gmra.mrb[0].mxu0 %v1771
  %v1847 = vpop.f32.mrb[0].mxu0
  %v1848 = vadd.f32 %v1765, %v1847
  %v1849 = vpop.f32.mrb[0].mxu0
  %1850 = vmatprep.mubr.f32.mxu0 0.0
  %1851 = vmatmul.mubr.f32.gmra.mrb[0].mxu0 %v1774
  %v1852 = vpop.f32.mrb[0].mxu0
  %v1853 = vadd.f32 %v1765, %v1852
  %v1854 = vpop.f32.mrb[0].mxu0
  %1855 = vdwg.mxu0
  %v1856 = vld [vmem:[%s12] sm:$0xff]
  %v1857 = vld [vmem:[%s12 + $0x8] sm:$0xff]
  %v1858 = vld [vmem:[%s12 + $0x10] sm:$0xff]
  %v1859 = vld [vmem:[%s12 + $0x18] sm:$0xff]
  %v1860 = vld [vmem:[%s13] sm:$0x1]
  %v1862 = vsel %vm177, %v1748, 0
  %v1865 = vsel %vm177, %v1843, 0
  %v1868 = vsel %vm177, %v1848, 0
  %1870 = vmatprep.subr.mxu0 0.0
  %1871 = vmatpush1.xpose.msra.mxu0 %v1865
  %1872 = vmatprep.subr.mxu0 0.0
  %1873 = vmatpush1.xpose.msra.mxu0 %v1868
  %1874 = vmatprep.subr.mxu0 0.0
  %1875 = vmatpush1.xpose.msra.mxu0 0.0
  %1876 = vmatprep.subr.mxu0 0.0
  %1877 = vmatpush1.xpose.msra.mxu0 0.0
  %1878 = vmatprep.subr.mxu0 0.0
  %1879 = vmatpush1.xpose.msra.mxu0 0.0
  %1880 = vmatprep.subr.mxu0 0.0
  %1881 = vmatpush1.xpose.msra.mxu0 0.0
  %1882 = vmatprep.subr.mxu0 0.0
  %1883 = vmatpush1.xpose.msra.mxu0 0.0
  %1884 = vmatprep.subr.mxu0 0.0
  %1885 = vmatpush1.xpose.msra.mxu0 0.0
  %1886 = vmatprep.subr.mxu0 0.0
  %1887 = vmatpush1.xpose.msra.mxu0 0.0
  %1888 = vmatprep.subr.mxu0 0.0
  %1889 = vmatpush1.xpose.msra.mxu0 0.0
  %1890 = vmatprep.subr.mxu0 0.0
  %1891 = vmatpush1.xpose.msra.mxu0 0.0
  %1892 = vmatprep.subr.mxu0 0.0
  %1893 = vmatpush1.xpose.msra.mxu0 0.0
  %1894 = vmatprep.subr.mxu0 0.0
  %1895 = vmatpush1.xpose.msra.mxu0 0.0
  %1896 = vmatprep.subr.mxu0 0.0
  %1897 = vmatpush1.xpose.msra.mxu0 0.0
  %1898 = vmatprep.subr.mxu0 0.0
  %1899 = vmatpush1.xpose.msra.mxu0 0.0
  %1900 = vmatprep.subr.mxu0 0.0
  %1901 = vmatpush1.xpose.msra.mxu0 0.0
  %1902 = vmatprep.subr.mxu0 0.0
  %1903 = vmatpush1.xpose.msra.mxu0 0.0
  %1904 = vmatprep.subr.mxu0 0.0
  %1905 = vmatpush1.xpose.msra.mxu0 0.0
  %1906 = vmatprep.subr.mxu0 0.0
  %1907 = vmatpush1.xpose.msra.mxu0 0.0
  %1908 = vmatprep.subr.mxu0 0.0
  %1909 = vmatpush1.xpose.msra.mxu0 0.0
  %1910 = vmatprep.subr.mxu0 0.0
  %1911 = vmatpush1.xpose.msra.mxu0 0.0
  %1912 = vmatprep.subr.mxu0 0.0
  %1913 = vmatpush1.xpose.msra.mxu0 0.0
  %1914 = vmatprep.subr.mxu0 0.0
  %1915 = vmatpush1.xpose.msra.mxu0 0.0
  %1916 = vmatprep.subr.mxu0 0.0
  %1917 = vmatpush1.xpose.msra.mxu0 0.0
  %1918 = vmatprep.subr.mxu0 0.0
  %1919 = vmatpush1.xpose.msra.mxu0 0.0
  %1920 = vmatprep.subr.mxu0 0.0
  %1921 = vmatpush1.xpose.msra.mxu0 0.0
  %1922 = vmatprep.subr.mxu0 0.0
  %1923 = vmatpush1.xpose.msra.mxu0 0.0
  %1924 = vmatprep.subr.mxu0 0.0
  %1925 = vmatpush1.xpose.msra.mxu0 0.0
  %1926 = vmatprep.subr.mxu0 0.0
  %1927 = vmatpush1.xpose.msra.mxu0 0.0
  %1928 = vmatprep.subr.mxu0 0.0
  %1929 = vmatpush1.xpose.msra.mxu0 0.0
  %1930 = vmatprep.subr.mxu0 0.0
  %1931 = vmatpush1.xpose.msra.mxu0 0.0
  %1932 = vmatprep.subr.mxu0 0.0
  %1933 = vmatpush1.xpose.msra.mxu0 0.0
  %1934 = vmatprep.mubr.f32.mxu0 0.0
  %1935 = vmatmul.mubr.f32.gmra.mrb[0].mxu0 %v1862
  %v1936 = vpop.f32.mrb[0].mxu0
  %v1937 = vadd.f32 0.0, %v1936
  %v1938 = vpop.f32.mrb[0].mxu0
  %1939 = vdwg.mxu0
  %vm1940 = vcmask 80896
  %v1941 = vsel %vm1940, %v1937, -inf
  %1942 = vmax.xlane.f32.xlu0 %v1941
  %v1943 = vpop.xlane.xlu0 %1942
  %v1944 = vsub.f32 %v1937, %v1943
  %v1945 = vmul.f32 %v1944, 1.442695
  %v1946 = vpow.pop %v1945
  %v1947 = vsel %vm1940, %v1946, 0.0
  %1948 = vadd.xlane.f32.xlu0 %v1947
  %v1949 = vpop.xlane.xlu0 %1948
  %v1950 = vrcp.pop %v1949
  %v1951 = vmul.f32 %v1946, %v1950
  %1952 = vrot.lane.b32.xlu0 %v1843, 96
  %v1953 = vpop.permute.xlu0 %1952
  %1954 = vrot.lane.b32.xlu0 %v1848, 96
  %v1955 = vpop.permute.xlu0 %1954
  %v1958 = vsel %vm1940, %v1951, 0
  %vm1960 = vcmask 1041408
  %v1961 = vsel %vm1960, %v1955, 0
  %1963 = vmatprep.subr.mxu0 0.0
  %1964 = vmatpush1.msra.mxu0 %v1953
  %1965 = vmatprep.subr.mxu0 0.0
  %1966 = vmatpush1.msra.mxu0 %v1961
  %1967 = vmatprep.subr.mxu0 0.0
  %1968 = vmatpush1.msra.mxu0 0.0
  %1969 = vmatprep.subr.mxu0 0.0
  %1970 = vmatpush1.msra.mxu0 0.0
  %1971 = vmatprep.subr.mxu0 0.0
  %1972 = vmatpush1.msra.mxu0 0.0
  %1973 = vmatprep.subr.mxu0 0.0
  %1974 = vmatpush1.msra.mxu0 0.0
  %1975 = vmatprep.subr.mxu0 0.0
  %1976 = vmatpush1.msra.mxu0 0.0
  %1977 = vmatprep.subr.mxu0 0.0
  %1978 = vmatpush1.msra.mxu0 0.0
  %1979 = vmatprep.subr.mxu0 0.0
  %1980 = vmatpush1.msra.mxu0 0.0
  %1981 = vmatprep.subr.mxu0 0.0
  %1982 = vmatpush1.msra.mxu0 0.0
  %1983 = vmatprep.subr.mxu0 0.0
  %1984 = vmatpush1.msra.mxu0 0.0
  %1985 = vmatprep.subr.mxu0 0.0
  %1986 = vmatpush1.msra.mxu0 0.0
  %1987 = vmatprep.subr.mxu0 0.0
  %1988 = vmatpush1.msra.mxu0 0.0
  %1989 = vmatprep.subr.mxu0 0.0
  %1990 = vmatpush1.msra.mxu0 0.0
  %1991 = vmatprep.subr.mxu0 0.0
  %1992 = vmatpush1.msra.mxu0 0.0
  %1993 = vmatprep.subr.mxu0 0.0
  %1994 = vmatpush1.msra.mxu0 0.0
  %1995 = vmatprep.subr.mxu0 0.0
  %1996 = vmatpush1.msra.mxu0 0.0
  %1997 = vmatprep.subr.mxu0 0.0
  %1998 = vmatpush1.msra.mxu0 0.0
  %1999 = vmatprep.subr.mxu0 0.0
  %2000 = vmatpush1.msra.mxu0 0.0
  %2001 = vmatprep.subr.mxu0 0.0
  %2002 = vmatpush1.msra.mxu0 0.0
  %2003 = vmatprep.subr.mxu0 0.0
  %2004 = vmatpush1.msra.mxu0 0.0
  %2005 = vmatprep.subr.mxu0 0.0
  %2006 = vmatpush1.msra.mxu0 0.0
  %2007 = vmatprep.subr.mxu0 0.0
  %2008 = vmatpush1.msra.mxu0 0.0
  %2009 = vmatprep.subr.mxu0 0.0
  %2010 = vmatpush1.msra.mxu0 0.0
  %2011 = vmatprep.subr.mxu0 0.0
  %2012 = vmatpush1.msra.mxu0 0.0
  %2013 = vmatprep.subr.mxu0 0.0
  %2014 = vmatpush1.msra.mxu0 0.0
  %2015 = vmatprep.subr.mxu0 0.0
  %2016 = vmatpush1.msra.mxu0 0.0
  %2017 = vmatprep.subr.mxu0 0.0
  %2018 = vmatpush1.msra.mxu0 0.0
  %2019 = vmatprep.subr.mxu0 0.0
  %2020 = vmatpush1.msra.mxu0 0.0
  %2021 = vmatprep.subr.mxu0 0.0
  %2022 = vmatpush1.msra.mxu0 0.0
  %2023 = vmatprep.subr.mxu0 0.0
  %2024 = vmatpush1.msra.mxu0 0.0
  %2025 = vmatprep.subr.mxu0 0.0
  %2026 = vmatpush1.msra.mxu0 0.0
  %2027 = vmatprep.mubr.f32.mxu0 0.0
  %2028 = vmatmul.mubr.f32.gmra.mrb[0].mxu0 %v1958
  %v2029 = vpop.f32.mrb[0].mxu0
  %v2030 = vadd.f32 0.0, %v2029
  %v2031 = vpop.f32.mrb[0].mxu0
  %2032 = vdwg.mxu0
  %2033 = vst.msk [vmem:[#allocation2] sm:$0xff] %vm177, %v2030
  %2034 = vrot.lane.b32.xlu0 %v1748, 120
  %v2035 = vpop.permute.xlu0 %2034
  %2036 = vrot.lane.b32.xlu0 %v1843, 120
  %v2037 = vpop.permute.xlu0 %2036
  %2038 = vrot.lane.b32.xlu0 %v1848, 120
  %v2039 = vpop.permute.xlu0 %2038
  %v2040 = vsel %vm177, %v2035, 0
  %v2042 = vsel %vm177, %v2037, 0
  %v2044 = vsel %vm177, %v2039, 0
  %2046 = vmatprep.subr.mxu0 0.0
  %2047 = vmatpush1.xpose.msra.mxu0 %v2042
  %2048 = vmatprep.subr.mxu0 0.0
  %2049 = vmatpush1.xpose.msra.mxu0 %v2044
  %2050 = vmatprep.subr.mxu0 0.0
  %2051 = vmatpush1.xpose.msra.mxu0 0.0
  %2052 = vmatprep.subr.mxu0 0.0
  %2053 = vmatpush1.xpose.msra.mxu0 0.0
  %2054 = vmatprep.subr.mxu0 0.0
  %2055 = vmatpush1.xpose.msra.mxu0 0.0
  %2056 = vmatprep.subr.mxu0 0.0
  %2057 = vmatpush1.xpose.msra.mxu0 0.0
  %2058 = vmatprep.subr.mxu0 0.0
  %2059 = vmatpush1.xpose.msra.mxu0 0.0
  %2060 = vmatprep.subr.mxu0 0.0
  %2061 = vmatpush1.xpose.msra.mxu0 0.0
  %2062 = vmatprep.subr.mxu0 0.0
  %2063 = vmatpush1.xpose.msra.mxu0 0.0
  %2064 = vmatprep.subr.mxu0 0.0
  %2065 = vmatpush1.xpose.msra.mxu0 0.0
  %2066 = vmatprep.subr.mxu0 0.0
  %2067 = vmatpush1.xpose.msra.mxu0 0.0
  %2068 = vmatprep.subr.mxu0 0.0
  %2069 = vmatpush1.xpose.msra.mxu0 0.0
  %2070 = vmatprep.subr.mxu0 0.0
  %2071 = vmatpush1.xpose.msra.mxu0 0.0
  %2072 = vmatprep.subr.mxu0 0.0
  %2073 = vmatpush1.xpose.msra.mxu0 0.0
  %2074 = vmatprep.subr.mxu0 0.0
  %2075 = vmatpush1.xpose.msra.mxu0 0.0
  %2076 = vmatprep.subr.mxu0 0.0
  %2077 = vmatpush1.xpose.msra.mxu0 0.0
  %2078 = vmatprep.subr.mxu0 0.0
  %2079 = vmatpush1.xpose.msra.mxu0 0.0
  %2080 = vmatprep.subr.mxu0 0.0
  %2081 = vmatpush1.xpose.msra.mxu0 0.0
  %2082 = vmatprep.subr.mxu0 0.0
  %2083 = vmatpush1.xpose.msra.mxu0 0.0
  %2084 = vmatprep.subr.mxu0 0.0
  %2085 = vmatpush1.xpose.msra.mxu0 0.0
  %2086 = vmatprep.subr.mxu0 0.0
  %2087 = vmatpush1.xpose.msra.mxu0 0.0
  %2088 = vmatprep.subr.mxu0 0.0
  %2089 = vmatpush1.xpose.msra.mxu0 0.0
  %2090 = vmatprep.subr.mxu0 0.0
  %2091 = vmatpush1.xpose.msra.mxu0 0.0
  %2092 = vmatprep.subr.mxu0 0.0
  %2093 = vmatpush1.xpose.msra.mxu0 0.0
  %2094 = vmatprep.subr.mxu0 0.0
  %2095 = vmatpush1.xpose.msra.mxu0 0.0
  %2096 = vmatprep.subr.mxu0 0.0
  %2097 = vmatpush1.xpose.msra.mxu0 0.0
  %2098 = vmatprep.subr.mxu0 0.0
  %2099 = vmatpush1.xpose.msra.mxu0 0.0
  %2100 = vmatprep.subr.mxu0 0.0
  %2101 = vmatpush1.xpose.msra.mxu0 0.0
  %2102 = vmatprep.subr.mxu0 0.0
  %2103 = vmatpush1.xpose.msra.mxu0 0.0
  %2104 = vmatprep.subr.mxu0 0.0
  %2105 = vmatpush1.xpose.msra.mxu0 0.0
  %2106 = vmatprep.subr.mxu0 0.0
  %2107 = vmatpush1.xpose.msra.mxu0 0.0
  %2108 = vmatprep.subr.mxu0 0.0
  %2109 = vmatpush1.xpose.msra.mxu0 0.0
  %2110 = vmatprep.mubr.f32.mxu0 0.0
  %2111 = vmatmul.mubr.f32.gmra.mrb[0].mxu0 %v2040
  %v2112 = vpop.f32.mrb[0].mxu0
  %v2113 = vadd.f32 0.0, %v2112
  %v2114 = vpop.f32.mrb[0].mxu0
  %2115 = vdwg.mxu0
  %v2116 = vsel %vm1940, %v2113, -inf
  %2117 = vmax.xlane.f32.xlu0 %v2116
  %v2118 = vpop.xlane.xlu0 %2117
  %v2119 = vsub.f32 %v2113, %v2118
  %v2120 = vmul.f32 %v2119, 1.442695
  %v2121 = vpow.pop %v2120
  %v2122 = vsel %vm1940, %v2121, 0.0
  %2123 = vadd.xlane.f32.xlu0 %v2122
  %v2124 = vpop.xlane.xlu0 %2123
  %v2125 = vrcp.pop %v2124
  %v2126 = vmul.f32 %v2121, %v2125
  %2127 = vrot.lane.b32.xlu0 %v1843, 88
  %v2128 = vpop.permute.xlu0 %2127
  %2129 = vrot.lane.b32.xlu0 %v1848, 88
  %v2130 = vpop.permute.xlu0 %2129
  %v2133 = vsel %vm1940, %v2126, 0
  %v2135 = vsel %vm1960, %v2130, 0
  %2137 = vmatprep.subr.mxu0 0.0
  %2138 = vmatpush1.msra.mxu0 %v2128
  %2139 = vmatprep.subr.mxu0 0.0
  %2140 = vmatpush1.msra.mxu0 %v2135
  %2141 = vmatprep.subr.mxu0 0.0
  %2142 = vmatpush1.msra.mxu0 0.0
  %2143 = vmatprep.subr.mxu0 0.0
  %2144 = vmatpush1.msra.mxu0 0.0
  %2145 = vmatprep.subr.mxu0 0.0
  %2146 = vmatpush1.msra.mxu0 0.0
  %2147 = vmatprep.subr.mxu0 0.0
  %2148 = vmatpush1.msra.mxu0 0.0
  %2149 = vmatprep.subr.mxu0 0.0
  %2150 = vmatpush1.msra.mxu0 0.0
  %2151 = vmatprep.subr.mxu0 0.0
  %2152 = vmatpush1.msra.mxu0 0.0
  %2153 = vmatprep.subr.mxu0 0.0
  %2154 = vmatpush1.msra.mxu0 0.0
  %2155 = vmatprep.subr.mxu0 0.0
  %2156 = vmatpush1.msra.mxu0 0.0
  %2157 = vmatprep.subr.mxu0 0.0
  %2158 = vmatpush1.msra.mxu0 0.0
  %2159 = vmatprep.subr.mxu0 0.0
  %2160 = vmatpush1.msra.mxu0 0.0
  %2161 = vmatprep.subr.mxu0 0.0
  %2162 = vmatpush1.msra.mxu0 0.0
  %2163 = vmatprep.subr.mxu0 0.0
  %2164 = vmatpush1.msra.mxu0 0.0
  %2165 = vmatprep.subr.mxu0 0.0
  %2166 = vmatpush1.msra.mxu0 0.0
  %2167 = vmatprep.subr.mxu0 0.0
  %2168 = vmatpush1.msra.mxu0 0.0
  %2169 = vmatprep.subr.mxu0 0.0
  %2170 = vmatpush1.msra.mxu0 0.0
  %2171 = vmatprep.subr.mxu0 0.0
  %2172 = vmatpush1.msra.mxu0 0.0
  %2173 = vmatprep.subr.mxu0 0.0
  %2174 = vmatpush1.msra.mxu0 0.0
  %2175 = vmatprep.subr.mxu0 0.0
  %2176 = vmatpush1.msra.mxu0 0.0
  %2177 = vmatprep.subr.mxu0 0.0
  %2178 = vmatpush1.msra.mxu0 0.0
  %2179 = vmatprep.subr.mxu0 0.0
  %2180 = vmatpush1.msra.mxu0 0.0
  %2181 = vmatprep.subr.mxu0 0.0
  %2182 = vmatpush1.msra.mxu0 0.0
  %2183 = vmatprep.subr.mxu0 0.0
  %2184 = vmatpush1.msra.mxu0 0.0
  %2185 = vmatprep.subr.mxu0 0.0
  %2186 = vmatpush1.msra.mxu0 0.0
  %2187 = vmatprep.subr.mxu0 0.0
  %2188 = vmatpush1.msra.mxu0 0.0
  %2189 = vmatprep.subr.mxu0 0.0
  %2190 = vmatpush1.msra.mxu0 0.0
  %2191 = vmatprep.subr.mxu0 0.0
  %2192 = vmatpush1.msra.mxu0 0.0
  %2193 = vmatprep.subr.mxu0 0.0
  %2194 = vmatpush1.msra.mxu0 0.0
  %2195 = vmatprep.subr.mxu0 0.0
  %2196 = vmatpush1.msra.mxu0 0.0
  %2197 = vmatprep.subr.mxu0 0.0
  %2198 = vmatpush1.msra.mxu0 0.0
  %2199 = vmatprep.subr.mxu0 0.0
  %2200 = vmatpush1.msra.mxu0 0.0
  %2201 = vmatprep.mubr.f32.mxu0 0.0
  %2202 = vmatmul.mubr.f32.gmra.mrb[0].mxu0 %v2133
  %v2203 = vpop.f32.mrb[0].mxu0
  %v2204 = vadd.f32 0.0, %v2203
  %v2205 = vpop.f32.mrb[0].mxu0
  %2206 = vdwg.mxu0
  %2208 = vrot.lane.b32.xlu0 %v2204, 8
  %v2209 = vpop.permute.xlu0 %2208
  %2211 = vst.msk [vmem:[#allocation2] sm:$0xff] %vm509, %v2209
  %2212 = vrot.lane.b32.xlu0 %v1748, 112
  %v2213 = vpop.permute.xlu0 %2212
  %2214 = vrot.lane.b32.xlu0 %v1843, 112
  %v2215 = vpop.permute.xlu0 %2214
  %2216 = vrot.lane.b32.xlu0 %v1848, 112
  %v2217 = vpop.permute.xlu0 %2216
  %v2218 = vsel %vm177, %v2213, 0
  %v2220 = vsel %vm177, %v2215, 0
  %v2222 = vsel %vm177, %v2217, 0
  %2224 = vmatprep.subr.mxu0 0.0
  %2225 = vmatpush1.xpose.msra.mxu0 %v2220
  %2226 = vmatprep.subr.mxu0 0.0
  %2227 = vmatpush1.xpose.msra.mxu0 %v2222
  %2228 = vmatprep.subr.mxu0 0.0
  %2229 = vmatpush1.xpose.msra.mxu0 0.0
  %2230 = vmatprep.subr.mxu0 0.0
  %2231 = vmatpush1.xpose.msra.mxu0 0.0
  %2232 = vmatprep.subr.mxu0 0.0
  %2233 = vmatpush1.xpose.msra.mxu0 0.0
  %2234 = vmatprep.subr.mxu0 0.0
  %2235 = vmatpush1.xpose.msra.mxu0 0.0
  %2236 = vmatprep.subr.mxu0 0.0
  %2237 = vmatpush1.xpose.msra.mxu0 0.0
  %2238 = vmatprep.subr.mxu0 0.0
  %2239 = vmatpush1.xpose.msra.mxu0 0.0
  %2240 = vmatprep.subr.mxu0 0.0
  %2241 = vmatpush1.xpose.msra.mxu0 0.0
  %2242 = vmatprep.subr.mxu0 0.0
  %2243 = vmatpush1.xpose.msra.mxu0 0.0
  %2244 = vmatprep.subr.mxu0 0.0
  %2245 = vmatpush1.xpose.msra.mxu0 0.0
  %2246 = vmatprep.subr.mxu0 0.0
  %2247 = vmatpush1.xpose.msra.mxu0 0.0
  %2248 = vmatprep.subr.mxu0 0.0
  %2249 = vmatpush1.xpose.msra.mxu0 0.0
  %2250 = vmatprep.subr.mxu0 0.0
  %2251 = vmatpush1.xpose.msra.mxu0 0.0
  %2252 = vmatprep.subr.mxu0 0.0
  %2253 = vmatpush1.xpose.msra.mxu0 0.0
  %2254 = vmatprep.subr.mxu0 0.0
  %2255 = vmatpush1.xpose.msra.mxu0 0.0
  %2256 = vmatprep.subr.mxu0 0.0
  %2257 = vmatpush1.xpose.msra.mxu0 0.0
  %2258 = vmatprep.subr.mxu0 0.0
  %2259 = vmatpush1.xpose.msra.mxu0 0.0
  %2260 = vmatprep.subr.mxu0 0.0
  %2261 = vmatpush1.xpose.msra.mxu0 0.0
  %2262 = vmatprep.subr.mxu0 0.0
  %2263 = vmatpush1.xpose.msra.mxu0 0.0
  %2264 = vmatprep.subr.mxu0 0.0
  %2265 = vmatpush1.xpose.msra.mxu0 0.0
  %2266 = vmatprep.subr.mxu0 0.0
  %2267 = vmatpush1.xpose.msra.mxu0 0.0
  %2268 = vmatprep.subr.mxu0 0.0
  %2269 = vmatpush1.xpose.msra.mxu0 0.0
  %2270 = vmatprep.subr.mxu0 0.0
  %2271 = vmatpush1.xpose.msra.mxu0 0.0
  %2272 = vmatprep.subr.mxu0 0.0
  %2273 = vmatpush1.xpose.msra.mxu0 0.0
  %2274 = vmatprep.subr.mxu0 0.0
  %2275 = vmatpush1.xpose.msra.mxu0 0.0
  %2276 = vmatprep.subr.mxu0 0.0
  %2277 = vmatpush1.xpose.msra.mxu0 0.0
  %2278 = vmatprep.subr.mxu0 0.0
  %2279 = vmatpush1.xpose.msra.mxu0 0.0
  %2280 = vmatprep.subr.mxu0 0.0
  %2281 = vmatpush1.xpose.msra.mxu0 0.0
  %2282 = vmatprep.subr.mxu0 0.0
  %2283 = vmatpush1.xpose.msra.mxu0 0.0
  %2284 = vmatprep.subr.mxu0 0.0
  %2285 = vmatpush1.xpose.msra.mxu0 0.0
  %2286 = vmatprep.subr.mxu0 0.0
  %2287 = vmatpush1.xpose.msra.mxu0 0.0
  %2288 = vmatprep.mubr.f32.mxu0 0.0
  %2289 = vmatmul.mubr.f32.gmra.mrb[0].mxu0 %v2218
  %v2290 = vpop.f32.mrb[0].mxu0
  %v2291 = vadd.f32 0.0, %v2290
  %v2292 = vpop.f32.mrb[0].mxu0
  %2293 = vdwg.mxu0
  %v2294 = vsel %vm1940, %v2291, -inf
  %2295 = vmax.xlane.f32.xlu0 %v2294
  %v2296 = vpop.xlane.xlu0 %2295
  %v2297 = vsub.f32 %v2291, %v2296
  %v2298 = vmul.f32 %v2297, 1.442695
  %v2299 = vpow.pop %v2298
  %v2300 = vsel %vm1940, %v2299, 0.0
  %2301 = vadd.xlane.f32.xlu0 %v2300
  %v2302 = vpop.xlane.xlu0 %2301
  %v2303 = vrcp.pop %v2302
  %v2304 = vmul.f32 %v2299, %v2303
  %2305 = vrot.lane.b32.xlu0 %v1843, 80
  %v2306 = vpop.permute.xlu0 %2305
  %2307 = vrot.lane.b32.xlu0 %v1848, 80
  %v2308 = vpop.permute.xlu0 %2307
  %v2311 = vsel %vm1940, %v2304, 0
  %v2313 = vsel %vm1960, %v2308, 0
  %2315 = vmatprep.subr.mxu0 0.0
  %2316 = vmatpush1.msra.mxu0 %v2306
  %2317 = vmatprep.subr.mxu0 0.0
  %2318 = vmatpush1.msra.mxu0 %v2313
  %2319 = vmatprep.subr.mxu0 0.0
  %2320 = vmatpush1.msra.mxu0 0.0
  %2321 = vmatprep.subr.mxu0 0.0
  %2322 = vmatpush1.msra.mxu0 0.0
  %2323 = vmatprep.subr.mxu0 0.0
  %2324 = vmatpush1.msra.mxu0 0.0
  %2325 = vmatprep.subr.mxu0 0.0
  %2326 = vmatpush1.msra.mxu0 0.0
  %2327 = vmatprep.subr.mxu0 0.0
  %2328 = vmatpush1.msra.mxu0 0.0
  %2329 = vmatprep.subr.mxu0 0.0
  %2330 = vmatpush1.msra.mxu0 0.0
  %2331 = vmatprep.subr.mxu0 0.0
  %2332 = vmatpush1.msra.mxu0 0.0
  %2333 = vmatprep.subr.mxu0 0.0
  %2334 = vmatpush1.msra.mxu0 0.0
  %2335 = vmatprep.subr.mxu0 0.0
  %2336 = vmatpush1.msra.mxu0 0.0
  %2337 = vmatprep.subr.mxu0 0.0
  %2338 = vmatpush1.msra.mxu0 0.0
  %2339 = vmatprep.subr.mxu0 0.0
  %2340 = vmatpush1.msra.mxu0 0.0
  %2341 = vmatprep.subr.mxu0 0.0
  %2342 = vmatpush1.msra.mxu0 0.0
  %2343 = vmatprep.subr.mxu0 0.0
  %2344 = vmatpush1.msra.mxu0 0.0
  %2345 = vmatprep.subr.mxu0 0.0
  %2346 = vmatpush1.msra.mxu0 0.0
  %2347 = vmatprep.subr.mxu0 0.0
  %2348 = vmatpush1.msra.mxu0 0.0
  %2349 = vmatprep.subr.mxu0 0.0
  %2350 = vmatpush1.msra.mxu0 0.0
  %2351 = vmatprep.subr.mxu0 0.0
  %2352 = vmatpush1.msra.mxu0 0.0
  %2353 = vmatprep.subr.mxu0 0.0
  %2354 = vmatpush1.msra.mxu0 0.0
  %2355 = vmatprep.subr.mxu0 0.0
  %2356 = vmatpush1.msra.mxu0 0.0
  %2357 = vmatprep.subr.mxu0 0.0
  %2358 = vmatpush1.msra.mxu0 0.0
  %2359 = vmatprep.subr.mxu0 0.0
  %2360 = vmatpush1.msra.mxu0 0.0
  %2361 = vmatprep.subr.mxu0 0.0
  %2362 = vmatpush1.msra.mxu0 0.0
  %2363 = vmatprep.subr.mxu0 0.0
  %2364 = vmatpush1.msra.mxu0 0.0
  %2365 = vmatprep.subr.mxu0 0.0
  %2366 = vmatpush1.msra.mxu0 0.0
  %2367 = vmatprep.subr.mxu0 0.0
  %2368 = vmatpush1.msra.mxu0 0.0
  %2369 = vmatprep.subr.mxu0 0.0
  %2370 = vmatpush1.msra.mxu0 0.0
  %2371 = vmatprep.subr.mxu0 0.0
  %2372 = vmatpush1.msra.mxu0 0.0
  %2373 = vmatprep.subr.mxu0 0.0
  %2374 = vmatpush1.msra.mxu0 0.0
  %2375 = vmatprep.subr.mxu0 0.0
  %2376 = vmatpush1.msra.mxu0 0.0
  %2377 = vmatprep.subr.mxu0 0.0
  %2378 = vmatpush1.msra.mxu0 0.0
  %2379 = vmatprep.mubr.f32.mxu0 0.0
  %2380 = vmatmul.mubr.f32.gmra.mrb[0].mxu0 %v2311
  %v2381 = vpop.f32.mrb[0].mxu0
  %v2382 = vadd.f32 0.0, %v2381
  %v2383 = vpop.f32.mrb[0].mxu0
  %2384 = vdwg.mxu0
  %2386 = vrot.lane.b32.xlu0 %v2382, 16
  %v2387 = vpop.permute.xlu0 %2386
  %2389 = vst.msk [vmem:[#allocation2] sm:$0xff] %vm680, %v2387
  %2390 = vrot.lane.b32.xlu0 %v1748, 104
  %v2391 = vpop.permute.xlu0 %2390
  %2392 = vrot.lane.b32.xlu0 %v1843, 104
  %v2393 = vpop.permute.xlu0 %2392
  %2394 = vrot.lane.b32.xlu0 %v1848, 104
  %v2395 = vpop.permute.xlu0 %2394
  %v2396 = vsel %vm177, %v2391, 0
  %v2398 = vsel %vm177, %v2393, 0
  %v2400 = vsel %vm177, %v2395, 0
  %2402 = vmatprep.subr.mxu0 0.0
  %2403 = vmatpush1.xpose.msra.mxu0 %v2398
  %2404 = vmatprep.subr.mxu0 0.0
  %2405 = vmatpush1.xpose.msra.mxu0 %v2400
  %2406 = vmatprep.subr.mxu0 0.0
  %2407 = vmatpush1.xpose.msra.mxu0 0.0
  %2408 = vmatprep.subr.mxu0 0.0
  %2409 = vmatpush1.xpose.msra.mxu0 0.0
  %2410 = vmatprep.subr.mxu0 0.0
  %2411 = vmatpush1.xpose.msra.mxu0 0.0
  %2412 = vmatprep.subr.mxu0 0.0
  %2413 = vmatpush1.xpose.msra.mxu0 0.0
  %2414 = vmatprep.subr.mxu0 0.0
  %2415 = vmatpush1.xpose.msra.mxu0 0.0
  %2416 = vmatprep.subr.mxu0 0.0
  %2417 = vmatpush1.xpose.msra.mxu0 0.0
  %2418 = vmatprep.subr.mxu0 0.0
  %2419 = vmatpush1.xpose.msra.mxu0 0.0
  %2420 = vmatprep.subr.mxu0 0.0
  %2421 = vmatpush1.xpose.msra.mxu0 0.0
  %2422 = vmatprep.subr.mxu0 0.0
  %2423 = vmatpush1.xpose.msra.mxu0 0.0
  %2424 = vmatprep.subr.mxu0 0.0
  %2425 = vmatpush1.xpose.msra.mxu0 0.0
  %2426 = vmatprep.subr.mxu0 0.0
  %2427 = vmatpush1.xpose.msra.mxu0 0.0
  %2428 = vmatprep.subr.mxu0 0.0
  %2429 = vmatpush1.xpose.msra.mxu0 0.0
  %2430 = vmatprep.subr.mxu0 0.0
  %2431 = vmatpush1.xpose.msra.mxu0 0.0
  %2432 = vmatprep.subr.mxu0 0.0
  %2433 = vmatpush1.xpose.msra.mxu0 0.0
  %2434 = vmatprep.subr.mxu0 0.0
  %2435 = vmatpush1.xpose.msra.mxu0 0.0
  %2436 = vmatprep.subr.mxu0 0.0
  %2437 = vmatpush1.xpose.msra.mxu0 0.0
  %2438 = vmatprep.subr.mxu0 0.0
  %2439 = vmatpush1.xpose.msra.mxu0 0.0
  %2440 = vmatprep.subr.mxu0 0.0
  %2441 = vmatpush1.xpose.msra.mxu0 0.0
  %2442 = vmatprep.subr.mxu0 0.0
  %2443 = vmatpush1.xpose.msra.mxu0 0.0
  %2444 = vmatprep.subr.mxu0 0.0
  %2445 = vmatpush1.xpose.msra.mxu0 0.0
  %2446 = vmatprep.subr.mxu0 0.0
  %2447 = vmatpush1.xpose.msra.mxu0 0.0
  %2448 = vmatprep.subr.mxu0 0.0
  %2449 = vmatpush1.xpose.msra.mxu0 0.0
  %2450 = vmatprep.subr.mxu0 0.0
  %2451 = vmatpush1.xpose.msra.mxu0 0.0
  %2452 = vmatprep.subr.mxu0 0.0
  %2453 = vmatpush1.xpose.msra.mxu0 0.0
  %2454 = vmatprep.subr.mxu0 0.0
  %2455 = vmatpush1.xpose.msra.mxu0 0.0
  %2456 = vmatprep.subr.mxu0 0.0
  %2457 = vmatpush1.xpose.msra.mxu0 0.0
  %2458 = vmatprep.subr.mxu0 0.0
  %2459 = vmatpush1.xpose.msra.mxu0 0.0
  %2460 = vmatprep.subr.mxu0 0.0
  %2461 = vmatpush1.xpose.msra.mxu0 0.0
  %2462 = vmatprep.subr.mxu0 0.0
  %2463 = vmatpush1.xpose.msra.mxu0 0.0
  %2464 = vmatprep.subr.mxu0 0.0
  %2465 = vmatpush1.xpose.msra.mxu0 0.0
  %2466 = vmatprep.mubr.f32.mxu0 0.0
  %2467 = vmatmul.mubr.f32.gmra.mrb[0].mxu0 %v2396
  %v2468 = vpop.f32.mrb[0].mxu0
  %v2469 = vadd.f32 0.0, %v2468
  %v2470 = vpop.f32.mrb[0].mxu0
  %2471 = vdwg.mxu0
  %v2472 = vsel %vm1940, %v2469, -inf
  %2473 = vmax.xlane.f32.xlu0 %v2472
  %v2474 = vpop.xlane.xlu0 %2473
  %v2475 = vsub.f32 %v2469, %v2474
  %v2476 = vmul.f32 %v2475, 1.442695
  %v2477 = vpow.pop %v2476
  %v2478 = vsel %vm1940, %v2477, 0.0
  %2479 = vadd.xlane.f32.xlu0 %v2478
  %v2480 = vpop.xlane.xlu0 %2479
  %v2481 = vrcp.pop %v2480
  %v2482 = vmul.f32 %v2477, %v2481
  %2483 = vrot.lane.b32.xlu0 %v1843, 72
  %v2484 = vpop.permute.xlu0 %2483
  %2485 = vrot.lane.b32.xlu0 %v1848, 72
  %v2486 = vpop.permute.xlu0 %2485
  %v2489 = vsel %vm1940, %v2482, 0
  %v2491 = vsel %vm1960, %v2486, 0
  %2493 = vmatprep.subr.mxu0 0.0
  %2494 = vmatpush1.msra.mxu0 %v2484
  %2495 = vmatprep.subr.mxu0 0.0
  %2496 = vmatpush1.msra.mxu0 %v2491
  %2497 = vmatprep.subr.mxu0 0.0
  %2498 = vmatpush1.msra.mxu0 0.0
  %2499 = vmatprep.subr.mxu0 0.0
  %2500 = vmatpush1.msra.mxu0 0.0
  %2501 = vmatprep.subr.mxu0 0.0
  %2502 = vmatpush1.msra.mxu0 0.0
  %2503 = vmatprep.subr.mxu0 0.0
  %2504 = vmatpush1.msra.mxu0 0.0
  %2505 = vmatprep.subr.mxu0 0.0
  %2506 = vmatpush1.msra.mxu0 0.0
  %2507 = vmatprep.subr.mxu0 0.0
  %2508 = vmatpush1.msra.mxu0 0.0
  %2509 = vmatprep.subr.mxu0 0.0
  %2510 = vmatpush1.msra.mxu0 0.0
  %2511 = vmatprep.subr.mxu0 0.0
  %2512 = vmatpush1.msra.mxu0 0.0
  %2513 = vmatprep.subr.mxu0 0.0
  %2514 = vmatpush1.msra.mxu0 0.0
  %2515 = vmatprep.subr.mxu0 0.0
  %2516 = vmatpush1.msra.mxu0 0.0
  %2517 = vmatprep.subr.mxu0 0.0
  %2518 = vmatpush1.msra.mxu0 0.0
  %2519 = vmatprep.subr.mxu0 0.0
  %2520 = vmatpush1.msra.mxu0 0.0
  %2521 = vmatprep.subr.mxu0 0.0
  %2522 = vmatpush1.msra.mxu0 0.0
  %2523 = vmatprep.subr.mxu0 0.0
  %2524 = vmatpush1.msra.mxu0 0.0
  %2525 = vmatprep.subr.mxu0 0.0
  %2526 = vmatpush1.msra.mxu0 0.0
  %2527 = vmatprep.subr.mxu0 0.0
  %2528 = vmatpush1.msra.mxu0 0.0
  %2529 = vmatprep.subr.mxu0 0.0
  %2530 = vmatpush1.msra.mxu0 0.0
  %2531 = vmatprep.subr.mxu0 0.0
  %2532 = vmatpush1.msra.mxu0 0.0
  %2533 = vmatprep.subr.mxu0 0.0
  %2534 = vmatpush1.msra.mxu0 0.0
  %2535 = vmatprep.subr.mxu0 0.0
  %2536 = vmatpush1.msra.mxu0 0.0
  %2537 = vmatprep.subr.mxu0 0.0
  %2538 = vmatpush1.msra.mxu0 0.0
  %2539 = vmatprep.subr.mxu0 0.0
  %2540 = vmatpush1.msra.mxu0 0.0
  %2541 = vmatprep.subr.mxu0 0.0
  %2542 = vmatpush1.msra.mxu0 0.0
  %2543 = vmatprep.subr.mxu0 0.0
  %2544 = vmatpush1.msra.mxu0 0.0
  %2545 = vmatprep.subr.mxu0 0.0
  %2546 = vmatpush1.msra.mxu0 0.0
  %2547 = vmatprep.subr.mxu0 0.0
  %2548 = vmatpush1.msra.mxu0 0.0
  %2549 = vmatprep.subr.mxu0 0.0
  %2550 = vmatpush1.msra.mxu0 0.0
  %2551 = vmatprep.subr.mxu0 0.0
  %2552 = vmatpush1.msra.mxu0 0.0
  %2553 = vmatprep.subr.mxu0 0.0
  %2554 = vmatpush1.msra.mxu0 0.0
  %2555 = vmatprep.subr.mxu0 0.0
  %2556 = vmatpush1.msra.mxu0 0.0
  %2557 = vmatprep.mubr.f32.mxu0 0.0
  %2558 = vmatmul.mubr.f32.gmra.mrb[0].mxu0 %v2489
  %v2559 = vpop.f32.mrb[0].mxu0
  %v2560 = vadd.f32 0.0, %v2559
  %v2561 = vpop.f32.mrb[0].mxu0
  %2562 = vdwg.mxu0
  %2564 = vrot.lane.b32.xlu0 %v2560, 24
  %v2565 = vpop.permute.xlu0 %2564
  %2567 = vst.msk [vmem:[#allocation2] sm:$0xff] %vm851, %v2565
  %vm2569 = vcmask 1045504
  %v2570 = vrot.slane %v1848, 2
  %v2571 = vrot.slane %v1853, 2
  %v2572 = vsel %vm2569, %v2570, %v2571
  %v2574 = vsel %vm177, %v1753, 0
  %v2576 = vsel %vm177, %v2572, 0
  %v2578 = vsel %vm177, %v2571, 0
  %2580 = vmatprep.subr.mxu0 0.0
  %2581 = vmatpush1.xpose.msra.mxu0 %v2576
  %2582 = vmatprep.subr.mxu0 0.0
  %2583 = vmatpush1.xpose.msra.mxu0 %v2578
  %2584 = vmatprep.subr.mxu0 0.0
  %2585 = vmatpush1.xpose.msra.mxu0 0.0
  %2586 = vmatprep.subr.mxu0 0.0
  %2587 = vmatpush1.xpose.msra.mxu0 0.0
  %2588 = vmatprep.subr.mxu0 0.0
  %2589 = vmatpush1.xpose.msra.mxu0 0.0
  %2590 = vmatprep.subr.mxu0 0.0
  %2591 = vmatpush1.xpose.msra.mxu0 0.0
  %2592 = vmatprep.subr.mxu0 0.0
  %2593 = vmatpush1.xpose.msra.mxu0 0.0
  %2594 = vmatprep.subr.mxu0 0.0
  %2595 = vmatpush1.xpose.msra.mxu0 0.0
  %2596 = vmatprep.subr.mxu0 0.0
  %2597 = vmatpush1.xpose.msra.mxu0 0.0
  %2598 = vmatprep.subr.mxu0 0.0
  %2599 = vmatpush1.xpose.msra.mxu0 0.0
  %2600 = vmatprep.subr.mxu0 0.0
  %2601 = vmatpush1.xpose.msra.mxu0 0.0
  %2602 = vmatprep.subr.mxu0 0.0
  %2603 = vmatpush1.xpose.msra.mxu0 0.0
  %2604 = vmatprep.subr.mxu0 0.0
  %2605 = vmatpush1.xpose.msra.mxu0 0.0
  %2606 = vmatprep.subr.mxu0 0.0
  %2607 = vmatpush1.xpose.msra.mxu0 0.0
  %2608 = vmatprep.subr.mxu0 0.0
  %2609 = vmatpush1.xpose.msra.mxu0 0.0
  %2610 = vmatprep.subr.mxu0 0.0
  %2611 = vmatpush1.xpose.msra.mxu0 0.0
  %2612 = vmatprep.subr.mxu0 0.0
  %2613 = vmatpush1.xpose.msra.mxu0 0.0
  %2614 = vmatprep.subr.mxu0 0.0
  %2615 = vmatpush1.xpose.msra.mxu0 0.0
  %2616 = vmatprep.subr.mxu0 0.0
  %2617 = vmatpush1.xpose.msra.mxu0 0.0
  %2618 = vmatprep.subr.mxu0 0.0
  %2619 = vmatpush1.xpose.msra.mxu0 0.0
  %2620 = vmatprep.subr.mxu0 0.0
  %2621 = vmatpush1.xpose.msra.mxu0 0.0
  %2622 = vmatprep.subr.mxu0 0.0
  %2623 = vmatpush1.xpose.msra.mxu0 0.0
  %2624 = vmatprep.subr.mxu0 0.0
  %2625 = vmatpush1.xpose.msra.mxu0 0.0
  %2626 = vmatprep.subr.mxu0 0.0
  %2627 = vmatpush1.xpose.msra.mxu0 0.0
  %2628 = vmatprep.subr.mxu0 0.0
  %2629 = vmatpush1.xpose.msra.mxu0 0.0
  %2630 = vmatprep.subr.mxu0 0.0
  %2631 = vmatpush1.xpose.msra.mxu0 0.0
  %2632 = vmatprep.subr.mxu0 0.0
  %2633 = vmatpush1.xpose.msra.mxu0 0.0
  %2634 = vmatprep.subr.mxu0 0.0
  %2635 = vmatpush1.xpose.msra.mxu0 0.0
  %2636 = vmatprep.subr.mxu0 0.0
  %2637 = vmatpush1.xpose.msra.mxu0 0.0
  %2638 = vmatprep.subr.mxu0 0.0
  %2639 = vmatpush1.xpose.msra.mxu0 0.0
  %2640 = vmatprep.subr.mxu0 0.0
  %2641 = vmatpush1.xpose.msra.mxu0 0.0
  %2642 = vmatprep.subr.mxu0 0.0
  %2643 = vmatpush1.xpose.msra.mxu0 0.0
  %2644 = vmatprep.mubr.f32.mxu0 0.0
  %2645 = vmatmul.mubr.f32.gmra.mrb[0].mxu0 %v2574
  %v2646 = vpop.f32.mrb[0].mxu0
  %v2647 = vadd.f32 0.0, %v2646
  %v2648 = vpop.f32.mrb[0].mxu0
  %2649 = vdwg.mxu0
  %v2650 = vsel %vm1940, %v2647, -inf
  %2651 = vmax.xlane.f32.xlu0 %v2650
  %v2652 = vpop.xlane.xlu0 %2651
  %v2653 = vsub.f32 %v2647, %v2652
  %v2654 = vmul.f32 %v2653, 1.442695
  %v2655 = vpow.pop %v2654
  %v2656 = vsel %vm1940, %v2655, 0.0
  %2657 = vadd.xlane.f32.xlu0 %v2656
  %v2658 = vpop.xlane.xlu0 %2657
  %v2659 = vrcp.pop %v2658
  %v2660 = vmul.f32 %v2655, %v2659
  %2661 = vrot.lane.b32.xlu0 %v2572, 96
  %v2662 = vpop.permute.xlu0 %2661
  %2663 = vrot.lane.b32.xlu0 %v2571, 96
  %v2664 = vpop.permute.xlu0 %2663
  %v2667 = vsel %vm1940, %v2660, 0
  %v2669 = vsel %vm1960, %v2664, 0
  %2671 = vmatprep.subr.mxu0 0.0
  %2672 = vmatpush1.msra.mxu0 %v2662
  %2673 = vmatprep.subr.mxu0 0.0
  %2674 = vmatpush1.msra.mxu0 %v2669
  %2675 = vmatprep.subr.mxu0 0.0
  %2676 = vmatpush1.msra.mxu0 0.0
  %2677 = vmatprep.subr.mxu0 0.0
  %2678 = vmatpush1.msra.mxu0 0.0
  %2679 = vmatprep.subr.mxu0 0.0
  %2680 = vmatpush1.msra.mxu0 0.0
  %2681 = vmatprep.subr.mxu0 0.0
  %2682 = vmatpush1.msra.mxu0 0.0
  %2683 = vmatprep.subr.mxu0 0.0
  %2684 = vmatpush1.msra.mxu0 0.0
  %2685 = vmatprep.subr.mxu0 0.0
  %2686 = vmatpush1.msra.mxu0 0.0
  %2687 = vmatprep.subr.mxu0 0.0
  %2688 = vmatpush1.msra.mxu0 0.0
  %2689 = vmatprep.subr.mxu0 0.0
  %2690 = vmatpush1.msra.mxu0 0.0
  %2691 = vmatprep.subr.mxu0 0.0
  %2692 = vmatpush1.msra.mxu0 0.0
  %2693 = vmatprep.subr.mxu0 0.0
  %2694 = vmatpush1.msra.mxu0 0.0
  %2695 = vmatprep.subr.mxu0 0.0
  %2696 = vmatpush1.msra.mxu0 0.0
  %2697 = vmatprep.subr.mxu0 0.0
  %2698 = vmatpush1.msra.mxu0 0.0
  %2699 = vmatprep.subr.mxu0 0.0
  %2700 = vmatpush1.msra.mxu0 0.0
  %2701 = vmatprep.subr.mxu0 0.0
  %2702 = vmatpush1.msra.mxu0 0.0
  %2703 = vmatprep.subr.mxu0 0.0
  %2704 = vmatpush1.msra.mxu0 0.0
  %2705 = vmatprep.subr.mxu0 0.0
  %2706 = vmatpush1.msra.mxu0 0.0
  %2707 = vmatprep.subr.mxu0 0.0
  %2708 = vmatpush1.msra.mxu0 0.0
  %2709 = vmatprep.subr.mxu0 0.0
  %2710 = vmatpush1.msra.mxu0 0.0
  %2711 = vmatprep.subr.mxu0 0.0
  %2712 = vmatpush1.msra.mxu0 0.0
  %2713 = vmatprep.subr.mxu0 0.0
  %2714 = vmatpush1.msra.mxu0 0.0
  %2715 = vmatprep.subr.mxu0 0.0
  %2716 = vmatpush1.msra.mxu0 0.0
  %2717 = vmatprep.subr.mxu0 0.0
  %2718 = vmatpush1.msra.mxu0 0.0
  %2719 = vmatprep.subr.mxu0 0.0
  %2720 = vmatpush1.msra.mxu0 0.0
  %2721 = vmatprep.subr.mxu0 0.0
  %2722 = vmatpush1.msra.mxu0 0.0
  %2723 = vmatprep.subr.mxu0 0.0
  %2724 = vmatpush1.msra.mxu0 0.0
  %2725 = vmatprep.subr.mxu0 0.0
  %2726 = vmatpush1.msra.mxu0 0.0
  %2727 = vmatprep.subr.mxu0 0.0
  %2728 = vmatpush1.msra.mxu0 0.0
  %2729 = vmatprep.subr.mxu0 0.0
  %2730 = vmatpush1.msra.mxu0 0.0
  %2731 = vmatprep.subr.mxu0 0.0
  %2732 = vmatpush1.msra.mxu0 0.0
  %2733 = vmatprep.subr.mxu0 0.0
  %2734 = vmatpush1.msra.mxu0 0.0
  %2735 = vmatprep.mubr.f32.mxu0 0.0
  %2736 = vmatmul.mubr.f32.gmra.mrb[0].mxu0 %v2667
  %v2737 = vpop.f32.mrb[0].mxu0
  %v2738 = vadd.f32 0.0, %v2737
  %v2739 = vpop.f32.mrb[0].mxu0
  %2740 = vdwg.mxu0
  %2741 = vst.msk [vmem:[#allocation2 + $0x8] sm:$0xff] %vm177, %v2738
  %2742 = vrot.lane.b32.xlu0 %v1753, 120
  %v2743 = vpop.permute.xlu0 %2742
  %2744 = vrot.lane.b32.xlu0 %v2572, 120
  %v2745 = vpop.permute.xlu0 %2744
  %2746 = vrot.lane.b32.xlu0 %v2571, 120
  %v2747 = vpop.permute.xlu0 %2746
  %v2748 = vsel %vm177, %v2743, 0
  %v2750 = vsel %vm177, %v2745, 0
  %v2752 = vsel %vm177, %v2747, 0
  %2754 = vmatprep.subr.mxu0 0.0
  %2755 = vmatpush1.xpose.msra.mxu0 %v2750
  %2756 = vmatprep.subr.mxu0 0.0
  %2757 = vmatpush1.xpose.msra.mxu0 %v2752
  %2758 = vmatprep.subr.mxu0 0.0
  %2759 = vmatpush1.xpose.msra.mxu0 0.0
  %2760 = vmatprep.subr.mxu0 0.0
  %2761 = vmatpush1.xpose.msra.mxu0 0.0
  %2762 = vmatprep.subr.mxu0 0.0
  %2763 = vmatpush1.xpose.msra.mxu0 0.0
  %2764 = vmatprep.subr.mxu0 0.0
  %2765 = vmatpush1.xpose.msra.mxu0 0.0
  %2766 = vmatprep.subr.mxu0 0.0
  %2767 = vmatpush1.xpose.msra.mxu0 0.0
  %2768 = vmatprep.subr.mxu0 0.0
  %2769 = vmatpush1.xpose.msra.mxu0 0.0
  %2770 = vmatprep.subr.mxu0 0.0
  %2771 = vmatpush1.xpose.msra.mxu0 0.0
  %2772 = vmatprep.subr.mxu0 0.0
  %2773 = vmatpush1.xpose.msra.mxu0 0.0
  %2774 = vmatprep.subr.mxu0 0.0
  %2775 = vmatpush1.xpose.msra.mxu0 0.0
  %2776 = vmatprep.subr.mxu0 0.0
  %2777 = vmatpush1.xpose.msra.mxu0 0.0
  %2778 = vmatprep.subr.mxu0 0.0
  %2779 = vmatpush1.xpose.msra.mxu0 0.0
  %2780 = vmatprep.subr.mxu0 0.0
  %2781 = vmatpush1.xpose.msra.mxu0 0.0
  %2782 = vmatprep.subr.mxu0 0.0
  %2783 = vmatpush1.xpose.msra.mxu0 0.0
  %2784 = vmatprep.subr.mxu0 0.0
  %2785 = vmatpush1.xpose.msra.mxu0 0.0
  %2786 = vmatprep.subr.mxu0 0.0
  %2787 = vmatpush1.xpose.msra.mxu0 0.0
  %2788 = vmatprep.subr.mxu0 0.0
  %2789 = vmatpush1.xpose.msra.mxu0 0.0
  %2790 = vmatprep.subr.mxu0 0.0
  %2791 = vmatpush1.xpose.msra.mxu0 0.0
  %2792 = vmatprep.subr.mxu0 0.0
  %2793 = vmatpush1.xpose.msra.mxu0 0.0
  %2794 = vmatprep.subr.mxu0 0.0
  %2795 = vmatpush1.xpose.msra.mxu0 0.0
  %2796 = vmatprep.subr.mxu0 0.0
  %2797 = vmatpush1.xpose.msra.mxu0 0.0
  %2798 = vmatprep.subr.mxu0 0.0
  %2799 = vmatpush1.xpose.msra.mxu0 0.0
  %2800 = vmatprep.subr.mxu0 0.0
  %2801 = vmatpush1.xpose.msra.mxu0 0.0
  %2802 = vmatprep.subr.mxu0 0.0
  %2803 = vmatpush1.xpose.msra.mxu0 0.0
  %2804 = vmatprep.subr.mxu0 0.0
  %2805 = vmatpush1.xpose.msra.mxu0 0.0
  %2806 = vmatprep.subr.mxu0 0.0
  %2807 = vmatpush1.xpose.msra.mxu0 0.0
  %2808 = vmatprep.subr.mxu0 0.0
  %2809 = vmatpush1.xpose.msra.mxu0 0.0
  %2810 = vmatprep.subr.mxu0 0.0
  %2811 = vmatpush1.xpose.msra.mxu0 0.0
  %2812 = vmatprep.subr.mxu0 0.0
  %2813 = vmatpush1.xpose.msra.mxu0 0.0
  %2814 = vmatprep.subr.mxu0 0.0
  %2815 = vmatpush1.xpose.msra.mxu0 0.0
  %2816 = vmatprep.subr.mxu0 0.0
  %2817 = vmatpush1.xpose.msra.mxu0 0.0
  %2818 = vmatprep.mubr.f32.mxu0 0.0
  %2819 = vmatmul.mubr.f32.gmra.mrb[0].mxu0 %v2748
  %v2820 = vpop.f32.mrb[0].mxu0
  %v2821 = vadd.f32 0.0, %v2820
  %v2822 = vpop.f32.mrb[0].mxu0
  %2823 = vdwg.mxu0
  %v2824 = vsel %vm1940, %v2821, -inf
  %2825 = vmax.xlane.f32.xlu0 %v2824
  %v2826 = vpop.xlane.xlu0 %2825
  %v2827 = vsub.f32 %v2821, %v2826
  %v2828 = vmul.f32 %v2827, 1.442695
  %v2829 = vpow.pop %v2828
  %v2830 = vsel %vm1940, %v2829, 0.0
  %2831 = vadd.xlane.f32.xlu0 %v2830
  %v2832 = vpop.xlane.xlu0 %2831
  %v2833 = vrcp.pop %v2832
  %v2834 = vmul.f32 %v2829, %v2833
  %2835 = vrot.lane.b32.xlu0 %v2572, 88
  %v2836 = vpop.permute.xlu0 %2835
  %2837 = vrot.lane.b32.xlu0 %v2571, 88
  %v2838 = vpop.permute.xlu0 %2837
  %v2841 = vsel %vm1940, %v2834, 0
  %v2843 = vsel %vm1960, %v2838, 0
  %2845 = vmatprep.subr.mxu0 0.0
  %2846 = vmatpush1.msra.mxu0 %v2836
  %2847 = vmatprep.subr.mxu0 0.0
  %2848 = vmatpush1.msra.mxu0 %v2843
  %2849 = vmatprep.subr.mxu0 0.0
  %2850 = vmatpush1.msra.mxu0 0.0
  %2851 = vmatprep.subr.mxu0 0.0
  %2852 = vmatpush1.msra.mxu0 0.0
  %2853 = vmatprep.subr.mxu0 0.0
  %2854 = vmatpush1.msra.mxu0 0.0
  %2855 = vmatprep.subr.mxu0 0.0
  %2856 = vmatpush1.msra.mxu0 0.0
  %2857 = vmatprep.subr.mxu0 0.0
  %2858 = vmatpush1.msra.mxu0 0.0
  %2859 = vmatprep.subr.mxu0 0.0
  %2860 = vmatpush1.msra.mxu0 0.0
  %2861 = vmatprep.subr.mxu0 0.0
  %2862 = vmatpush1.msra.mxu0 0.0
  %2863 = vmatprep.subr.mxu0 0.0
  %2864 = vmatpush1.msra.mxu0 0.0
  %2865 = vmatprep.subr.mxu0 0.0
  %2866 = vmatpush1.msra.mxu0 0.0
  %2867 = vmatprep.subr.mxu0 0.0
  %2868 = vmatpush1.msra.mxu0 0.0
  %2869 = vmatprep.subr.mxu0 0.0
  %2870 = vmatpush1.msra.mxu0 0.0
  %2871 = vmatprep.subr.mxu0 0.0
  %2872 = vmatpush1.msra.mxu0 0.0
  %2873 = vmatprep.subr.mxu0 0.0
  %2874 = vmatpush1.msra.mxu0 0.0
  %2875 = vmatprep.subr.mxu0 0.0
  %2876 = vmatpush1.msra.mxu0 0.0
  %2877 = vmatprep.subr.mxu0 0.0
  %2878 = vmatpush1.msra.mxu0 0.0
  %2879 = vmatprep.subr.mxu0 0.0
  %2880 = vmatpush1.msra.mxu0 0.0
  %2881 = vmatprep.subr.mxu0 0.0
  %2882 = vmatpush1.msra.mxu0 0.0
  %2883 = vmatprep.subr.mxu0 0.0
  %2884 = vmatpush1.msra.mxu0 0.0
  %2885 = vmatprep.subr.mxu0 0.0
  %2886 = vmatpush1.msra.mxu0 0.0
  %2887 = vmatprep.subr.mxu0 0.0
  %2888 = vmatpush1.msra.mxu0 0.0
  %2889 = vmatprep.subr.mxu0 0.0
  %2890 = vmatpush1.msra.mxu0 0.0
  %2891 = vmatprep.subr.mxu0 0.0
  %2892 = vmatpush1.msra.mxu0 0.0
  %2893 = vmatprep.subr.mxu0 0.0
  %2894 = vmatpush1.msra.mxu0 0.0
  %2895 = vmatprep.subr.mxu0 0.0
  %2896 = vmatpush1.msra.mxu0 0.0
  %2897 = vmatprep.subr.mxu0 0.0
  %2898 = vmatpush1.msra.mxu0 0.0
  %2899 = vmatprep.subr.mxu0 0.0
  %2900 = vmatpush1.msra.mxu0 0.0
  %2901 = vmatprep.subr.mxu0 0.0
  %2902 = vmatpush1.msra.mxu0 0.0
  %2903 = vmatprep.subr.mxu0 0.0
  %2904 = vmatpush1.msra.mxu0 0.0
  %2905 = vmatprep.subr.mxu0 0.0
  %2906 = vmatpush1.msra.mxu0 0.0
  %2907 = vmatprep.subr.mxu0 0.0
  %2908 = vmatpush1.msra.mxu0 0.0
  %2909 = vmatprep.mubr.f32.mxu0 0.0
  %2910 = vmatmul.mubr.f32.gmra.mrb[0].mxu0 %v2841
  %v2911 = vpop.f32.mrb[0].mxu0
  %v2912 = vadd.f32 0.0, %v2911
  %v2913 = vpop.f32.mrb[0].mxu0
  %2914 = vdwg.mxu0
  %2916 = vrot.lane.b32.xlu0 %v2912, 8
  %v2917 = vpop.permute.xlu0 %2916
  %2919 = vst.msk [vmem:[#allocation2 + $0x8] sm:$0xff] %vm509, %v2917
  %2920 = vrot.lane.b32.xlu0 %v1753, 112
  %v2921 = vpop.permute.xlu0 %2920
  %2922 = vrot.lane.b32.xlu0 %v2572, 112
  %v2923 = vpop.permute.xlu0 %2922
  %2924 = vrot.lane.b32.xlu0 %v2571, 112
  %v2925 = vpop.permute.xlu0 %2924
  %v2926 = vsel %vm177, %v2921, 0
  %v2928 = vsel %vm177, %v2923, 0
  %v2930 = vsel %vm177, %v2925, 0
  %2932 = vmatprep.subr.mxu0 0.0
  %2933 = vmatpush1.xpose.msra.mxu0 %v2928
  %2934 = vmatprep.subr.mxu0 0.0
  %2935 = vmatpush1.xpose.msra.mxu0 %v2930
  %2936 = vmatprep.subr.mxu0 0.0
  %2937 = vmatpush1.xpose.msra.mxu0 0.0
  %2938 = vmatprep.subr.mxu0 0.0
  %2939 = vmatpush1.xpose.msra.mxu0 0.0
  %2940 = vmatprep.subr.mxu0 0.0
  %2941 = vmatpush1.xpose.msra.mxu0 0.0
  %2942 = vmatprep.subr.mxu0 0.0
  %2943 = vmatpush1.xpose.msra.mxu0 0.0
  %2944 = vmatprep.subr.mxu0 0.0
  %2945 = vmatpush1.xpose.msra.mxu0 0.0
  %2946 = vmatprep.subr.mxu0 0.0
  %2947 = vmatpush1.xpose.msra.mxu0 0.0
  %2948 = vmatprep.subr.mxu0 0.0
  %2949 = vmatpush1.xpose.msra.mxu0 0.0
  %2950 = vmatprep.subr.mxu0 0.0
  %2951 = vmatpush1.xpose.msra.mxu0 0.0
  %2952 = vmatprep.subr.mxu0 0.0
  %2953 = vmatpush1.xpose.msra.mxu0 0.0
  %2954 = vmatprep.subr.mxu0 0.0
  %2955 = vmatpush1.xpose.msra.mxu0 0.0
  %2956 = vmatprep.subr.mxu0 0.0
  %2957 = vmatpush1.xpose.msra.mxu0 0.0
  %2958 = vmatprep.subr.mxu0 0.0
  %2959 = vmatpush1.xpose.msra.mxu0 0.0
  %2960 = vmatprep.subr.mxu0 0.0
  %2961 = vmatpush1.xpose.msra.mxu0 0.0
  %2962 = vmatprep.subr.mxu0 0.0
  %2963 = vmatpush1.xpose.msra.mxu0 0.0
  %2964 = vmatprep.subr.mxu0 0.0
  %2965 = vmatpush1.xpose.msra.mxu0 0.0
  %2966 = vmatprep.subr.mxu0 0.0
  %2967 = vmatpush1.xpose.msra.mxu0 0.0
  %2968 = vmatprep.subr.mxu0 0.0
  %2969 = vmatpush1.xpose.msra.mxu0 0.0
  %2970 = vmatprep.subr.mxu0 0.0
  %2971 = vmatpush1.xpose.msra.mxu0 0.0
  %2972 = vmatprep.subr.mxu0 0.0
  %2973 = vmatpush1.xpose.msra.mxu0 0.0
  %2974 = vmatprep.subr.mxu0 0.0
  %2975 = vmatpush1.xpose.msra.mxu0 0.0
  %2976 = vmatprep.subr.mxu0 0.0
  %2977 = vmatpush1.xpose.msra.mxu0 0.0
  %2978 = vmatprep.subr.mxu0 0.0
  %2979 = vmatpush1.xpose.msra.mxu0 0.0
  %2980 = vmatprep.subr.mxu0 0.0
  %2981 = vmatpush1.xpose.msra.mxu0 0.0
  %2982 = vmatprep.subr.mxu0 0.0
  %2983 = vmatpush1.xpose.msra.mxu0 0.0
  %2984 = vmatprep.subr.mxu0 0.0
  %2985 = vmatpush1.xpose.msra.mxu0 0.0
  %2986 = vmatprep.subr.mxu0 0.0
  %2987 = vmatpush1.xpose.msra.mxu0 0.0
  %2988 = vmatprep.subr.mxu0 0.0
  %2989 = vmatpush1.xpose.msra.mxu0 0.0
  %2990 = vmatprep.subr.mxu0 0.0
  %2991 = vmatpush1.xpose.msra.mxu0 0.0
  %2992 = vmatprep.subr.mxu0 0.0
  %2993 = vmatpush1.xpose.msra.mxu0 0.0
  %2994 = vmatprep.subr.mxu0 0.0
  %2995 = vmatpush1.xpose.msra.mxu0 0.0
  %2996 = vmatprep.mubr.f32.mxu0 0.0
  %2997 = vmatmul.mubr.f32.gmra.mrb[0].mxu0 %v2926
  %v2998 = vpop.f32.mrb[0].mxu0
  %v2999 = vadd.f32 0.0, %v2998
  %v3000 = vpop.f32.mrb[0].mxu0
  %3001 = vdwg.mxu0
  %v3002 = vsel %vm1940, %v2999, -inf
  %3003 = vmax.xlane.f32.xlu0 %v3002
  %v3004 = vpop.xlane.xlu0 %3003
  %v3005 = vsub.f32 %v2999, %v3004
  %v3006 = vmul.f32 %v3005, 1.442695
  %v3007 = vpow.pop %v3006
  %v3008 = vsel %vm1940, %v3007, 0.0
  %3009 = vadd.xlane.f32.xlu0 %v3008
  %v3010 = vpop.xlane.xlu0 %3009
  %v3011 = vrcp.pop %v3010
  %v3012 = vmul.f32 %v3007, %v3011
  %3013 = vrot.lane.b32.xlu0 %v2572, 80
  %v3014 = vpop.permute.xlu0 %3013
  %3015 = vrot.lane.b32.xlu0 %v2571, 80
  %v3016 = vpop.permute.xlu0 %3015
  %v3019 = vsel %vm1940, %v3012, 0
  %v3021 = vsel %vm1960, %v3016, 0
  %3023 = vmatprep.subr.mxu0 0.0
  %3024 = vmatpush1.msra.mxu0 %v3014
  %3025 = vmatprep.subr.mxu0 0.0
  %3026 = vmatpush1.msra.mxu0 %v3021
  %3027 = vmatprep.subr.mxu0 0.0
  %3028 = vmatpush1.msra.mxu0 0.0
  %3029 = vmatprep.subr.mxu0 0.0
  %3030 = vmatpush1.msra.mxu0 0.0
  %3031 = vmatprep.subr.mxu0 0.0
  %3032 = vmatpush1.msra.mxu0 0.0
  %3033 = vmatprep.subr.mxu0 0.0
  %3034 = vmatpush1.msra.mxu0 0.0
  %3035 = vmatprep.subr.mxu0 0.0
  %3036 = vmatpush1.msra.mxu0 0.0
  %3037 = vmatprep.subr.mxu0 0.0
  %3038 = vmatpush1.msra.mxu0 0.0
  %3039 = vmatprep.subr.mxu0 0.0
  %3040 = vmatpush1.msra.mxu0 0.0
  %3041 = vmatprep.subr.mxu0 0.0
  %3042 = vmatpush1.msra.mxu0 0.0
  %3043 = vmatprep.subr.mxu0 0.0
  %3044 = vmatpush1.msra.mxu0 0.0
  %3045 = vmatprep.subr.mxu0 0.0
  %3046 = vmatpush1.msra.mxu0 0.0
  %3047 = vmatprep.subr.mxu0 0.0
  %3048 = vmatpush1.msra.mxu0 0.0
  %3049 = vmatprep.subr.mxu0 0.0
  %3050 = vmatpush1.msra.mxu0 0.0
  %3051 = vmatprep.subr.mxu0 0.0
  %3052 = vmatpush1.msra.mxu0 0.0
  %3053 = vmatprep.subr.mxu0 0.0
  %3054 = vmatpush1.msra.mxu0 0.0
  %3055 = vmatprep.subr.mxu0 0.0
  %3056 = vmatpush1.msra.mxu0 0.0
  %3057 = vmatprep.subr.mxu0 0.0
  %3058 = vmatpush1.msra.mxu0 0.0
  %3059 = vmatprep.subr.mxu0 0.0
  %3060 = vmatpush1.msra.mxu0 0.0
  %3061 = vmatprep.subr.mxu0 0.0
  %3062 = vmatpush1.msra.mxu0 0.0
  %3063 = vmatprep.subr.mxu0 0.0
  %3064 = vmatpush1.msra.mxu0 0.0
  %3065 = vmatprep.subr.mxu0 0.0
  %3066 = vmatpush1.msra.mxu0 0.0
  %3067 = vmatprep.subr.mxu0 0.0
  %3068 = vmatpush1.msra.mxu0 0.0
  %3069 = vmatprep.subr.mxu0 0.0
  %3070 = vmatpush1.msra.mxu0 0.0
  %3071 = vmatprep.subr.mxu0 0.0
  %3072 = vmatpush1.msra.mxu0 0.0
  %3073 = vmatprep.subr.mxu0 0.0
  %3074 = vmatpush1.msra.mxu0 0.0
  %3075 = vmatprep.subr.mxu0 0.0
  %3076 = vmatpush1.msra.mxu0 0.0
  %3077 = vmatprep.subr.mxu0 0.0
  %3078 = vmatpush1.msra.mxu0 0.0
  %3079 = vmatprep.subr.mxu0 0.0
  %3080 = vmatpush1.msra.mxu0 0.0
  %3081 = vmatprep.subr.mxu0 0.0
  %3082 = vmatpush1.msra.mxu0 0.0
  %3083 = vmatprep.subr.mxu0 0.0
  %3084 = vmatpush1.msra.mxu0 0.0
  %3085 = vmatprep.subr.mxu0 0.0
  %3086 = vmatpush1.msra.mxu0 0.0
  %3087 = vmatprep.mubr.f32.mxu0 0.0
  %3088 = vmatmul.mubr.f32.gmra.mrb[0].mxu0 %v3019
  %v3089 = vpop.f32.mrb[0].mxu0
  %v3090 = vadd.f32 0.0, %v3089
  %v3091 = vpop.f32.mrb[0].mxu0
  %3092 = vdwg.mxu0
  %3094 = vrot.lane.b32.xlu0 %v3090, 16
  %v3095 = vpop.permute.xlu0 %3094
  %3097 = vst.msk [vmem:[#allocation2 + $0x8] sm:$0xff] %vm680, %v3095
  %3098 = vrot.lane.b32.xlu0 %v1753, 104
  %v3099 = vpop.permute.xlu0 %3098
  %3100 = vrot.lane.b32.xlu0 %v2572, 104
  %v3101 = vpop.permute.xlu0 %3100
  %3102 = vrot.lane.b32.xlu0 %v2571, 104
  %v3103 = vpop.permute.xlu0 %3102
  %v3104 = vsel %vm177, %v3099, 0
  %v3106 = vsel %vm177, %v3101, 0
  %v3108 = vsel %vm177, %v3103, 0
  %3110 = vmatprep.subr.mxu0 0.0
  %3111 = vmatpush1.xpose.msra.mxu0 %v3106
  %3112 = vmatprep.subr.mxu0 0.0
  %3113 = vmatpush1.xpose.msra.mxu0 %v3108
  %3114 = vmatprep.subr.mxu0 0.0
  %3115 = vmatpush1.xpose.msra.mxu0 0.0
  %3116 = vmatprep.subr.mxu0 0.0
  %3117 = vmatpush1.xpose.msra.mxu0 0.0
  %3118 = vmatprep.subr.mxu0 0.0
  %3119 = vmatpush1.xpose.msra.mxu0 0.0
  %3120 = vmatprep.subr.mxu0 0.0
  %3121 = vmatpush1.xpose.msra.mxu0 0.0
  %3122 = vmatprep.subr.mxu0 0.0
  %3123 = vmatpush1.xpose.msra.mxu0 0.0
  %3124 = vmatprep.subr.mxu0 0.0
  %3125 = vmatpush1.xpose.msra.mxu0 0.0
  %3126 = vmatprep.subr.mxu0 0.0
  %3127 = vmatpush1.xpose.msra.mxu0 0.0
  %3128 = vmatprep.subr.mxu0 0.0
  %3129 = vmatpush1.xpose.msra.mxu0 0.0
  %3130 = vmatprep.subr.mxu0 0.0
  %3131 = vmatpush1.xpose.msra.mxu0 0.0
  %3132 = vmatprep.subr.mxu0 0.0
  %3133 = vmatpush1.xpose.msra.mxu0 0.0
  %3134 = vmatprep.subr.mxu0 0.0
  %3135 = vmatpush1.xpose.msra.mxu0 0.0
  %3136 = vmatprep.subr.mxu0 0.0
  %3137 = vmatpush1.xpose.msra.mxu0 0.0
  %3138 = vmatprep.subr.mxu0 0.0
  %3139 = vmatpush1.xpose.msra.mxu0 0.0
  %3140 = vmatprep.subr.mxu0 0.0
  %3141 = vmatpush1.xpose.msra.mxu0 0.0
  %3142 = vmatprep.subr.mxu0 0.0
  %3143 = vmatpush1.xpose.msra.mxu0 0.0
  %3144 = vmatprep.subr.mxu0 0.0
  %3145 = vmatpush1.xpose.msra.mxu0 0.0
  %3146 = vmatprep.subr.mxu0 0.0
  %3147 = vmatpush1.xpose.msra.mxu0 0.0
  %3148 = vmatprep.subr.mxu0 0.0
  %3149 = vmatpush1.xpose.msra.mxu0 0.0
  %3150 = vmatprep.subr.mxu0 0.0
  %3151 = vmatpush1.xpose.msra.mxu0 0.0
  %3152 = vmatprep.subr.mxu0 0.0
  %3153 = vmatpush1.xpose.msra.mxu0 0.0
  %3154 = vmatprep.subr.mxu0 0.0
  %3155 = vmatpush1.xpose.msra.mxu0 0.0
  %3156 = vmatprep.subr.mxu0 0.0
  %3157 = vmatpush1.xpose.msra.mxu0 0.0
  %3158 = vmatprep.subr.mxu0 0.0
  %3159 = vmatpush1.xpose.msra.mxu0 0.0
  %3160 = vmatprep.subr.mxu0 0.0
  %3161 = vmatpush1.xpose.msra.mxu0 0.0
  %3162 = vmatprep.subr.mxu0 0.0
  %3163 = vmatpush1.xpose.msra.mxu0 0.0
  %3164 = vmatprep.subr.mxu0 0.0
  %3165 = vmatpush1.xpose.msra.mxu0 0.0
  %3166 = vmatprep.subr.mxu0 0.0
  %3167 = vmatpush1.xpose.msra.mxu0 0.0
  %3168 = vmatprep.subr.mxu0 0.0
  %3169 = vmatpush1.xpose.msra.mxu0 0.0
  %3170 = vmatprep.subr.mxu0 0.0
  %3171 = vmatpush1.xpose.msra.mxu0 0.0
  %3172 = vmatprep.subr.mxu0 0.0
  %3173 = vmatpush1.xpose.msra.mxu0 0.0
  %3174 = vmatprep.mubr.f32.mxu0 0.0
  %3175 = vmatmul.mubr.f32.gmra.mrb[0].mxu0 %v3104
  %v3176 = vpop.f32.mrb[0].mxu0
  %v3177 = vadd.f32 0.0, %v3176
  %v3178 = vpop.f32.mrb[0].mxu0
  %3179 = vdwg.mxu0
  %v3180 = vsel %vm1940, %v3177, -inf
  %3181 = vmax.xlane.f32.xlu0 %v3180
  %v3182 = vpop.xlane.xlu0 %3181
  %v3183 = vsub.f32 %v3177, %v3182
  %v3184 = vmul.f32 %v3183, 1.442695
  %v3185 = vpow.pop %v3184
  %v3186 = vsel %vm1940, %v3185, 0.0
  %3187 = vadd.xlane.f32.xlu0 %v3186
  %v3188 = vpop.xlane.xlu0 %3187
  %v3189 = vrcp.pop %v3188
  %v3190 = vmul.f32 %v3185, %v3189
  %3191 = vrot.lane.b32.xlu0 %v2572, 72
  %v3192 = vpop.permute.xlu0 %3191
  %3193 = vrot.lane.b32.xlu0 %v2571, 72
  %v3194 = vpop.permute.xlu0 %3193
  %v3197 = vsel %vm1940, %v3190, 0
  %v3199 = vsel %vm1960, %v3194, 0
  %3201 = vmatprep.subr.mxu0 0.0
  %3202 = vmatpush1.msra.mxu0 %v3192
  %3203 = vmatprep.subr.mxu0 0.0
  %3204 = vmatpush1.msra.mxu0 %v3199
  %3205 = vmatprep.subr.mxu0 0.0
  %3206 = vmatpush1.msra.mxu0 0.0
  %3207 = vmatprep.subr.mxu0 0.0
  %3208 = vmatpush1.msra.mxu0 0.0
  %3209 = vmatprep.subr.mxu0 0.0
  %3210 = vmatpush1.msra.mxu0 0.0
  %3211 = vmatprep.subr.mxu0 0.0
  %3212 = vmatpush1.msra.mxu0 0.0
  %3213 = vmatprep.subr.mxu0 0.0
  %3214 = vmatpush1.msra.mxu0 0.0
  %3215 = vmatprep.subr.mxu0 0.0
  %3216 = vmatpush1.msra.mxu0 0.0
  %3217 = vmatprep.subr.mxu0 0.0
  %3218 = vmatpush1.msra.mxu0 0.0
  %3219 = vmatprep.subr.mxu0 0.0
  %3220 = vmatpush1.msra.mxu0 0.0
  %3221 = vmatprep.subr.mxu0 0.0
  %3222 = vmatpush1.msra.mxu0 0.0
  %3223 = vmatprep.subr.mxu0 0.0
  %3224 = vmatpush1.msra.mxu0 0.0
  %3225 = vmatprep.subr.mxu0 0.0
  %3226 = vmatpush1.msra.mxu0 0.0
  %3227 = vmatprep.subr.mxu0 0.0
  %3228 = vmatpush1.msra.mxu0 0.0
  %3229 = vmatprep.subr.mxu0 0.0
  %3230 = vmatpush1.msra.mxu0 0.0
  %3231 = vmatprep.subr.mxu0 0.0
  %3232 = vmatpush1.msra.mxu0 0.0
  %3233 = vmatprep.subr.mxu0 0.0
  %3234 = vmatpush1.msra.mxu0 0.0
  %3235 = vmatprep.subr.mxu0 0.0
  %3236 = vmatpush1.msra.mxu0 0.0
  %3237 = vmatprep.subr.mxu0 0.0
  %3238 = vmatpush1.msra.mxu0 0.0
  %3239 = vmatprep.subr.mxu0 0.0
  %3240 = vmatpush1.msra.mxu0 0.0
  %3241 = vmatprep.subr.mxu0 0.0
  %3242 = vmatpush1.msra.mxu0 0.0
  %3243 = vmatprep.subr.mxu0 0.0
  %3244 = vmatpush1.msra.mxu0 0.0
  %3245 = vmatprep.subr.mxu0 0.0
  %3246 = vmatpush1.msra.mxu0 0.0
  %3247 = vmatprep.subr.mxu0 0.0
  %3248 = vmatpush1.msra.mxu0 0.0
  %3249 = vmatprep.subr.mxu0 0.0
  %3250 = vmatpush1.msra.mxu0 0.0
  %3251 = vmatprep.subr.mxu0 0.0
  %3252 = vmatpush1.msra.mxu0 0.0
  %3253 = vmatprep.subr.mxu0 0.0
  %3254 = vmatpush1.msra.mxu0 0.0
  %3255 = vmatprep.subr.mxu0 0.0
  %3256 = vmatpush1.msra.mxu0 0.0
  %3257 = vmatprep.subr.mxu0 0.0
  %3258 = vmatpush1.msra.mxu0 0.0
  %3259 = vmatprep.subr.mxu0 0.0
  %3260 = vmatpush1.msra.mxu0 0.0
  %3261 = vmatprep.subr.mxu0 0.0
  %3262 = vmatpush1.msra.mxu0 0.0
  %3263 = vmatprep.subr.mxu0 0.0
  %3264 = vmatpush1.msra.mxu0 0.0
  %3265 = vmatprep.mubr.f32.mxu0 0.0
  %3266 = vmatmul.mubr.f32.gmra.mrb[0].mxu0 %v3197
  %v3267 = vpop.f32.mrb[0].mxu0
  %v3268 = vadd.f32 0.0, %v3267
  %v3269 = vpop.f32.mrb[0].mxu0
  %3270 = vdwg.mxu0
  %3272 = vrot.lane.b32.xlu0 %v3268, 24
  %v3273 = vpop.permute.xlu0 %3272
  %3275 = vst.msk [vmem:[#allocation2 + $0x8] sm:$0xff] %vm851, %v3273
  %v3276 = vld [vmem:[#allocation2] sm:$0xff]
  %v3277 = vld [vmem:[#allocation2 + $0x8] sm:$0xff]
  %v3279 = vlaneseq
  %v3280 = vshrl.u32 %v3279, 7
  %v3281 = vsub.s32 0, %v3280
  %v3282 = vrot.slane %v1860, %v3281
  %v3285 = vsel %vm87, %v3276, 0
  %v3288 = vsel %vm87, %v3277, 0
  %3290 = vmatprep.subr.mxu0 0.0
  %3291 = vmatpush1.msra.mxu0 %v1856
  %3292 = vmatprep.subr.mxu0 0.0
  %3293 = vmatpush1.msra.mxu0 %v1857
  %3294 = vmatprep.subr.mxu0 0.0
  %3295 = vmatpush1.msra.mxu0 %v1858
  %3296 = vmatprep.subr.mxu0 0.0
  %3297 = vmatpush1.msra.mxu0 %v1859
  %3298 = vmatprep.subr.mxu0 0.0
  %3299 = vmatpush1.msra.mxu0 0.0
  %3300 = vmatprep.subr.mxu0 0.0
  %3301 = vmatpush1.msra.mxu0 0.0
  %3302 = vmatprep.subr.mxu0 0.0
  %3303 = vmatpush1.msra.mxu0 0.0
  %3304 = vmatprep.subr.mxu0 0.0
  %3305 = vmatpush1.msra.mxu0 0.0
  %3306 = vmatprep.subr.mxu0 0.0
  %3307 = vmatpush1.msra.mxu0 0.0
  %3308 = vmatprep.subr.mxu0 0.0
  %3309 = vmatpush1.msra.mxu0 0.0
  %3310 = vmatprep.subr.mxu0 0.0
  %3311 = vmatpush1.msra.mxu0 0.0
  %3312 = vmatprep.subr.mxu0 0.0
  %3313 = vmatpush1.msra.mxu0 0.0
  %3314 = vmatprep.subr.mxu0 0.0
  %3315 = vmatpush1.msra.mxu0 0.0
  %3316 = vmatprep.subr.mxu0 0.0
  %3317 = vmatpush1.msra.mxu0 0.0
  %3318 = vmatprep.subr.mxu0 0.0
  %3319 = vmatpush1.msra.mxu0 0.0
  %3320 = vmatprep.subr.mxu0 0.0
  %3321 = vmatpush1.msra.mxu0 0.0
  %3322 = vmatprep.subr.mxu0 0.0
  %3323 = vmatpush1.msra.mxu0 0.0
  %3324 = vmatprep.subr.mxu0 0.0
  %3325 = vmatpush1.msra.mxu0 0.0
  %3326 = vmatprep.subr.mxu0 0.0
  %3327 = vmatpush1.msra.mxu0 0.0
  %3328 = vmatprep.subr.mxu0 0.0
  %3329 = vmatpush1.msra.mxu0 0.0
  %3330 = vmatprep.subr.mxu0 0.0
  %3331 = vmatpush1.msra.mxu0 0.0
  %3332 = vmatprep.subr.mxu0 0.0
  %3333 = vmatpush1.msra.mxu0 0.0
  %3334 = vmatprep.subr.mxu0 0.0
  %3335 = vmatpush1.msra.mxu0 0.0
  %3336 = vmatprep.subr.mxu0 0.0
  %3337 = vmatpush1.msra.mxu0 0.0
  %3338 = vmatprep.subr.mxu0 0.0
  %3339 = vmatpush1.msra.mxu0 0.0
  %3340 = vmatprep.subr.mxu0 0.0
  %3341 = vmatpush1.msra.mxu0 0.0
  %3342 = vmatprep.subr.mxu0 0.0
  %3343 = vmatpush1.msra.mxu0 0.0
  %3344 = vmatprep.subr.mxu0 0.0
  %3345 = vmatpush1.msra.mxu0 0.0
  %3346 = vmatprep.subr.mxu0 0.0
  %3347 = vmatpush1.msra.mxu0 0.0
  %3348 = vmatprep.subr.mxu0 0.0
  %3349 = vmatpush1.msra.mxu0 0.0
  %3350 = vmatprep.subr.mxu0 0.0
  %3351 = vmatpush1.msra.mxu0 0.0
  %3352 = vmatprep.subr.mxu0 0.0
  %3353 = vmatpush1.msra.mxu0 0.0
  %3354 = vmatprep.mubr.f32.mxu0 0.0
  %3355 = vmatmul.mubr.f32.gmra.mrb[0].mxu0 %v3285
  %v3356 = vpop.f32.mrb[0].mxu0
  %v3357 = vadd.f32 %v3282, %v3356
  %v3358 = vpop.f32.mrb[0].mxu0
  %3359 = vmatprep.mubr.f32.mxu0 0.0
  %3360 = vmatmul.mubr.f32.gmra.mrb[0].mxu0 %v3288
  %v3361 = vpop.f32.mrb[0].mxu0
  %v3362 = vadd.f32 %v3282, %v3361
  %v3363 = vpop.f32.mrb[0].mxu0
  %3364 = vdwg.mxu0
  %v3365 = vld [vmem:[%s14] sm:$0x1]
  %v3366 = vld [vmem:[%s15] sm:$0x1]
  %v3367 = vsel %vm87, %v3357, 0.0
  %3368 = vadd.xlane.f32.xlu0 %v3367
  %v3369 = vpop.xlane.xlu0 %3368
  %v3370 = vsel %vm87, %v3362, 0.0
  %3371 = vadd.xlane.f32.xlu0 %v3370
  %v3372 = vpop.xlane.xlu0 %3371
  %v3373 = vmul.f32 %v3369, %v1625
  %v3374 = vmul.f32 %v3372, %v1625
  %v3375 = vsub.f32 %v3357, %v3373
  %v3376 = vsub.f32 %v3362, %v3374
  %v3377 = vmul.f32 %v3375, %v3375
  %v3378 = vmul.f32 %v3376, %v3376
  %v3379 = vsel %vm87, %v3377, 0.0
  %3380 = vadd.xlane.f32.xlu0 %v3379
  %v3381 = vpop.xlane.xlu0 %3380
  %v3382 = vsel %vm87, %v3378, 0.0
  %3383 = vadd.xlane.f32.xlu0 %v3382
  %v3384 = vpop.xlane.xlu0 %3383
  %v3385 = vmul.f32 %v3381, %v1625
  %v3386 = vmul.f32 %v3384, %v1625
  %v3387 = vadd.f32 %v3385, 1e-05
  %v3388 = vadd.f32 %v3386, 1e-05
  %v3389 = vrsqrt.pop %v3387
  %v3390 = vrsqrt.pop %v3388
  %v3391 = vmul.f32 %v3375, %v3389
  %v3392 = vmul.f32 %v3376, %v3390
  %v3394 = vlaneseq
  %v3395 = vshrl.u32 %v3394, 7
  %v3396 = vsub.s32 0, %v3395
  %v3397 = vrot.slane %v3365, %v3396
  %v3399 = vmul.f32 %v3391, %v3397
  %v3400 = vmul.f32 %v3392, %v3397
  %v3402 = vlaneseq
  %v3403 = vshrl.u32 %v3402, 7
  %v3404 = vsub.s32 0, %v3403
  %v3405 = vrot.slane %v3366, %v3404
  %v3407 = vadd.f32 %v3399, %v3405
  %v3408 = vadd.f32 %v3400, %v3405
  %v3409 = vadd.f32 %v1662, %v3407
  %v3410 = vadd.f32 %v1663, %v3408
  %v3411 = vld [vmem:[%s16] sm:$0xff]
  %v3412 = vld [vmem:[%s16 + $0x8] sm:$0xff]
  %v3413 = vld [vmem:[%s16 + $0x10] sm:$0xff]
  %v3414 = vld [vmem:[%s16 + $0x18] sm:$0xff]
  %v3415 = vld [vmem:[%s17] sm:$0x1]
  %v3417 = vlaneseq
  %v3418 = vshrl.u32 %v3417, 7
  %v3419 = vsub.s32 0, %v3418
  %v3420 = vrot.slane %v3415, %v3419
  %v3423 = vsel %vm87, %v3409, 0
  %v3426 = vsel %vm87, %v3410, 0
  %3428 = vmatprep.subr.mxu0 0.0
  %3429 = vmatpush1.msra.mxu0 %v3411
  %3430 = vmatprep.subr.mxu0 0.0
  %3431 = vmatpush1.msra.mxu0 %v3412
  %3432 = vmatprep.subr.mxu0 0.0
  %3433 = vmatpush1.msra.mxu0 %v3413
  %3434 = vmatprep.subr.mxu0 0.0
  %3435 = vmatpush1.msra.mxu0 %v3414
  %3436 = vmatprep.subr.mxu0 0.0
  %3437 = vmatpush1.msra.mxu0 0.0
  %3438 = vmatprep.subr.mxu0 0.0
  %3439 = vmatpush1.msra.mxu0 0.0
  %3440 = vmatprep.subr.mxu0 0.0
  %3441 = vmatpush1.msra.mxu0 0.0
  %3442 = vmatprep.subr.mxu0 0.0
  %3443 = vmatpush1.msra.mxu0 0.0
  %3444 = vmatprep.subr.mxu0 0.0
  %3445 = vmatpush1.msra.mxu0 0.0
  %3446 = vmatprep.subr.mxu0 0.0
  %3447 = vmatpush1.msra.mxu0 0.0
  %3448 = vmatprep.subr.mxu0 0.0
  %3449 = vmatpush1.msra.mxu0 0.0
  %3450 = vmatprep.subr.mxu0 0.0
  %3451 = vmatpush1.msra.mxu0 0.0
  %3452 = vmatprep.subr.mxu0 0.0
  %3453 = vmatpush1.msra.mxu0 0.0
  %3454 = vmatprep.subr.mxu0 0.0
  %3455 = vmatpush1.msra.mxu0 0.0
  %3456 = vmatprep.subr.mxu0 0.0
  %3457 = vmatpush1.msra.mxu0 0.0
  %3458 = vmatprep.subr.mxu0 0.0
  %3459 = vmatpush1.msra.mxu0 0.0
  %3460 = vmatprep.subr.mxu0 0.0
  %3461 = vmatpush1.msra.mxu0 0.0
  %3462 = vmatprep.subr.mxu0 0.0
  %3463 = vmatpush1.msra.mxu0 0.0
  %3464 = vmatprep.subr.mxu0 0.0
  %3465 = vmatpush1.msra.mxu0 0.0
  %3466 = vmatprep.subr.mxu0 0.0
  %3467 = vmatpush1.msra.mxu0 0.0
  %3468 = vmatprep.subr.mxu0 0.0
  %3469 = vmatpush1.msra.mxu0 0.0
  %3470 = vmatprep.subr.mxu0 0.0
  %3471 = vmatpush1.msra.mxu0 0.0
  %3472 = vmatprep.subr.mxu0 0.0
  %3473 = vmatpush1.msra.mxu0 0.0
  %3474 = vmatprep.subr.mxu0 0.0
  %3475 = vmatpush1.msra.mxu0 0.0
  %3476 = vmatprep.subr.mxu0 0.0
  %3477 = vmatpush1.msra.mxu0 0.0
  %3478 = vmatprep.subr.mxu0 0.0
  %3479 = vmatpush1.msra.mxu0 0.0
  %3480 = vmatprep.subr.mxu0 0.0
  %3481 = vmatpush1.msra.mxu0 0.0
  %3482 = vmatprep.subr.mxu0 0.0
  %3483 = vmatpush1.msra.mxu0 0.0
  %3484 = vmatprep.subr.mxu0 0.0
  %3485 = vmatpush1.msra.mxu0 0.0
  %3486 = vmatprep.subr.mxu0 0.0
  %3487 = vmatpush1.msra.mxu0 0.0
  %3488 = vmatprep.subr.mxu0 0.0
  %3489 = vmatpush1.msra.mxu0 0.0
  %3490 = vmatprep.subr.mxu0 0.0
  %3491 = vmatpush1.msra.mxu0 0.0
  %3492 = vmatprep.mubr.f32.mxu0 0.0
  %3493 = vmatmul.mubr.f32.gmra.mrb[0].mxu0 %v3423
  %v3494 = vpop.f32.mrb[0].mxu0
  %v3495 = vadd.f32 %v3420, %v3494
  %v3496 = vpop.f32.mrb[0].mxu0
  %3497 = vmatprep.mubr.f32.mxu0 0.0
  %3498 = vmatmul.mubr.f32.gmra.mrb[0].mxu0 %v3426
  %v3499 = vpop.f32.mrb[0].mxu0
  %v3500 = vadd.f32 %v3420, %v3499
  %v3501 = vpop.f32.mrb[0].mxu0
  %3502 = vdwg.mxu0
  %v3503 = vmax.f32 %v3495, 0.0
  %v3504 = vmax.f32 %v3500, 0.0
  %v3505 = vld [vmem:[%s18] sm:$0xff]
  %v3506 = vld [vmem:[%s18 + $0x8] sm:$0xff]
  %v3507 = vld [vmem:[%s18 + $0x10] sm:$0xff]
  %v3508 = vld [vmem:[%s18 + $0x18] sm:$0xff]
  %v3509 = vld [vmem:[%s18 + $0x20] sm:$0xff]
  %v3510 = vld [vmem:[%s18 + $0x28] sm:$0xff]
  %v3511 = vld [vmem:[%s18 + $0x30] sm:$0xff]
  %v3512 = vld [vmem:[%s18 + $0x38] sm:$0xff]
  %v3513 = vld [vmem:[%s19] sm:$0x1]
  %v3515 = vlaneseq
  %v3516 = vshrl.u32 %v3515, 7
  %v3517 = vsub.s32 0, %v3516
  %v3518 = vrot.slane %v3513, %v3517
  %vm3520 = vcmask 523264
  %v3522 = vsel %vm3520, %v3503, 0
  %v3525 = vsel %vm3520, %v3504, 0
  %3527 = vmatprep.subr.mxu0 0.0
  %3528 = vmatpush1.msra.mxu0 %v3505
  %3529 = vmatprep.subr.mxu0 0.0
  %3530 = vmatpush1.msra.mxu0 %v3506
  %3531 = vmatprep.subr.mxu0 0.0
  %3532 = vmatpush1.msra.mxu0 %v3507
  %3533 = vmatprep.subr.mxu0 0.0
  %3534 = vmatpush1.msra.mxu0 %v3508
  %3535 = vmatprep.subr.mxu0 0.0
  %3536 = vmatpush1.msra.mxu0 %v3509
  %3537 = vmatprep.subr.mxu0 0.0
  %3538 = vmatpush1.msra.mxu0 %v3510
  %3539 = vmatprep.subr.mxu0 0.0
  %3540 = vmatpush1.msra.mxu0 %v3511
  %3541 = vmatprep.subr.mxu0 0.0
  %3542 = vmatpush1.msra.mxu0 %v3512
  %3543 = vmatprep.subr.mxu0 0.0
  %3544 = vmatpush1.msra.mxu0 0.0
  %3545 = vmatprep.subr.mxu0 0.0
  %3546 = vmatpush1.msra.mxu0 0.0
  %3547 = vmatprep.subr.mxu0 0.0
  %3548 = vmatpush1.msra.mxu0 0.0
  %3549 = vmatprep.subr.mxu0 0.0
  %3550 = vmatpush1.msra.mxu0 0.0
  %3551 = vmatprep.subr.mxu0 0.0
  %3552 = vmatpush1.msra.mxu0 0.0
  %3553 = vmatprep.subr.mxu0 0.0
  %3554 = vmatpush1.msra.mxu0 0.0
  %3555 = vmatprep.subr.mxu0 0.0
  %3556 = vmatpush1.msra.mxu0 0.0
  %3557 = vmatprep.subr.mxu0 0.0
  %3558 = vmatpush1.msra.mxu0 0.0
  %3559 = vmatprep.subr.mxu0 0.0
  %3560 = vmatpush1.msra.mxu0 0.0
  %3561 = vmatprep.subr.mxu0 0.0
  %3562 = vmatpush1.msra.mxu0 0.0
  %3563 = vmatprep.subr.mxu0 0.0
  %3564 = vmatpush1.msra.mxu0 0.0
  %3565 = vmatprep.subr.mxu0 0.0
  %3566 = vmatpush1.msra.mxu0 0.0
  %3567 = vmatprep.subr.mxu0 0.0
  %3568 = vmatpush1.msra.mxu0 0.0
  %3569 = vmatprep.subr.mxu0 0.0
  %3570 = vmatpush1.msra.mxu0 0.0
  %3571 = vmatprep.subr.mxu0 0.0
  %3572 = vmatpush1.msra.mxu0 0.0
  %3573 = vmatprep.subr.mxu0 0.0
  %3574 = vmatpush1.msra.mxu0 0.0
  %3575 = vmatprep.subr.mxu0 0.0
  %3576 = vmatpush1.msra.mxu0 0.0
  %3577 = vmatprep.subr.mxu0 0.0
  %3578 = vmatpush1.msra.mxu0 0.0
  %3579 = vmatprep.subr.mxu0 0.0
  %3580 = vmatpush1.msra.mxu0 0.0
  %3581 = vmatprep.subr.mxu0 0.0
  %3582 = vmatpush1.msra.mxu0 0.0
  %3583 = vmatprep.subr.mxu0 0.0
  %3584 = vmatpush1.msra.mxu0 0.0
  %3585 = vmatprep.subr.mxu0 0.0
  %3586 = vmatpush1.msra.mxu0 0.0
  %3587 = vmatprep.subr.mxu0 0.0
  %3588 = vmatpush1.msra.mxu0 0.0
  %3589 = vmatprep.subr.mxu0 0.0
  %3590 = vmatpush1.msra.mxu0 0.0
  %3591 = vmatprep.mubr.f32.mxu0 0.0
  %3592 = vmatmul.mubr.f32.gmra.mrb[0].mxu0 %v3522
  %v3593 = vpop.f32.mrb[0].mxu0
  %v3594 = vadd.f32 %v3518, %v3593
  %v3595 = vpop.f32.mrb[0].mxu0
  %3596 = vmatprep.mubr.f32.mxu0 0.0
  %3597 = vmatmul.mubr.f32.gmra.mrb[0].mxu0 %v3525
  %v3598 = vpop.f32.mrb[0].mxu0
  %v3599 = vadd.f32 %v3518, %v3598
  %v3600 = vpop.f32.mrb[0].mxu0
  %3601 = vdwg.mxu0
  %v3602 = vld [vmem:[%s20] sm:$0x1]
  %v3603 = vld [vmem:[%s21] sm:$0x1]
  %v3604 = vsel %vm87, %v3594, 0.0
  %3605 = vadd.xlane.f32.xlu0 %v3604
  %v3606 = vpop.xlane.xlu0 %3605
  %v3607 = vsel %vm87, %v3599, 0.0
  %3608 = vadd.xlane.f32.xlu0 %v3607
  %v3609 = vpop.xlane.xlu0 %3608
  %v3610 = vmul.f32 %v3606, %v1625
  %v3611 = vmul.f32 %v3609, %v1625
  %v3612 = vsub.f32 %v3594, %v3610
  %v3613 = vsub.f32 %v3599, %v3611
  %v3614 = vmul.f32 %v3612, %v3612
  %v3615 = vmul.f32 %v3613, %v3613
  %v3616 = vsel %vm87, %v3614, 0.0
  %3617 = vadd.xlane.f32.xlu0 %v3616
  %v3618 = vpop.xlane.xlu0 %3617
  %v3619 = vsel %vm87, %v3615, 0.0
  %3620 = vadd.xlane.f32.xlu0 %v3619
  %v3621 = vpop.xlane.xlu0 %3620
  %v3622 = vmul.f32 %v3618, %v1625
  %v3623 = vmul.f32 %v3621, %v1625
  %v3624 = vadd.f32 %v3622, 1e-05
  %v3625 = vadd.f32 %v3623, 1e-05
  %v3626 = vrsqrt.pop %v3624
  %v3627 = vrsqrt.pop %v3625
  %v3628 = vmul.f32 %v3612, %v3626
  %v3629 = vmul.f32 %v3613, %v3627
  %v3631 = vlaneseq
  %v3632 = vshrl.u32 %v3631, 7
  %v3633 = vsub.s32 0, %v3632
  %v3634 = vrot.slane %v3602, %v3633
  %v3636 = vmul.f32 %v3628, %v3634
  %v3637 = vmul.f32 %v3629, %v3634
  %v3639 = vlaneseq
  %v3640 = vshrl.u32 %v3639, 7
  %v3641 = vsub.s32 0, %v3640
  %v3642 = vrot.slane %v3603, %v3641
  %v3644 = vadd.f32 %v3636, %v3642
  %v3645 = vadd.f32 %v3637, %v3642
  %v3646 = vadd.f32 %v3409, %v3644
  %v3647 = vadd.f32 %v3410, %v3645
  %3648 = vst.msk [vmem:[%s22] sm:$0xff] %vm87, %v3646
  %3649 = vst.msk [vmem:[%s22 + $0x8] sm:$0xff] %vm87, %v3647
  // Predicated region
  $region90: #{decoder_forward.1} parent=0 // pred_check
    _
  $region91: #{decoder_forward.1} parent=0 // pred_check_branch
    %3651 = sbr.rel (0) target = $region93
  $region92: #{decoder_forward.1} parent=0 // pred_region
    _
  $region93: #{decoder_forward.1} parent=0 // pred_fallthru
    _
  // Predicated region
  $region94: #{decoder_forward.1} parent=0 // pred_check
    _
  $region95: #{decoder_forward.1} parent=0 // pred_check_branch
    %3653 = sbr.rel (0) target = $region97
  $region96: #{decoder_forward.1} parent=0 // pred_region
    _
  $region97: #{decoder_forward.1} parent=0 // pred_fallthru
    _

</llo_original>
